<compile_context>
chip_gen: v5e
topology: v5e:2x2
jax: 0.10.0
libtpu: 0.0.40
codegen_flags: <defaults>
</compile_context>

<pallas_src>
import functools

import jax
import jax.numpy as jnp
from jax.experimental import pallas as pl
from jax.experimental.pallas import tpu as pltpu

LANE = 128        # TPU lane width; output-channel / feature dims are padded to this.
CONV2_CIN = 8     # conv1's 6 output channels padded to 8 for conv2 patches.
FC1_K = 512       # 16*5*5 = 400 flattened features padded to 512.


# ----------------------------------------------------------------------------
# Pallas kernels
# ----------------------------------------------------------------------------
def _conv1_bn_relu_pool_kernel(eps, inv_cnt, p_ref, w_ref, g_ref, bt_ref,
                               o_ref, s1_ref, s2_ref):
    """Fused conv1-GEMM + BatchNorm(batch stats) + ReLU + 2x2 max-pool.

    grid = (2, T):  phase 0 accumulates global BN sums over all row tiles,
                    phase 1 re-runs the GEMM, normalizes, pools and stores.
    p_ref : (4, tG, K) bf16 -- im2col patches grouped by 2x2-pool-window corner.
    w_ref : (K, 128) bf16   -- conv1 weights (output channels zero-padded).
    g/bt  : (1, 128) f32    -- BN gamma / beta (zero-padded).
    o_ref : (tG, 128) bf16  -- pooled activations (written in phase 1 only).
    s1/s2 : (1, 128) f32    -- cross-tile sum / sum-of-squares accumulators.
    """
    phase = pl.program_id(0)
    tile = pl.program_id(1)

    @pl.when(jnp.logical_and(phase == 0, tile == 0))
    def _():
        s1_ref[...] = jnp.zeros_like(s1_ref)
        s2_ref[...] = jnp.zeros_like(s2_ref)

    tg = p_ref.shape[1]
    k = p_ref.shape[2]
    p = p_ref[...].reshape(4 * tg, k)                       # one long-M GEMM
    acc = jnp.dot(p, w_ref[...], preferred_element_type=jnp.float32)  # (4*tg,128)
    # (conv1 bias omitted: cancelled exactly by batch-statistic BN mean subtraction)

    @pl.when(phase == 0)
    def _():
        s1_ref[...] += jnp.sum(acc, axis=0, keepdims=True)
        s2_ref[...] += jnp.sum(acc * acc, axis=0, keepdims=True)

    @pl.when(phase == 1)
    def _():
        mean = s1_ref[...] * inv_cnt
        var = jnp.maximum(s2_ref[...] * inv_cnt - mean * mean, 0.0)  # biased var
        scale = g_ref[...] * jax.lax.rsqrt(var + eps)
        shift = bt_ref[...] - mean * scale
        y = jnp.maximum(acc * scale + shift, 0.0)                    # BN + ReLU
        pooled = jnp.max(y.reshape(4, tg, y.shape[-1]), axis=0)      # 2x2 max-pool
        o_ref[...] = pooled.astype(o_ref.dtype)


def _conv_relu_pool_kernel(p_ref, w_ref, b_ref, o_ref):
    """Fused conv2-GEMM + bias + ReLU + 2x2 max-pool (single long-M GEMM)."""
    tg = p_ref.shape[1]
    k = p_ref.shape[2]
    p = p_ref[...].reshape(4 * tg, k)
    acc = jnp.dot(p, w_ref[...], preferred_element_type=jnp.float32) + b_ref[...]
    y = jnp.maximum(acc, 0.0)
    o_ref[...] = jnp.max(y.reshape(4, tg, y.shape[-1]), axis=0).astype(o_ref.dtype)


def _mlp_kernel(x_ref, w1_ref, b1_ref, w2_ref, b2_ref, w3_ref, b3_ref, o_ref):
    """fc1 + ReLU + fc2 + ReLU + fc3 chained in one kernel (weights stay in VMEM)."""
    h = jnp.dot(x_ref[...], w1_ref[...], preferred_element_type=jnp.float32) + b1_ref[...]
    h = jnp.maximum(h, 0.0).astype(jnp.bfloat16)
    h = jnp.dot(h, w2_ref[...], preferred_element_type=jnp.float32) + b2_ref[...]
    h = jnp.maximum(h, 0.0).astype(jnp.bfloat16)
    y = jnp.dot(h, w3_ref[...], preferred_element_type=jnp.float32) + b3_ref[...]
    o_ref[...] = y.astype(o_ref.dtype)


# ----------------------------------------------------------------------------
# pallas_call wrappers + plain-JAX glue
# ----------------------------------------------------------------------------
def _round_up(x, m):
    return ((x + m - 1) // m) * m


def _pad_last(a, target):
    pad = target - a.shape[-1]
    if pad == 0:
        return a
    return jnp.pad(a, [(0, 0)] * (a.ndim - 1) + [(0, pad)])


def _corner_patches(x_nhwc, kh, kw):
    """im2col patches grouped by 2x2-pool-window corner.

    Returns (4, G, kh*kw*C) with G = N * (H-kh+1)//2 * (W-kw+1)//2.  Corner (dy,dx)
    row g=(n,yo,xo) holds the receptive field of conv output (2*yo+dy, 2*xo+dx), so
    the 2x2 pool becomes an elementwise max over the 4 corner GEMM results.
    """
    N, H, W, C = x_nhwc.shape
    Hp, Wp = (H - kh + 1) // 2, (W - kw + 1) // 2
    corners = []
    for dy in range(2):
        for dx in range(2):
            taps = [
                x_nhwc[:, dy + i: dy + i + 2 * Hp: 2, dx + j: dx + j + 2 * Wp: 2, :]
                for i in range(kh) for j in range(kw)
            ]
            p = jnp.concatenate(taps, axis=-1)             # (N, Hp, Wp, kh*kw*C)
            corners.append(p.reshape(N * Hp * Wp, kh * kw * C))
    return jnp.stack(corners, axis=0), (N, Hp, Wp)


def conv1_bn_relu_pool(x_nhwc, w_p, g_p, bt_p, eps=1e-5):
    patches, (N, Hp, Wp) = _corner_patches(x_nhwc.astype(jnp.bfloat16), 5, 5)
    G = N * Hp * Wp
    K = patches.shape[-1]                                   # 75, no pad-to-128
    tG = min(256, _round_up(G, 8))
    Gp = _round_up(G, tG)
    if Gp != G:                                             # zero rows: add 0 to s1/s2
        patches = jnp.pad(patches, ((0, 0), (0, Gp - G), (0, 0)))
    inv_cnt = 1.0 / float(4 * G)                            # real count (exact stats)

    out = pl.pallas_call(
        functools.partial(_conv1_bn_relu_pool_kernel, eps, inv_cnt),
        out_shape=jax.ShapeDtypeStruct((Gp, LANE), jnp.bfloat16),
        grid=(2, Gp // tG),
        in_specs=[
            pl.BlockSpec((4, tG, K), lambda p, t: (0, t, 0)),
            pl.BlockSpec((K, LANE), lambda p, t: (0, 0)),
            pl.BlockSpec((1, LANE), lambda p, t: (0, 0)),
            pl.BlockSpec((1, LANE), lambda p, t: (0, 0)),
        ],
        # Phase 0 keeps the out index pinned at 0 so no garbage blocks are written;
        # phase 1 walks the tiles and each block is written exactly once.
        out_specs=pl.BlockSpec((tG, LANE), lambda p, t: (t * p, 0)),
        scratch_shapes=[pltpu.VMEM((1, LANE), jnp.float32),
                        pltpu.VMEM((1, LANE), jnp.float32)],
        compiler_params=pltpu.CompilerParams(
            dimension_semantics=("arbitrary", "arbitrary")),
    )(patches, w_p, g_p, bt_p)
    return out[:G].reshape(N, Hp, Wp, LANE)                 # pooled, channel-padded


def conv2_relu_pool(p1_nhwc, w_p, b_p):
    patches, (N, Hp, Wp) = _corner_patches(p1_nhwc, 5, 5)   # bf16, C = 8 -> K = 200
    G = N * Hp * Wp
    K = patches.shape[-1]
    tG = min(256, _round_up(G, 8))
    Gp = _round_up(G, tG)
    if Gp != G:
        patches = jnp.pad(patches, ((0, 0), (0, Gp - G), (0, 0)))

    out = pl.pallas_call(
        _conv_relu_pool_kernel,
        out_shape=jax.ShapeDtypeStruct((Gp, LANE), jnp.bfloat16),
        grid=(Gp // tG,),
        in_specs=[
            pl.BlockSpec((4, tG, K), lambda t: (0, t, 0)),
            pl.BlockSpec((K, LANE), lambda t: (0, 0)),
            pl.BlockSpec((1, LANE), lambda t: (0, 0)),
        ],
        out_specs=pl.BlockSpec((tG, LANE), lambda t: (t, 0)),
        compiler_params=pltpu.CompilerParams(dimension_semantics=("parallel",)),
    )(patches, w_p, b_p)
    return out[:G]                                          # (25N, 128), rows (n,h,w)


def mlp_head(flat, w1, b1, w2, b2, w3, b3):
    N, K = flat.shape                                       # K = 512
    tR = min(256, _round_up(N, 8))
    Np = _round_up(N, tR)
    if Np != N:
        flat = jnp.pad(flat, ((0, Np - N), (0, 0)))

    out = pl.pallas_call(
        _mlp_kernel,
        out_shape=jax.ShapeDtypeStruct((Np, LANE), jnp.float32),
        grid=(Np // tR,),
        in_specs=[
            pl.BlockSpec((tR, K), lambda i: (i, 0)),
            pl.BlockSpec((K, LANE), lambda i: (0, 0)),
            pl.BlockSpec((1, LANE), lambda i: (0, 0)),
            pl.BlockSpec((LANE, LANE), lambda i: (0, 0)),
            pl.BlockSpec((1, LANE), lambda i: (0, 0)),
            pl.BlockSpec((LANE, LANE), lambda i: (0, 0)),
            pl.BlockSpec((1, LANE), lambda i: (0, 0)),
        ],
        out_specs=pl.BlockSpec((tR, LANE), lambda i: (i, 0)),
        compiler_params=pltpu.CompilerParams(dimension_semantics=("parallel",)),
    )(flat, w1, b1, w2, b2, w3, b3)
    return out[:N, :10]                                     # drop row/col padding


def prepare_params(params):
    """Repack PyTorch-layout parameters into padded, GEMM-ready matrices (one-time)."""
    f32, bf16 = jnp.float32, jnp.bfloat16

    def pad_row(v, n):
        return _pad_last(v.reshape(1, -1).astype(f32), n)

    # conv1: (6,3,5,5) -> (kh*kw*Cin, Cout) = (75, 6) -> (75, 128)
    w1 = jnp.transpose(params["conv1_w"], (2, 3, 1, 0)).reshape(75, 6)
    w1 = _pad_last(w1, LANE).astype(bf16)

    # conv2: (16,6,5,5) -> (kh, kw, Cin->8, Cout->128) -> (200, 128)
    w2 = jnp.transpose(params["conv2_w"], (2, 3, 1, 0))                 # (5,5,6,16)
    w2 = jnp.pad(w2, ((0, 0), (0, 0), (0, CONV2_CIN - 6), (0, LANE - 16)))
    w2 = w2.reshape(25 * CONV2_CIN, LANE).astype(bf16)

    # fc1: torch flattens NCHW as (c,h,w); our activation flatten is (h,w,c) with the
    # 16 real channels only, so permute the weight and pad K 400 -> 512.
    wf1 = params["fc1_w"].reshape(120, 16, 5, 5)                        # (o,c,h,w)
    wf1 = jnp.transpose(wf1, (2, 3, 1, 0)).reshape(400, 120)            # (h,w,c,o)
    wf1 = jnp.pad(wf1, ((0, FC1_K - 400), (0, LANE - 120))).astype(bf16)

    wf2 = jnp.pad(params["fc2_w"].T, ((0, LANE - 120), (0, LANE - 84))).astype(bf16)
    wf3 = jnp.pad(params["fc3_w"].T, ((0, LANE - 84), (0, LANE - 10))).astype(bf16)

    return dict(
        # conv1 bias is intentionally not packed: with batch-statistic BatchNorm it
        # is exactly cancelled by the mean subtraction (training-mode semantics).
        conv1_w=w1,
        bn1_g=pad_row(params["bn1_g"], LANE), bn1_b=pad_row(params["bn1_b"], LANE),
        conv2_w=w2, conv2_b=pad_row(params["conv2_b"], LANE),
        fc1_w=wf1, fc1_b=pad_row(params["fc1_b"], LANE),
        fc2_w=wf2, fc2_b=pad_row(params["fc2_b"], LANE),
        fc3_w=wf3, fc3_b=pad_row(params["fc3_b"], LANE),
    )


@jax.jit
def net_forward(x_nchw, pp):
    N = x_nchw.shape[0]
    x = jnp.transpose(x_nchw, (0, 2, 3, 1))                 # NCHW -> NHWC

    # conv1 -> bn1 -> relu -> pool      (32x32x3 -> 14x14x128pad), one kernel
    p1 = conv1_bn_relu_pool(x, pp["conv1_w"], pp["bn1_g"], pp["bn1_b"])
    p1 = p1[..., :CONV2_CIN]                                # keep 6 real + 2 zero ch

    # conv2 -> relu -> pool             (14x14x8 -> (N*25, 128pad)), one kernel
    p2 = conv2_relu_pool(p1, pp["conv2_w"], pp["conv2_b"])

    # torch x.view(-1, 400): take the 16 real channels, (h,w,c) order matches fc1_w.
    flat = p2[:, :16].reshape(N, 400).astype(jnp.bfloat16)
    flat = jnp.pad(flat, ((0, 0), (0, FC1_K - 400)))

    # fc1 -> relu -> fc2 -> relu -> fc3, one fused kernel
    return mlp_head(flat, pp["fc1_w"], pp["fc1_b"], pp["fc2_w"], pp["fc2_b"],
                    pp["fc3_w"], pp["fc3_b"])


def init_params(key):
    ks = jax.random.split(key, 8)
    s = 0.1
    return {
        "conv1_w": s * jax.random.normal(ks[0], (6, 3, 5, 5), jnp.float32),
        "conv1_b": s * jax.random.normal(ks[1], (6,), jnp.float32),  # unused (BN cancels it)
        "bn1_g": jnp.ones((6,), jnp.float32),
        "bn1_b": jnp.zeros((6,), jnp.float32),
        "conv2_w": s * jax.random.normal(ks[2], (16, 6, 5, 5), jnp.float32),
        "conv2_b": s * jax.random.normal(ks[3], (16,), jnp.float32),
        "fc1_w": s * jax.random.normal(ks[4], (120, 400), jnp.float32),
        "fc1_b": jnp.zeros((120,), jnp.float32),
        "fc2_w": s * jax.random.normal(ks[5], (84, 120), jnp.float32),
        "fc2_b": jnp.zeros((84,), jnp.float32),
        "fc3_w": s * jax.random.normal(ks[6], (10, 84), jnp.float32),
        "fc3_b": jnp.zeros((10,), jnp.float32),
    }


if __name__ == "__main__":
    key = jax.random.PRNGKey(0)
    kx, kp = jax.random.split(key)
    # CIFAR-sized input is required for the 16*5*5 flatten to be consistent.
    x = jax.random.normal(kx, (2, 3, 32, 32), jnp.float32)  # NCHW
    params = init_params(kp)
    packed = prepare_params(params)

    out = jax.block_until_ready(net_forward(x, packed))
    assert out.shape == (2, 10), out.shape
    assert bool(jnp.all(jnp.isfinite(out)))
    print("KERNEL_OK")
</pallas_src>

<mosaic_0001>
module attributes {stable_mosaic.version = 11 : i64} {
  func.func @_conv1_bn_relu_pool_kernel(%arg0: i32, %arg1: i32, %arg2: memref<4x256x75xbf16, #tpu.memory_space<vmem>>, %arg3: memref<75x128xbf16, #tpu.memory_space<vmem>>, %arg4: memref<1x128xf32, #tpu.memory_space<vmem>>, %arg5: memref<1x128xf32, #tpu.memory_space<vmem>>, %arg6: memref<256x128xbf16, #tpu.memory_space<vmem>>, %arg7: memref<1x128xf32, #tpu.memory_space<vmem>>, %arg8: memref<1x128xf32, #tpu.memory_space<vmem>>) attributes {dimension_semantics = [#tpu.dimension_semantics<arbitrary>, #tpu.dimension_semantics<arbitrary>], iteration_bounds = array<i64: 2, 2>, scalar_prefetch = 0 : i64, scratch_operands = 2 : i64, tpu.core_type = #tpu.core_type<tc>, window_params = [{transform_indices = @transform_0, window_bounds = array<i64: 4, 256, 75>}, {pipeline_mode = #tpu.pipeline_mode<synchronous>, transform_indices = @transform_1, window_bounds = array<i64: 75, 128>}, {pipeline_mode = #tpu.pipeline_mode<synchronous>, transform_indices = @transform_2, window_bounds = array<i64: 1, 128>}, {pipeline_mode = #tpu.pipeline_mode<synchronous>, transform_indices = @transform_3, window_bounds = array<i64: 1, 128>}, {transform_indices = @transform_4, window_bounds = array<i64: 256, 128>}]} {
    %c0_i32 = arith.constant 0 : i32
    %0 = arith.cmpi eq, %arg0, %c0_i32 : i32
    %c0_i32_0 = arith.constant 0 : i32
    %1 = arith.cmpi eq, %arg1, %c0_i32_0 : i32
    %2 = arith.andi %0, %1 : i1
    %3 = arith.extui %2 : i1 to i32
    %c0_i32_1 = arith.constant 0 : i32
    %4 = arith.cmpi ne, %3, %c0_i32_1 : i32
    scf.if %4 {
      %cst_9 = arith.constant 0.000000e+00 : f32
      %15 = vector.broadcast %cst_9 : f32 to vector<1x128xf32>
      %c0_10 = arith.constant 0 : index
      %c0_11 = arith.constant 0 : index
      %16 = vector.load %arg7[%c0_10, %c0_11] : memref<1x128xf32, #tpu.memory_space<vmem>>, vector<1x128xf32>
      tpu.vector_store %arg7[%c0_10, %c0_11], %15 {strides = array<i32>} : memref<1x128xf32, #tpu.memory_space<vmem>>, vector<1x128xf32>,
      %cst_12 = arith.constant 0.000000e+00 : f32
      %17 = vector.broadcast %cst_12 : f32 to vector<1x128xf32>
      %c0_13 = arith.constant 0 : index
      %c0_14 = arith.constant 0 : index
      %18 = vector.load %arg8[%c0_13, %c0_14] : memref<1x128xf32, #tpu.memory_space<vmem>>, vector<1x128xf32>
      tpu.vector_store %arg8[%c0_13, %c0_14], %17 {strides = array<i32>} : memref<1x128xf32, #tpu.memory_space<vmem>>, vector<1x128xf32>,
    } else {
    }
    %c0 = arith.constant 0 : index
    %c0_2 = arith.constant 0 : index
    %c0_3 = arith.constant 0 : index
    %5 = vector.load %arg2[%c0, %c0_2, %c0_3] : memref<4x256x75xbf16, #tpu.memory_space<vmem>>, vector<4x256x75xbf16>
    %6 = vector.shape_cast %5 : vector<4x256x75xbf16> to vector<1024x75xbf16>
    %c0_4 = arith.constant 0 : index
    %c0_5 = arith.constant 0 : index
    %7 = vector.load %arg3[%c0_4, %c0_5] : memref<75x128xbf16, #tpu.memory_space<vmem>>, vector<75x128xbf16>
    %cst = arith.constant dense<0.000000e+00> : vector<1024x128xf32>
    %8 = tpu.matmul %6, %7, %cst {dimension_numbers = #tpu.dot_dimension_numbers<[1], [0], [0], [1], [0, 0, 1, 1], [], []>} : vector<1024x75xbf16>, vector<75x128xbf16>, vector<1024x128xf32> -> vector<1024x128xf32>
    %c0_i32_6 = arith.constant 0 : i32
    %9 = arith.cmpi eq, %arg0, %c0_i32_6 : i32
    %10 = arith.extui %9 : i1 to i32
    %c0_i32_7 = arith.constant 0 : i32
    %11 = arith.cmpi ne, %10, %c0_i32_7 : i32
    scf.if %11 {
      %c0_9 = arith.constant 0 : index
      %c0_10 = arith.constant 0 : index
      %15 = vector.load %arg7[%c0_9, %c0_10] : memref<1x128xf32, #tpu.memory_space<vmem>>, vector<1x128xf32>
      %cst_11 = arith.constant dense<0.000000e+00> : vector<128xf32>
      %16 = vector.multi_reduction <add>, %8, %cst_11 [0] : vector<1024x128xf32> to vector<128xf32>
      %17 = vector.shape_cast %16 : vector<128xf32> to vector<1x128xf32>
      %18 = arith.addf %15, %17 : vector<1x128xf32>
      %c0_12 = arith.constant 0 : index
      %c0_13 = arith.constant 0 : index
      %19 = vector.load %arg7[%c0_12, %c0_13] : memref<1x128xf32, #tpu.memory_space<vmem>>, vector<1x128xf32>
      tpu.vector_store %arg7[%c0_12, %c0_13], %18 {strides = array<i32>} : memref<1x128xf32, #tpu.memory_space<vmem>>, vector<1x128xf32>,
      %c0_14 = arith.constant 0 : index
      %c0_15 = arith.constant 0 : index
      %20 = vector.load %arg8[%c0_14, %c0_15] : memref<1x128xf32, #tpu.memory_space<vmem>>, vector<1x128xf32>
      %21 = arith.mulf %8, %8 : vector<1024x128xf32>
      %cst_16 = arith.constant dense<0.000000e+00> : vector<128xf32>
      %22 = vector.multi_reduction <add>, %21, %cst_16 [0] : vector<1024x128xf32> to vector<128xf32>
      %23 = vector.shape_cast %22 : vector<128xf32> to vector<1x128xf32>
      %24 = arith.addf %20, %23 : vector<1x128xf32>
      %c0_17 = arith.constant 0 : index
      %c0_18 = arith.constant 0 : index
      %25 = vector.load %arg8[%c0_17, %c0_18] : memref<1x128xf32, #tpu.memory_space<vmem>>, vector<1x128xf32>
      tpu.vector_store %arg8[%c0_17, %c0_18], %24 {strides = array<i32>} : memref<1x128xf32, #tpu.memory_space<vmem>>, vector<1x128xf32>,
    } else {
    }
    %c1_i32 = arith.constant 1 : i32
    %12 = arith.cmpi eq, %arg0, %c1_i32 : i32
    %13 = arith.extui %12 : i1 to i32
    %c0_i32_8 = arith.constant 0 : i32
    %14 = arith.cmpi ne, %13, %c0_i32_8 : i32
    scf.if %14 {
      %c0_9 = arith.constant 0 : index
      %c0_10 = arith.constant 0 : index
      %15 = vector.load %arg7[%c0_9, %c0_10] : memref<1x128xf32, #tpu.memory_space<vmem>>, vector<1x128xf32>
      %cst_11 = arith.constant 6.37755089E-4 : f32
      %16 = vector.broadcast %cst_11 : f32 to vector<1x128xf32>
      %17 = arith.mulf %15, %16 : vector<1x128xf32>
      %c0_12 = arith.constant 0 : index
      %c0_13 = arith.constant 0 : index
      %18 = vector.load %arg8[%c0_12, %c0_13] : memref<1x128xf32, #tpu.memory_space<vmem>>, vector<1x128xf32>
      %cst_14 = arith.constant 6.37755089E-4 : f32
      %19 = vector.broadcast %cst_14 : f32 to vector<1x128xf32>
      %20 = arith.mulf %18, %19 : vector<1x128xf32>
      %21 = arith.mulf %17, %17 : vector<1x128xf32>
      %22 = arith.subf %20, %21 : vector<1x128xf32>
      %cst_15 = arith.constant 0.000000e+00 : f32
      %23 = vector.broadcast %cst_15 : f32 to vector<1x128xf32>
      %24 = arith.maximumf %22, %23 : vector<1x128xf32>
      %c0_16 = arith.constant 0 : index
      %c0_17 = arith.constant 0 : index
      %25 = vector.load %arg4[%c0_16, %c0_17] : memref<1x128xf32, #tpu.memory_space<vmem>>, vector<1x128xf32>
      %cst_18 = arith.constant 9.99999974E-6 : f32
      %26 = vector.broadcast %cst_18 : f32 to vector<1x128xf32>
      %27 = arith.addf %24, %26 : vector<1x128xf32>
      %28 = math.rsqrt %27 : vector<1x128xf32>
      %29 = arith.mulf %25, %28 : vector<1x128xf32>
      %c0_19 = arith.constant 0 : index
      %c0_20 = arith.constant 0 : index
      %30 = vector.load %arg5[%c0_19, %c0_20] : memref<1x128xf32, #tpu.memory_space<vmem>>, vector<1x128xf32>
      %31 = arith.mulf %17, %29 : vector<1x128xf32>
      %32 = arith.subf %30, %31 : vector<1x128xf32>
      %33 = vector.broadcast %29 : vector<1x128xf32> to vector<1024x128xf32>
      %34 = arith.mulf %8, %33 : vector<1024x128xf32>
      %35 = vector.broadcast %32 : vector<1x128xf32> to vector<1024x128xf32>
      %36 = arith.addf %34, %35 : vector<1024x128xf32>
      %cst_21 = arith.constant 0.000000e+00 : f32
      %37 = vector.broadcast %cst_21 : f32 to vector<1024x128xf32>
      %38 = arith.maximumf %36, %37 : vector<1024x128xf32>
      %39 = vector.shape_cast %38 : vector<1024x128xf32> to vector<4x256x128xf32>
      %cst_22 = arith.constant dense<0xFF800000> : vector<256x128xf32>
      %40 = vector.multi_reduction <maximumf>, %39, %cst_22 [0] : vector<4x256x128xf32> to vector<256x128xf32>
      %41 = arith.truncf %40 : vector<256x128xf32> to vector<256x128xbf16>
      %c0_23 = arith.constant 0 : index
      %c0_24 = arith.constant 0 : index
      %42 = vector.load %arg6[%c0_23, %c0_24] : memref<256x128xbf16, #tpu.memory_space<vmem>>, vector<256x128xbf16>
      tpu.vector_store %arg6[%c0_23, %c0_24], %41 {strides = array<i32>} : memref<256x128xbf16, #tpu.memory_space<vmem>>, vector<256x128xbf16>,
    } else {
    }
    return
  }
  func.func @transform_0(%arg0: i32, %arg1: i32) -> (i32, i32, i32) {
    %c0_i32 = arith.constant 0 : i32
    %c0_i32_0 = arith.constant 0 : i32
    %c0_i32_1 = arith.constant 0 : i32
    return %c0_i32, %arg1, %c0_i32_0 : i32, i32, i32
  }
  func.func @transform_1(%arg0: i32, %arg1: i32) -> (i32, i32) {
    %c0_i32 = arith.constant 0 : i32
    %c0_i32_0 = arith.constant 0 : i32
    %c0_i32_1 = arith.constant 0 : i32
    return %c0_i32, %c0_i32_0 : i32, i32
  }
  func.func @transform_2(%arg0: i32, %arg1: i32) -> (i32, i32) {
    %c0_i32 = arith.constant 0 : i32
    %c0_i32_0 = arith.constant 0 : i32
    %c0_i32_1 = arith.constant 0 : i32
    return %c0_i32, %c0_i32_0 : i32, i32
  }
  func.func @transform_3(%arg0: i32, %arg1: i32) -> (i32, i32) {
    %c0_i32 = arith.constant 0 : i32
    %c0_i32_0 = arith.constant 0 : i32
    %c0_i32_1 = arith.constant 0 : i32
    return %c0_i32, %c0_i32_0 : i32, i32
  }
  func.func @transform_4(%arg0: i32, %arg1: i32) -> (i32, i32) {
    %0 = arith.muli %arg1, %arg0 : i32
    %c0_i32 = arith.constant 0 : i32
    %c0_i32_0 = arith.constant 0 : i32
    return %0, %c0_i32 : i32, i32
  }
}

module attributes {stable_mosaic.version = 11 : i64} {
  func.func @_mlp_kernel(%arg0: i32, %arg1: memref<8x512xbf16, #tpu.memory_space<vmem>>, %arg2: memref<512x128xbf16, #tpu.memory_space<vmem>>, %arg3: memref<1x128xf32, #tpu.memory_space<vmem>>, %arg4: memref<128x128xbf16, #tpu.memory_space<vmem>>, %arg5: memref<1x128xf32, #tpu.memory_space<vmem>>, %arg6: memref<128x128xbf16, #tpu.memory_space<vmem>>, %arg7: memref<1x128xf32, #tpu.memory_space<vmem>>, %arg8: memref<8x128xf32, #tpu.memory_space<vmem>>) attributes {dimension_semantics = [#tpu.dimension_semantics<parallel>], iteration_bounds = array<i64: 1>, scalar_prefetch = 0 : i64, scratch_operands = 0 : i64, tpu.core_type = #tpu.core_type<tc>, window_params = [{transform_indices = @transform_0, window_bounds = array<i64: 8, 512>}, {pipeline_mode = #tpu.pipeline_mode<synchronous>, transform_indices = @transform_1, window_bounds = array<i64: 512, 128>}, {pipeline_mode = #tpu.pipeline_mode<synchronous>, transform_indices = @transform_2, window_bounds = array<i64: 1, 128>}, {pipeline_mode = #tpu.pipeline_mode<synchronous>, transform_indices = @transform_3, window_bounds = array<i64: 128, 128>}, {pipeline_mode = #tpu.pipeline_mode<synchronous>, transform_indices = @transform_4, window_bounds = array<i64: 1, 128>}, {pipeline_mode = #tpu.pipeline_mode<synchronous>, transform_indices = @transform_5, window_bounds = array<i64: 128, 128>}, {pipeline_mode = #tpu.pipeline_mode<synchronous>, transform_indices = @transform_6, window_bounds = array<i64: 1, 128>}, {transform_indices = @transform_7, window_bounds = array<i64: 8, 128>}]} {
    %c0 = arith.constant 0 : index
    %c0_0 = arith.constant 0 : index
    %0 = vector.load %arg1[%c0, %c0_0] : memref<8x512xbf16, #tpu.memory_space<vmem>>, vector<8x512xbf16>
    %c0_1 = arith.constant 0 : index
    %c0_2 = arith.constant 0 : index
    %1 = vector.load %arg2[%c0_1, %c0_2] : memref<512x128xbf16, #tpu.memory_space<vmem>>, vector<512x128xbf16>
    %cst = arith.constant dense<0.000000e+00> : vector<8x128xf32>
    %2 = tpu.matmul %0, %1, %cst {dimension_numbers = #tpu.dot_dimension_numbers<[1], [0], [0], [1], [0, 0, 1, 1], [], []>} : vector<8x512xbf16>, vector<512x128xbf16>, vector<8x128xf32> -> vector<8x128xf32>
    %c0_3 = arith.constant 0 : index
    %c0_4 = arith.constant 0 : index
    %3 = vector.load %arg3[%c0_3, %c0_4] : memref<1x128xf32, #tpu.memory_space<vmem>>, vector<1x128xf32>
    %4 = vector.broadcast %3 : vector<1x128xf32> to vector<8x128xf32>
    %5 = arith.addf %2, %4 : vector<8x128xf32>
    %cst_5 = arith.constant 0.000000e+00 : f32
    %6 = vector.broadcast %cst_5 : f32 to vector<8x128xf32>
    %7 = arith.maximumf %5, %6 : vector<8x128xf32>
    %8 = arith.truncf %7 : vector<8x128xf32> to vector<8x128xbf16>
    %c0_6 = arith.constant 0 : index
    %c0_7 = arith.constant 0 : index
    %9 = vector.load %arg4[%c0_6, %c0_7] : memref<128x128xbf16, #tpu.memory_space<vmem>>, vector<128x128xbf16>
    %cst_8 = arith.constant dense<0.000000e+00> : vector<8x128xf32>
    %10 = tpu.matmul %8, %9, %cst_8 {dimension_numbers = #tpu.dot_dimension_numbers<[1], [0], [0], [1], [0, 0, 1, 1], [], []>} : vector<8x128xbf16>, vector<128x128xbf16>, vector<8x128xf32> -> vector<8x128xf32>
    %c0_9 = arith.constant 0 : index
    %c0_10 = arith.constant 0 : index
    %11 = vector.load %arg5[%c0_9, %c0_10] : memref<1x128xf32, #tpu.memory_space<vmem>>, vector<1x128xf32>
    %12 = vector.broadcast %11 : vector<1x128xf32> to vector<8x128xf32>
    %13 = arith.addf %10, %12 : vector<8x128xf32>
    %cst_11 = arith.constant 0.000000e+00 : f32
    %14 = vector.broadcast %cst_11 : f32 to vector<8x128xf32>
    %15 = arith.maximumf %13, %14 : vector<8x128xf32>
    %16 = arith.truncf %15 : vector<8x128xf32> to vector<8x128xbf16>
    %c0_12 = arith.constant 0 : index
    %c0_13 = arith.constant 0 : index
    %17 = vector.load %arg6[%c0_12, %c0_13] : memref<128x128xbf16, #tpu.memory_space<vmem>>, vector<128x128xbf16>
    %cst_14 = arith.constant dense<0.000000e+00> : vector<8x128xf32>
    %18 = tpu.matmul %16, %17, %cst_14 {dimension_numbers = #tpu.dot_dimension_numbers<[1], [0], [0], [1], [0, 0, 1, 1], [], []>} : vector<8x128xbf16>, vector<128x128xbf16>, vector<8x128xf32> -> vector<8x128xf32>
    %c0_15 = arith.constant 0 : index
    %c0_16 = arith.constant 0 : index
    %19 = vector.load %arg7[%c0_15, %c0_16] : memref<1x128xf32, #tpu.memory_space<vmem>>, vector<1x128xf32>
    %20 = vector.broadcast %19 : vector<1x128xf32> to vector<8x128xf32>
    %21 = arith.addf %18, %20 : vector<8x128xf32>
    %c0_17 = arith.constant 0 : index
    %c0_18 = arith.constant 0 : index
    %22 = vector.load %arg8[%c0_17, %c0_18] : memref<8x128xf32, #tpu.memory_space<vmem>>, vector<8x128xf32>
    tpu.vector_store %arg8[%c0_17, %c0_18], %21 {strides = array<i32>} : memref<8x128xf32, #tpu.memory_space<vmem>>, vector<8x128xf32>,
    return
  }
  func.func @transform_0(%arg0: i32) -> (i32, i32) {
    %c0_i32 = arith.constant 0 : i32
    %c0_i32_0 = arith.constant 0 : i32
    return %arg0, %c0_i32 : i32, i32
  }
  func.func @transform_1(%arg0: i32) -> (i32, i32) {
    %c0_i32 = arith.constant 0 : i32
    %c0_i32_0 = arith.constant 0 : i32
    %c0_i32_1 = arith.constant 0 : i32
    return %c0_i32, %c0_i32_0 : i32, i32
  }
  func.func @transform_2(%arg0: i32) -> (i32, i32) {
    %c0_i32 = arith.constant 0 : i32
    %c0_i32_0 = arith.constant 0 : i32
    %c0_i32_1 = arith.constant 0 : i32
    return %c0_i32, %c0_i32_0 : i32, i32
  }
  func.func @transform_3(%arg0: i32) -> (i32, i32) {
    %c0_i32 = arith.constant 0 : i32
    %c0_i32_0 = arith.constant 0 : i32
    %c0_i32_1 = arith.constant 0 : i32
    return %c0_i32, %c0_i32_0 : i32, i32
  }
  func.func @transform_4(%arg0: i32) -> (i32, i32) {
    %c0_i32 = arith.constant 0 : i32
    %c0_i32_0 = arith.constant 0 : i32
    %c0_i32_1 = arith.constant 0 : i32
    return %c0_i32, %c0_i32_0 : i32, i32
  }
  func.func @transform_5(%arg0: i32) -> (i32, i32) {
    %c0_i32 = arith.constant 0 : i32
    %c0_i32_0 = arith.constant 0 : i32
    %c0_i32_1 = arith.constant 0 : i32
    return %c0_i32, %c0_i32_0 : i32, i32
  }
  func.func @transform_6(%arg0: i32) -> (i32, i32) {
    %c0_i32 = arith.constant 0 : i32
    %c0_i32_0 = arith.constant 0 : i32
    %c0_i32_1 = arith.constant 0 : i32
    return %c0_i32, %c0_i32_0 : i32, i32
  }
  func.func @transform_7(%arg0: i32) -> (i32, i32) {
    %c0_i32 = arith.constant 0 : i32
    %c0_i32_0 = arith.constant 0 : i32
    return %arg0, %c0_i32 : i32, i32
  }
}

module attributes {stable_mosaic.version = 11 : i64} {
  func.func @_conv_relu_pool_kernel(%arg0: i32, %arg1: memref<4x56x200xbf16, #tpu.memory_space<vmem>>, %arg2: memref<200x128xbf16, #tpu.memory_space<vmem>>, %arg3: memref<1x128xf32, #tpu.memory_space<vmem>>, %arg4: memref<56x128xbf16, #tpu.memory_space<vmem>>) attributes {dimension_semantics = [#tpu.dimension_semantics<parallel>], iteration_bounds = array<i64: 1>, scalar_prefetch = 0 : i64, scratch_operands = 0 : i64, tpu.core_type = #tpu.core_type<tc>, window_params = [{transform_indices = @transform_0, window_bounds = array<i64: 4, 56, 200>}, {pipeline_mode = #tpu.pipeline_mode<synchronous>, transform_indices = @transform_1, window_bounds = array<i64: 200, 128>}, {pipeline_mode = #tpu.pipeline_mode<synchronous>, transform_indices = @transform_2, window_bounds = array<i64: 1, 128>}, {transform_indices = @transform_3, window_bounds = array<i64: 56, 128>}]} {
    %c0 = arith.constant 0 : index
    %c0_0 = arith.constant 0 : index
    %c0_1 = arith.constant 0 : index
    %0 = vector.load %arg1[%c0, %c0_0, %c0_1] : memref<4x56x200xbf16, #tpu.memory_space<vmem>>, vector<4x56x200xbf16>
    %1 = vector.shape_cast %0 : vector<4x56x200xbf16> to vector<224x200xbf16>
    %c0_2 = arith.constant 0 : index
    %c0_3 = arith.constant 0 : index
    %2 = vector.load %arg2[%c0_2, %c0_3] : memref<200x128xbf16, #tpu.memory_space<vmem>>, vector<200x128xbf16>
    %cst = arith.constant dense<0.000000e+00> : vector<224x128xf32>
    %3 = tpu.matmul %1, %2, %cst {dimension_numbers = #tpu.dot_dimension_numbers<[1], [0], [0], [1], [0, 0, 1, 1], [], []>} : vector<224x200xbf16>, vector<200x128xbf16>, vector<224x128xf32> -> vector<224x128xf32>
    %c0_4 = arith.constant 0 : index
    %c0_5 = arith.constant 0 : index
    %4 = vector.load %arg3[%c0_4, %c0_5] : memref<1x128xf32, #tpu.memory_space<vmem>>, vector<1x128xf32>
    %5 = vector.broadcast %4 : vector<1x128xf32> to vector<224x128xf32>
    %6 = arith.addf %3, %5 : vector<224x128xf32>
    %cst_6 = arith.constant 0.000000e+00 : f32
    %7 = vector.broadcast %cst_6 : f32 to vector<224x128xf32>
    %8 = arith.maximumf %6, %7 : vector<224x128xf32>
    %9 = vector.shape_cast %8 : vector<224x128xf32> to vector<4x56x128xf32>
    %cst_7 = arith.constant dense<0xFF800000> : vector<56x128xf32>
    %10 = vector.multi_reduction <maximumf>, %9, %cst_7 [0] : vector<4x56x128xf32> to vector<56x128xf32>
    %11 = arith.truncf %10 : vector<56x128xf32> to vector<56x128xbf16>
    %c0_8 = arith.constant 0 : index
    %c0_9 = arith.constant 0 : index
    %12 = vector.load %arg4[%c0_8, %c0_9] : memref<56x128xbf16, #tpu.memory_space<vmem>>, vector<56x128xbf16>
    tpu.vector_store %arg4[%c0_8, %c0_9], %11 {strides = array<i32>} : memref<56x128xbf16, #tpu.memory_space<vmem>>, vector<56x128xbf16>,
    return
  }
  func.func @transform_0(%arg0: i32) -> (i32, i32, i32) {
    %c0_i32 = arith.constant 0 : i32
    %c0_i32_0 = arith.constant 0 : i32
    %c0_i32_1 = arith.constant 0 : i32
    return %c0_i32, %arg0, %c0_i32_0 : i32, i32, i32
  }
  func.func @transform_1(%arg0: i32) -> (i32, i32) {
    %c0_i32 = arith.constant 0 : i32
    %c0_i32_0 = arith.constant 0 : i32
    %c0_i32_1 = arith.constant 0 : i32
    return %c0_i32, %c0_i32_0 : i32, i32
  }
  func.func @transform_2(%arg0: i32) -> (i32, i32) {
    %c0_i32 = arith.constant 0 : i32
    %c0_i32_0 = arith.constant 0 : i32
    %c0_i32_1 = arith.constant 0 : i32
    return %c0_i32, %c0_i32_0 : i32, i32
  }
  func.func @transform_3(%arg0: i32) -> (i32, i32) {
    %c0_i32 = arith.constant 0 : i32
    %c0_i32_0 = arith.constant 0 : i32
    return %arg0, %c0_i32 : i32, i32
  }
}

</mosaic_0001>

<llo_original>
// kernel: net_forward.3
$region0: #{net_forward.3}
  #allocation0 [shape = 'u32[]', space=smem, size = 0x4, offset = 0x4, fixed_abs, tag = 'smem constant byte address 0x4 - core index']
  #allocation1 [shape = 'u32[72,128]{1,0:T(1,128)}', space=vmem, size = 0x9000, scoped, tag = 'internal scratch']
  #allocation2 [shape = 'f32[1,128]{1,0:T(1,128)}', space=vmem, size = 0x200, scoped, tag = 'scratch operand']
  #allocation3 [shape = 'f32[1,128]{1,0:T(1,128)}', space=vmem, size = 0x200, scoped, tag = 'scratch operand']
  %s0 = inlined_call_operand.vmem [shape: bf16[4,512,75], index: 0, kind: input, shape index: {}]
  %s1 = inlined_call_operand.vmem [shape: bf16[75,128], index: 1, kind: input, shape index: {}]
  %s2 = inlined_call_operand.vmem [shape: f32[1,128], index: 2, kind: input, shape index: {}]
  %s3 = inlined_call_operand.vmem [shape: f32[1,128], index: 3, kind: input, shape index: {}]
  %s4 = inlined_call_operand.vmem [shape: bf16[512,128], index: 4, kind: output, shape index: {}]
  %s5 = sld [smem:[#allocation0]]
  $region102: #{net_forward.3} parent=0
    _
  %s7 = ssub.s32 1, %s5
  %s8 = scalar_select 0, %s7, %s5
  $region1: #{net_forward.3} parent=0
    #allocation4 [shape = 'u8[524288]{0}', space=vmem, size = 0x80000, scoped, tag = 'input window, operand 0']
    loop: start=0, step=1, limit=6
    $region2: #{net_forward.3} parent=1 // loop_pre_header
      _
    $region3: #{net_forward.3} parent=1 // loop_header
      %s10 = sphi 0, %s14
      %p11 = scmp.ge.s32.totalorder %s10, 6
      %s17 = sphi 0, %s29
      %s18 = sphi 0, %s25
      %s19 = sphi 0, %s17
      %s20 = sphi 0, %s18
      %s21 = sphi 0, %s19
      %s22 = sphi 0, %s20
      %s32 = sphi 0, %s34
      %s35 = sphi 0, %s32
      %s36 = sphi 0, %s35
      %s52 = sphi 0, %s36
      %s56 = sphi 0, %s56
      %s58 = sphi 0, %s56
      %s59 = sphi 0, %s58
      %s73 = sphi 0, %s59
      %s77 = sphi 0, %s77
      %s79 = sphi 0, %s77
      %s80 = sphi 0, %s79
      %s94 = sphi 0, %s80
      %s98 = sphi 0, %s98
      %s100 = sphi 0, %s98
      %s101 = sphi 0, %s100
      %s115 = sphi 0, %s101
      %s123 = sphi 0, %s125
      %s126 = sphi 0, %s123
      %s127 = sphi 0, %s126
      %s143 = sphi 0, %s127
    $region4: #{net_forward.3} parent=1 // loop_header_branch
      %13 = sbr.rel (%p11) target = $region8
    $region5: #{net_forward.3} parent=1 // loop_body
      %s15 = ssub.s32 %s10, 1
      %s16 = ssub.s32 %s10, 2
      %s23 = sadd.s32 1, %s18
      %p24 = scmp.ge.s32.totalorder %s23, 2
      %s25 = scalar_select %p24, 0, %s23
      %s26 = sadd.s32 1, %s17
      %s27 = scalar_select %p24, %s26, %s17
      %p28 = scmp.ge.s32.totalorder %s27, 2
      %s29 = scalar_select %p28, 0, %s27
      %s30 = ssub.s32 %s18, %s25
      %p31 = scmp.eq.s32.totalorder %s30, 0
      %s33 = sadd.s32 %s32, 1
      %s34 = scalar_select %p31, %s32, %s33
      %p37 = pneg %p31
      %p38 = scmp.eq.s32.totalorder %s10, 3
      %p39 = por %p37, %p38
      %p40 = scmp.ne.s32.totalorder %s32, %s35
      %p41 = scmp.eq.s32.totalorder %s10, 0
      %p42 = por %p40, %p41
      %p43 = scmp.ne.s32.totalorder %s32, %s35
      %p44 = scmp.eq.s32.totalorder %s15, 3
      %p45 = por %p43, %p44
      %p46 = scmp.ne.s32.totalorder %s35, %s36
      %p47 = scmp.eq.s32.totalorder %s15, 0
      %p48 = por %p46, %p47
      %p49 = scmp.ne.s32.totalorder %s35, %s36
      %p50 = scmp.eq.s32.totalorder %s16, 3
      %p51 = por %p49, %p50
      %p53 = scmp.ne.s32.totalorder %s36, %s52
      %p54 = scmp.eq.s32.totalorder %s16, 0
      %p55 = por %p53, %p54
      %s57 = sadd.s32 %s56, 1
      %p60 = scmp.eq.s32.totalorder %s10, 3
      %p61 = scmp.ne.s32.totalorder %s56, %s58
      %p62 = scmp.eq.s32.totalorder %s10, 0
      %p63 = por %p61, %p62
      %p64 = scmp.ne.s32.totalorder %s56, %s58
      %p65 = scmp.eq.s32.totalorder %s15, 3
      %p66 = por %p64, %p65
      %p67 = scmp.ne.s32.totalorder %s58, %s59
      %p68 = scmp.eq.s32.totalorder %s15, 0
      %p69 = por %p67, %p68
      %p70 = scmp.ne.s32.totalorder %s58, %s59
      %p71 = scmp.eq.s32.totalorder %s16, 3
      %p72 = por %p70, %p71
      %p74 = scmp.ne.s32.totalorder %s59, %s73
      %p75 = scmp.eq.s32.totalorder %s16, 0
      %p76 = por %p74, %p75
      %s78 = sadd.s32 %s77, 1
      %p81 = scmp.eq.s32.totalorder %s10, 3
      %p82 = scmp.ne.s32.totalorder %s77, %s79
      %p83 = scmp.eq.s32.totalorder %s10, 0
      %p84 = por %p82, %p83
      %p85 = scmp.ne.s32.totalorder %s77, %s79
      %p86 = scmp.eq.s32.totalorder %s15, 3
      %p87 = por %p85, %p86
      %p88 = scmp.ne.s32.totalorder %s79, %s80
      %p89 = scmp.eq.s32.totalorder %s15, 0
      %p90 = por %p88, %p89
      %p91 = scmp.ne.s32.totalorder %s79, %s80
      %p92 = scmp.eq.s32.totalorder %s16, 3
      %p93 = por %p91, %p92
      %p95 = scmp.ne.s32.totalorder %s80, %s94
      %p96 = scmp.eq.s32.totalorder %s16, 0
      %p97 = por %p95, %p96
      %s99 = sadd.s32 %s98, 1
      %p102 = scmp.eq.s32.totalorder %s10, 3
      %p103 = scmp.ne.s32.totalorder %s98, %s100
      %p104 = scmp.eq.s32.totalorder %s10, 0
      %p105 = por %p103, %p104
      %p106 = scmp.ne.s32.totalorder %s98, %s100
      %p107 = scmp.eq.s32.totalorder %s15, 3
      %p108 = por %p106, %p107
      %p109 = scmp.ne.s32.totalorder %s100, %s101
      %p110 = scmp.eq.s32.totalorder %s15, 0
      %p111 = por %p109, %p110
      %p112 = scmp.ne.s32.totalorder %s100, %s101
      %p113 = scmp.eq.s32.totalorder %s16, 3
      %p114 = por %p112, %p113
      %p116 = scmp.ne.s32.totalorder %s101, %s115
      %p117 = scmp.eq.s32.totalorder %s16, 0
      %p118 = por %p116, %p117
      %s119 = smul.u32 %s18, %s17
      %s120 = smul.u32 %s25, %s29
      %s121 = ssub.s32 %s119, %s120
      %p122 = scmp.eq.s32.totalorder %s121, 0
      %s124 = sadd.s32 %s123, 1
      %s125 = scalar_select %p122, %s123, %s124
      %p128 = pneg %p122
      %p129 = scmp.eq.s32.totalorder %s10, 3
      %p130 = por %p128, %p129
      %p131 = scmp.ne.s32.totalorder %s123, %s126
      %p132 = scmp.eq.s32.totalorder %s10, 0
      %p133 = por %p131, %p132
      %p134 = scmp.ne.s32.totalorder %s123, %s126
      %p135 = scmp.eq.s32.totalorder %s15, 3
      %p136 = por %p134, %p135
      %p137 = scmp.ne.s32.totalorder %s126, %s127
      %p138 = scmp.eq.s32.totalorder %s15, 0
      %p139 = por %p137, %p138
      %p140 = scmp.ne.s32.totalorder %s126, %s127
      %p141 = scmp.eq.s32.totalorder %s16, 3
      %p142 = por %p140, %p141
      %p144 = scmp.ne.s32.totalorder %s127, %s143
      %p145 = scmp.eq.s32.totalorder %s16, 0
      %p146 = por %p144, %p145
      %p147 = scmp.le.s32.totalorder 1, %s10
      %p148 = scmp.lt.s32.totalorder %s10, 5
      %p149 = pnand %p147, %p148
      %p150 = pneg %p149
      // Predicated region
      $region9: #{net_forward.3} parent=5 // pred_check
        _
      $region10: #{net_forward.3} parent=5 // pred_check_branch
        %152 = sbr.rel (%p149) target = $region12
      $region11: #{net_forward.3} parent=5 // pred_region
        %s153 = ssub.s32 %s10, 1
        // Predicated region
        $region13: #{net_forward.3} parent=11 // pred_check
          %p154 = pneg %p69
        $region14: #{net_forward.3} parent=11 // pred_check_branch
          %156 = sbr.rel (%p154) target = $region16
        $region15: #{net_forward.3} parent=11 // pred_region
          _
        $region16: #{net_forward.3} parent=11 // pred_fallthru
          _
        // Predicated region
        $region17: #{net_forward.3} parent=11 // pred_check
          %p157 = pneg %p90
        $region18: #{net_forward.3} parent=11 // pred_check_branch
          %159 = sbr.rel (%p157) target = $region20
        $region19: #{net_forward.3} parent=11 // pred_region
          _
        $region20: #{net_forward.3} parent=11 // pred_fallthru
          _
        // Predicated region
        $region21: #{net_forward.3} parent=11 // pred_check
          %p160 = pneg %p111
        $region22: #{net_forward.3} parent=11 // pred_check_branch
          %162 = sbr.rel (%p160) target = $region24
        $region23: #{net_forward.3} parent=11 // pred_region
          _
        $region24: #{net_forward.3} parent=11 // pred_fallthru
          _
      $region12: #{net_forward.3} parent=5 // pred_fallthru
        _
      %p163 = scmp.lt.s32.totalorder %s10, 4
      // Predicated region
      $region25: #{net_forward.3} parent=5 // pred_check
        %p164 = pneg %p163
      $region26: #{net_forward.3} parent=5 // pred_check_branch
        %166 = sbr.rel (%p164) target = $region28
      $region27: #{net_forward.3} parent=5 // pred_region
        // Predicated region
        $region29: #{net_forward.3} parent=27 // pred_check
          %p167 = pneg %p42
        $region30: #{net_forward.3} parent=27 // pred_check_branch
          %169 = sbr.rel (%p167) target = $region32
        $region31: #{net_forward.3} parent=27 // pred_region
          %s170 = sand.u32 %s32, 1
          %s171 = sand.u32 %s32, 1
          %s172 = smul.addr %s171, 512
          %s173 = scalar_lea.vmem [#allocation4], %s172
          %s174 = smul.u32 32, %s18
          %s175 = smul.addr %s174, 4
          %s176 = scalar_lea.vmem %s0, %s175
          // Predicated region
          $region33: #{net_forward.3} parent=31 // pred_check
            _
          $region34: #{net_forward.3} parent=31 // pred_check_branch
            %178 = sbr.rel (0) target = $region36
          $region35: #{net_forward.3} parent=31 // pred_region
            // Predicated region
            $region37: #{net_forward.3} parent=35 // pred_check
              _
            $region38: #{net_forward.3} parent=35 // pred_check_branch
              %180 = sbr.rel target = $region40
            $region39: #{net_forward.3} parent=35 // pred_region
              // Predicated region
              $region52: #{net_forward.3} parent=39 // pred_check
                _
              $region53: #{net_forward.3} parent=39 // pred_check_branch
                %450 = sbr.rel (0) target = $region55
              $region54: #{net_forward.3} parent=39 // pred_region
                loop: start=0, step=1, limit=1
                $region56: #{net_forward.3} parent=54 // loop_pre_header
                  _
                $region57: #{net_forward.3} parent=54 // loop_header
                  %s452 = sphi 0, %s456
                  %p453 = scmp.ge.s32.totalorder %s452, 1
                  %s457 = sphi %s176, %s176
                  %s458 = sphi %s173, %s173
                $region58: #{net_forward.3} parent=54 // loop_header_branch
                  %455 = sbr.rel (%p453) target = $region62
                $region59: #{net_forward.3} parent=54 // loop_body
                  _
                $region60: #{net_forward.3} parent=54 // loop_footer
                  %s456 = sadd.s32 1, %s452
                $region61: #{net_forward.3} parent=54 // loop_footer_branch
                  %451 = sbr.rel target = $region57
                $region62: #{net_forward.3} parent=54 // loop_exit
                  _
                %s460 = ssub.s32 16, 1
                loop: start=0, step=1, limit=1
                $region63: #{net_forward.3} parent=54 // loop_pre_header
                  _
                $region64: #{net_forward.3} parent=54 // loop_header
                  %s462 = sphi 0, %s466
                  %p463 = scmp.ge.s32.totalorder %s462, 1
                  %s467 = sphi %s176, %s176
                  %s468 = sphi %s173, %s173
                $region65: #{net_forward.3} parent=54 // loop_header_branch
                  %465 = sbr.rel (%p463) target = $region69
                $region66: #{net_forward.3} parent=54 // loop_body
                  %v469 = vld [vmem:[%s467] sm:%s460]
                  %470 = vst [vmem:[%s468] sm:%s460] %v469
                  %v471 = vld [vmem:[%s467 + $0x4] sm:%s460]
                  %472 = vst [vmem:[%s468 + $0x4] sm:%s460] %v471
                  %v473 = vld [vmem:[%s467 + $0x8] sm:%s460]
                  %474 = vst [vmem:[%s468 + $0x8] sm:%s460] %v473
                  %v475 = vld [vmem:[%s467 + $0xc] sm:%s460]
                  %476 = vst [vmem:[%s468 + $0xc] sm:%s460] %v475
                  %v477 = vld [vmem:[%s467 + $0x10] sm:%s460]
                  %478 = vst [vmem:[%s468 + $0x10] sm:%s460] %v477
                  %v479 = vld [vmem:[%s467 + $0x14] sm:%s460]
                  %480 = vst [vmem:[%s468 + $0x14] sm:%s460] %v479
                  %v481 = vld [vmem:[%s467 + $0x18] sm:%s460]
                  %482 = vst [vmem:[%s468 + $0x18] sm:%s460] %v481
                  %v483 = vld [vmem:[%s467 + $0x1c] sm:%s460]
                  %484 = vst [vmem:[%s468 + $0x1c] sm:%s460] %v483
                  %v485 = vld [vmem:[%s467 + $0x20] sm:%s460]
                  %486 = vst [vmem:[%s468 + $0x20] sm:%s460] %v485
                  %v487 = vld [vmem:[%s467 + $0x24] sm:%s460]
                  %488 = vst [vmem:[%s468 + $0x24] sm:%s460] %v487
                  %v489 = vld [vmem:[%s467 + $0x28] sm:%s460]
                  %490 = vst [vmem:[%s468 + $0x28] sm:%s460] %v489
                  %v491 = vld [vmem:[%s467 + $0x2c] sm:%s460]
                  %492 = vst [vmem:[%s468 + $0x2c] sm:%s460] %v491
                  %v493 = vld [vmem:[%s467 + $0x30] sm:%s460]
                  %494 = vst [vmem:[%s468 + $0x30] sm:%s460] %v493
                  %v495 = vld [vmem:[%s467 + $0x34] sm:%s460]
                  %496 = vst [vmem:[%s468 + $0x34] sm:%s460] %v495
                  %v497 = vld [vmem:[%s467 + $0x38] sm:%s460]
                  %498 = vst [vmem:[%s468 + $0x38] sm:%s460] %v497
                  %v499 = vld [vmem:[%s467 + $0x3c] sm:%s460]
                  %500 = vst [vmem:[%s468 + $0x3c] sm:%s460] %v499
                  %v501 = vld [vmem:[%s467 + $0x40] sm:%s460]
                  %502 = vst [vmem:[%s468 + $0x40] sm:%s460] %v501
                  %v503 = vld [vmem:[%s467 + $0x44] sm:%s460]
                  %504 = vst [vmem:[%s468 + $0x44] sm:%s460] %v503
                  %v505 = vld [vmem:[%s467 + $0x48] sm:%s460]
                  %506 = vst [vmem:[%s468 + $0x48] sm:%s460] %v505
                  %v507 = vld [vmem:[%s467 + $0x4c] sm:%s460]
                  %508 = vst [vmem:[%s468 + $0x4c] sm:%s460] %v507
                  %v509 = vld [vmem:[%s467 + $0x50] sm:%s460]
                  %510 = vst [vmem:[%s468 + $0x50] sm:%s460] %v509
                  %v511 = vld [vmem:[%s467 + $0x54] sm:%s460]
                  %512 = vst [vmem:[%s468 + $0x54] sm:%s460] %v511
                  %v513 = vld [vmem:[%s467 + $0x58] sm:%s460]
                  %514 = vst [vmem:[%s468 + $0x58] sm:%s460] %v513
                  %v515 = vld [vmem:[%s467 + $0x5c] sm:%s460]
                  %516 = vst [vmem:[%s468 + $0x5c] sm:%s460] %v515
                  %v517 = vld [vmem:[%s467 + $0x60] sm:%s460]
                  %518 = vst [vmem:[%s468 + $0x60] sm:%s460] %v517
                  %v519 = vld [vmem:[%s467 + $0x64] sm:%s460]
                  %520 = vst [vmem:[%s468 + $0x64] sm:%s460] %v519
                  %v521 = vld [vmem:[%s467 + $0x68] sm:%s460]
                  %522 = vst [vmem:[%s468 + $0x68] sm:%s460] %v521
                  %v523 = vld [vmem:[%s467 + $0x6c] sm:%s460]
                  %524 = vst [vmem:[%s468 + $0x6c] sm:%s460] %v523
                  %v525 = vld [vmem:[%s467 + $0x70] sm:%s460]
                  %526 = vst [vmem:[%s468 + $0x70] sm:%s460] %v525
                  %v527 = vld [vmem:[%s467 + $0x74] sm:%s460]
                  %528 = vst [vmem:[%s468 + $0x74] sm:%s460] %v527
                  %v529 = vld [vmem:[%s467 + $0x78] sm:%s460]
                  %530 = vst [vmem:[%s468 + $0x78] sm:%s460] %v529
                  %v531 = vld [vmem:[%s467 + $0x7c] sm:%s460]
                  %532 = vst [vmem:[%s468 + $0x7c] sm:%s460] %v531
                  %v533 = vld [vmem:[%s467 + $0x100] sm:%s460]
                  %534 = vst [vmem:[%s468 + $0x80] sm:%s460] %v533
                  %v535 = vld [vmem:[%s467 + $0x104] sm:%s460]
                  %536 = vst [vmem:[%s468 + $0x84] sm:%s460] %v535
                  %v537 = vld [vmem:[%s467 + $0x108] sm:%s460]
                  %538 = vst [vmem:[%s468 + $0x88] sm:%s460] %v537
                  %v539 = vld [vmem:[%s467 + $0x10c] sm:%s460]
                  %540 = vst [vmem:[%s468 + $0x8c] sm:%s460] %v539
                  %v541 = vld [vmem:[%s467 + $0x110] sm:%s460]
                  %542 = vst [vmem:[%s468 + $0x90] sm:%s460] %v541
                  %v543 = vld [vmem:[%s467 + $0x114] sm:%s460]
                  %544 = vst [vmem:[%s468 + $0x94] sm:%s460] %v543
                  %v545 = vld [vmem:[%s467 + $0x118] sm:%s460]
                  %546 = vst [vmem:[%s468 + $0x98] sm:%s460] %v545
                  %v547 = vld [vmem:[%s467 + $0x11c] sm:%s460]
                  %548 = vst [vmem:[%s468 + $0x9c] sm:%s460] %v547
                  %v549 = vld [vmem:[%s467 + $0x120] sm:%s460]
                  %550 = vst [vmem:[%s468 + $0xa0] sm:%s460] %v549
                  %v551 = vld [vmem:[%s467 + $0x124] sm:%s460]
                  %552 = vst [vmem:[%s468 + $0xa4] sm:%s460] %v551
                  %v553 = vld [vmem:[%s467 + $0x128] sm:%s460]
                  %554 = vst [vmem:[%s468 + $0xa8] sm:%s460] %v553
                  %v555 = vld [vmem:[%s467 + $0x12c] sm:%s460]
                  %556 = vst [vmem:[%s468 + $0xac] sm:%s460] %v555
                  %v557 = vld [vmem:[%s467 + $0x130] sm:%s460]
                  %558 = vst [vmem:[%s468 + $0xb0] sm:%s460] %v557
                  %v559 = vld [vmem:[%s467 + $0x134] sm:%s460]
                  %560 = vst [vmem:[%s468 + $0xb4] sm:%s460] %v559
                  %v561 = vld [vmem:[%s467 + $0x138] sm:%s460]
                  %562 = vst [vmem:[%s468 + $0xb8] sm:%s460] %v561
                  %v563 = vld [vmem:[%s467 + $0x13c] sm:%s460]
                  %564 = vst [vmem:[%s468 + $0xbc] sm:%s460] %v563
                  %v565 = vld [vmem:[%s467 + $0x140] sm:%s460]
                  %566 = vst [vmem:[%s468 + $0xc0] sm:%s460] %v565
                  %v567 = vld [vmem:[%s467 + $0x144] sm:%s460]
                  %568 = vst [vmem:[%s468 + $0xc4] sm:%s460] %v567
                  %v569 = vld [vmem:[%s467 + $0x148] sm:%s460]
                  %570 = vst [vmem:[%s468 + $0xc8] sm:%s460] %v569
                  %v571 = vld [vmem:[%s467 + $0x14c] sm:%s460]
                  %572 = vst [vmem:[%s468 + $0xcc] sm:%s460] %v571
                  %v573 = vld [vmem:[%s467 + $0x150] sm:%s460]
                  %574 = vst [vmem:[%s468 + $0xd0] sm:%s460] %v573
                  %v575 = vld [vmem:[%s467 + $0x154] sm:%s460]
                  %576 = vst [vmem:[%s468 + $0xd4] sm:%s460] %v575
                  %v577 = vld [vmem:[%s467 + $0x158] sm:%s460]
                  %578 = vst [vmem:[%s468 + $0xd8] sm:%s460] %v577
                  %v579 = vld [vmem:[%s467 + $0x15c] sm:%s460]
                  %580 = vst [vmem:[%s468 + $0xdc] sm:%s460] %v579
                  %v581 = vld [vmem:[%s467 + $0x160] sm:%s460]
                  %582 = vst [vmem:[%s468 + $0xe0] sm:%s460] %v581
                  %v583 = vld [vmem:[%s467 + $0x164] sm:%s460]
                  %584 = vst [vmem:[%s468 + $0xe4] sm:%s460] %v583
                  %v585 = vld [vmem:[%s467 + $0x168] sm:%s460]
                  %586 = vst [vmem:[%s468 + $0xe8] sm:%s460] %v585
                  %v587 = vld [vmem:[%s467 + $0x16c] sm:%s460]
                  %588 = vst [vmem:[%s468 + $0xec] sm:%s460] %v587
                  %v589 = vld [vmem:[%s467 + $0x170] sm:%s460]
                  %590 = vst [vmem:[%s468 + $0xf0] sm:%s460] %v589
                  %v591 = vld [vmem:[%s467 + $0x174] sm:%s460]
                  %592 = vst [vmem:[%s468 + $0xf4] sm:%s460] %v591
                  %v593 = vld [vmem:[%s467 + $0x178] sm:%s460]
                  %594 = vst [vmem:[%s468 + $0xf8] sm:%s460] %v593
                  %v595 = vld [vmem:[%s467 + $0x17c] sm:%s460]
                  %596 = vst [vmem:[%s468 + $0xfc] sm:%s460] %v595
                  %v597 = vld [vmem:[%s467 + $0x200] sm:%s460]
                  %598 = vst [vmem:[%s468 + $0x100] sm:%s460] %v597
                  %v599 = vld [vmem:[%s467 + $0x204] sm:%s460]
                  %600 = vst [vmem:[%s468 + $0x104] sm:%s460] %v599
                  %v601 = vld [vmem:[%s467 + $0x208] sm:%s460]
                  %602 = vst [vmem:[%s468 + $0x108] sm:%s460] %v601
                  %v603 = vld [vmem:[%s467 + $0x20c] sm:%s460]
                  %604 = vst [vmem:[%s468 + $0x10c] sm:%s460] %v603
                  %v605 = vld [vmem:[%s467 + $0x210] sm:%s460]
                  %606 = vst [vmem:[%s468 + $0x110] sm:%s460] %v605
                  %v607 = vld [vmem:[%s467 + $0x214] sm:%s460]
                  %608 = vst [vmem:[%s468 + $0x114] sm:%s460] %v607
                  %v609 = vld [vmem:[%s467 + $0x218] sm:%s460]
                  %610 = vst [vmem:[%s468 + $0x118] sm:%s460] %v609
                  %v611 = vld [vmem:[%s467 + $0x21c] sm:%s460]
                  %612 = vst [vmem:[%s468 + $0x11c] sm:%s460] %v611
                  %v613 = vld [vmem:[%s467 + $0x220] sm:%s460]
                  %614 = vst [vmem:[%s468 + $0x120] sm:%s460] %v613
                  %v615 = vld [vmem:[%s467 + $0x224] sm:%s460]
                  %616 = vst [vmem:[%s468 + $0x124] sm:%s460] %v615
                  %v617 = vld [vmem:[%s467 + $0x228] sm:%s460]
                  %618 = vst [vmem:[%s468 + $0x128] sm:%s460] %v617
                  %v619 = vld [vmem:[%s467 + $0x22c] sm:%s460]
                  %620 = vst [vmem:[%s468 + $0x12c] sm:%s460] %v619
                  %v621 = vld [vmem:[%s467 + $0x230] sm:%s460]
                  %622 = vst [vmem:[%s468 + $0x130] sm:%s460] %v621
                  %v623 = vld [vmem:[%s467 + $0x234] sm:%s460]
                  %624 = vst [vmem:[%s468 + $0x134] sm:%s460] %v623
                  %v625 = vld [vmem:[%s467 + $0x238] sm:%s460]
                  %626 = vst [vmem:[%s468 + $0x138] sm:%s460] %v625
                  %v627 = vld [vmem:[%s467 + $0x23c] sm:%s460]
                  %628 = vst [vmem:[%s468 + $0x13c] sm:%s460] %v627
                  %v629 = vld [vmem:[%s467 + $0x240] sm:%s460]
                  %630 = vst [vmem:[%s468 + $0x140] sm:%s460] %v629
                  %v631 = vld [vmem:[%s467 + $0x244] sm:%s460]
                  %632 = vst [vmem:[%s468 + $0x144] sm:%s460] %v631
                  %v633 = vld [vmem:[%s467 + $0x248] sm:%s460]
                  %634 = vst [vmem:[%s468 + $0x148] sm:%s460] %v633
                  %v635 = vld [vmem:[%s467 + $0x24c] sm:%s460]
                  %636 = vst [vmem:[%s468 + $0x14c] sm:%s460] %v635
                  %v637 = vld [vmem:[%s467 + $0x250] sm:%s460]
                  %638 = vst [vmem:[%s468 + $0x150] sm:%s460] %v637
                  %v639 = vld [vmem:[%s467 + $0x254] sm:%s460]
                  %640 = vst [vmem:[%s468 + $0x154] sm:%s460] %v639
                  %v641 = vld [vmem:[%s467 + $0x258] sm:%s460]
                  %642 = vst [vmem:[%s468 + $0x158] sm:%s460] %v641
                  %v643 = vld [vmem:[%s467 + $0x25c] sm:%s460]
                  %644 = vst [vmem:[%s468 + $0x15c] sm:%s460] %v643
                  %v645 = vld [vmem:[%s467 + $0x260] sm:%s460]
                  %646 = vst [vmem:[%s468 + $0x160] sm:%s460] %v645
                  %v647 = vld [vmem:[%s467 + $0x264] sm:%s460]
                  %648 = vst [vmem:[%s468 + $0x164] sm:%s460] %v647
                  %v649 = vld [vmem:[%s467 + $0x268] sm:%s460]
                  %650 = vst [vmem:[%s468 + $0x168] sm:%s460] %v649
                  %v651 = vld [vmem:[%s467 + $0x26c] sm:%s460]
                  %652 = vst [vmem:[%s468 + $0x16c] sm:%s460] %v651
                  %v653 = vld [vmem:[%s467 + $0x270] sm:%s460]
                  %654 = vst [vmem:[%s468 + $0x170] sm:%s460] %v653
                  %v655 = vld [vmem:[%s467 + $0x274] sm:%s460]
                  %656 = vst [vmem:[%s468 + $0x174] sm:%s460] %v655
                  %v657 = vld [vmem:[%s467 + $0x278] sm:%s460]
                  %658 = vst [vmem:[%s468 + $0x178] sm:%s460] %v657
                  %v659 = vld [vmem:[%s467 + $0x27c] sm:%s460]
                  %660 = vst [vmem:[%s468 + $0x17c] sm:%s460] %v659
                  %v661 = vld [vmem:[%s467 + $0x300] sm:%s460]
                  %662 = vst [vmem:[%s468 + $0x180] sm:%s460] %v661
                  %v663 = vld [vmem:[%s467 + $0x304] sm:%s460]
                  %664 = vst [vmem:[%s468 + $0x184] sm:%s460] %v663
                  %v665 = vld [vmem:[%s467 + $0x308] sm:%s460]
                  %666 = vst [vmem:[%s468 + $0x188] sm:%s460] %v665
                  %v667 = vld [vmem:[%s467 + $0x30c] sm:%s460]
                  %668 = vst [vmem:[%s468 + $0x18c] sm:%s460] %v667
                  %v669 = vld [vmem:[%s467 + $0x310] sm:%s460]
                  %670 = vst [vmem:[%s468 + $0x190] sm:%s460] %v669
                  %v671 = vld [vmem:[%s467 + $0x314] sm:%s460]
                  %672 = vst [vmem:[%s468 + $0x194] sm:%s460] %v671
                  %v673 = vld [vmem:[%s467 + $0x318] sm:%s460]
                  %674 = vst [vmem:[%s468 + $0x198] sm:%s460] %v673
                  %v675 = vld [vmem:[%s467 + $0x31c] sm:%s460]
                  %676 = vst [vmem:[%s468 + $0x19c] sm:%s460] %v675
                  %v677 = vld [vmem:[%s467 + $0x320] sm:%s460]
                  %678 = vst [vmem:[%s468 + $0x1a0] sm:%s460] %v677
                  %v679 = vld [vmem:[%s467 + $0x324] sm:%s460]
                  %680 = vst [vmem:[%s468 + $0x1a4] sm:%s460] %v679
                  %v681 = vld [vmem:[%s467 + $0x328] sm:%s460]
                  %682 = vst [vmem:[%s468 + $0x1a8] sm:%s460] %v681
                  %v683 = vld [vmem:[%s467 + $0x32c] sm:%s460]
                  %684 = vst [vmem:[%s468 + $0x1ac] sm:%s460] %v683
                  %v685 = vld [vmem:[%s467 + $0x330] sm:%s460]
                  %686 = vst [vmem:[%s468 + $0x1b0] sm:%s460] %v685
                  %v687 = vld [vmem:[%s467 + $0x334] sm:%s460]
                  %688 = vst [vmem:[%s468 + $0x1b4] sm:%s460] %v687
                  %v689 = vld [vmem:[%s467 + $0x338] sm:%s460]
                  %690 = vst [vmem:[%s468 + $0x1b8] sm:%s460] %v689
                  %v691 = vld [vmem:[%s467 + $0x33c] sm:%s460]
                  %692 = vst [vmem:[%s468 + $0x1bc] sm:%s460] %v691
                  %v693 = vld [vmem:[%s467 + $0x340] sm:%s460]
                  %694 = vst [vmem:[%s468 + $0x1c0] sm:%s460] %v693
                  %v695 = vld [vmem:[%s467 + $0x344] sm:%s460]
                  %696 = vst [vmem:[%s468 + $0x1c4] sm:%s460] %v695
                  %v697 = vld [vmem:[%s467 + $0x348] sm:%s460]
                  %698 = vst [vmem:[%s468 + $0x1c8] sm:%s460] %v697
                  %v699 = vld [vmem:[%s467 + $0x34c] sm:%s460]
                  %700 = vst [vmem:[%s468 + $0x1cc] sm:%s460] %v699
                  %v701 = vld [vmem:[%s467 + $0x350] sm:%s460]
                  %702 = vst [vmem:[%s468 + $0x1d0] sm:%s460] %v701
                  %v703 = vld [vmem:[%s467 + $0x354] sm:%s460]
                  %704 = vst [vmem:[%s468 + $0x1d4] sm:%s460] %v703
                  %v705 = vld [vmem:[%s467 + $0x358] sm:%s460]
                  %706 = vst [vmem:[%s468 + $0x1d8] sm:%s460] %v705
                  %v707 = vld [vmem:[%s467 + $0x35c] sm:%s460]
                  %708 = vst [vmem:[%s468 + $0x1dc] sm:%s460] %v707
                  %v709 = vld [vmem:[%s467 + $0x360] sm:%s460]
                  %710 = vst [vmem:[%s468 + $0x1e0] sm:%s460] %v709
                  %v711 = vld [vmem:[%s467 + $0x364] sm:%s460]
                  %712 = vst [vmem:[%s468 + $0x1e4] sm:%s460] %v711
                  %v713 = vld [vmem:[%s467 + $0x368] sm:%s460]
                  %714 = vst [vmem:[%s468 + $0x1e8] sm:%s460] %v713
                  %v715 = vld [vmem:[%s467 + $0x36c] sm:%s460]
                  %716 = vst [vmem:[%s468 + $0x1ec] sm:%s460] %v715
                  %v717 = vld [vmem:[%s467 + $0x370] sm:%s460]
                  %718 = vst [vmem:[%s468 + $0x1f0] sm:%s460] %v717
                  %v719 = vld [vmem:[%s467 + $0x374] sm:%s460]
                  %720 = vst [vmem:[%s468 + $0x1f4] sm:%s460] %v719
                  %v721 = vld [vmem:[%s467 + $0x378] sm:%s460]
                  %722 = vst [vmem:[%s468 + $0x1f8] sm:%s460] %v721
                  %v723 = vld [vmem:[%s467 + $0x37c] sm:%s460]
                  %724 = vst [vmem:[%s468 + $0x1fc] sm:%s460] %v723
                $region67: #{net_forward.3} parent=54 // loop_footer
                  %s466 = sadd.s32 1, %s462
                $region68: #{net_forward.3} parent=54 // loop_footer_branch
                  %461 = sbr.rel target = $region64
                $region69: #{net_forward.3} parent=54 // loop_exit
                  _
              $region55: #{net_forward.3} parent=39 // pred_fallthru
                _
            $region40: #{net_forward.3} parent=35 // pred_fallthru
              _
            // Predicated region
            $region41: #{net_forward.3} parent=35 // pred_check
              _
            $region42: #{net_forward.3} parent=35 // pred_check_branch
              %182 = sbr.rel (0) target = $region44
            $region43: #{net_forward.3} parent=35 // pred_region
              %s184 = ssub.s32 16, 1
              loop: start=0, step=1, limit=1
              $region45: #{net_forward.3} parent=43 // loop_pre_header
                _
              $region46: #{net_forward.3} parent=43 // loop_header
                %s186 = sphi 0, %s190
                %p187 = scmp.ge.s32.totalorder %s186, 1
                %s191 = sphi %s176, %s176
                %s192 = sphi %s173, %s173
              $region47: #{net_forward.3} parent=43 // loop_header_branch
                %189 = sbr.rel (%p187) target = $region51
              $region48: #{net_forward.3} parent=43 // loop_body
                %v193 = vld [vmem:[%s191] sm:%s184]
                %194 = vst [vmem:[%s192] sm:%s184] %v193
                %v195 = vld [vmem:[%s191 + $0x4] sm:%s184]
                %196 = vst [vmem:[%s192 + $0x4] sm:%s184] %v195
                %v197 = vld [vmem:[%s191 + $0x8] sm:%s184]
                %198 = vst [vmem:[%s192 + $0x8] sm:%s184] %v197
                %v199 = vld [vmem:[%s191 + $0xc] sm:%s184]
                %200 = vst [vmem:[%s192 + $0xc] sm:%s184] %v199
                %v201 = vld [vmem:[%s191 + $0x10] sm:%s184]
                %202 = vst [vmem:[%s192 + $0x10] sm:%s184] %v201
                %v203 = vld [vmem:[%s191 + $0x14] sm:%s184]
                %204 = vst [vmem:[%s192 + $0x14] sm:%s184] %v203
                %v205 = vld [vmem:[%s191 + $0x18] sm:%s184]
                %206 = vst [vmem:[%s192 + $0x18] sm:%s184] %v205
                %v207 = vld [vmem:[%s191 + $0x1c] sm:%s184]
                %208 = vst [vmem:[%s192 + $0x1c] sm:%s184] %v207
                %v209 = vld [vmem:[%s191 + $0x20] sm:%s184]
                %210 = vst [vmem:[%s192 + $0x20] sm:%s184] %v209
                %v211 = vld [vmem:[%s191 + $0x24] sm:%s184]
                %212 = vst [vmem:[%s192 + $0x24] sm:%s184] %v211
                %v213 = vld [vmem:[%s191 + $0x28] sm:%s184]
                %214 = vst [vmem:[%s192 + $0x28] sm:%s184] %v213
                %v215 = vld [vmem:[%s191 + $0x2c] sm:%s184]
                %216 = vst [vmem:[%s192 + $0x2c] sm:%s184] %v215
                %v217 = vld [vmem:[%s191 + $0x30] sm:%s184]
                %218 = vst [vmem:[%s192 + $0x30] sm:%s184] %v217
                %v219 = vld [vmem:[%s191 + $0x34] sm:%s184]
                %220 = vst [vmem:[%s192 + $0x34] sm:%s184] %v219
                %v221 = vld [vmem:[%s191 + $0x38] sm:%s184]
                %222 = vst [vmem:[%s192 + $0x38] sm:%s184] %v221
                %v223 = vld [vmem:[%s191 + $0x3c] sm:%s184]
                %224 = vst [vmem:[%s192 + $0x3c] sm:%s184] %v223
                %v225 = vld [vmem:[%s191 + $0x40] sm:%s184]
                %226 = vst [vmem:[%s192 + $0x40] sm:%s184] %v225
                %v227 = vld [vmem:[%s191 + $0x44] sm:%s184]
                %228 = vst [vmem:[%s192 + $0x44] sm:%s184] %v227
                %v229 = vld [vmem:[%s191 + $0x48] sm:%s184]
                %230 = vst [vmem:[%s192 + $0x48] sm:%s184] %v229
                %v231 = vld [vmem:[%s191 + $0x4c] sm:%s184]
                %232 = vst [vmem:[%s192 + $0x4c] sm:%s184] %v231
                %v233 = vld [vmem:[%s191 + $0x50] sm:%s184]
                %234 = vst [vmem:[%s192 + $0x50] sm:%s184] %v233
                %v235 = vld [vmem:[%s191 + $0x54] sm:%s184]
                %236 = vst [vmem:[%s192 + $0x54] sm:%s184] %v235
                %v237 = vld [vmem:[%s191 + $0x58] sm:%s184]
                %238 = vst [vmem:[%s192 + $0x58] sm:%s184] %v237
                %v239 = vld [vmem:[%s191 + $0x5c] sm:%s184]
                %240 = vst [vmem:[%s192 + $0x5c] sm:%s184] %v239
                %v241 = vld [vmem:[%s191 + $0x60] sm:%s184]
                %242 = vst [vmem:[%s192 + $0x60] sm:%s184] %v241
                %v243 = vld [vmem:[%s191 + $0x64] sm:%s184]
                %244 = vst [vmem:[%s192 + $0x64] sm:%s184] %v243
                %v245 = vld [vmem:[%s191 + $0x68] sm:%s184]
                %246 = vst [vmem:[%s192 + $0x68] sm:%s184] %v245
                %v247 = vld [vmem:[%s191 + $0x6c] sm:%s184]
                %248 = vst [vmem:[%s192 + $0x6c] sm:%s184] %v247
                %v249 = vld [vmem:[%s191 + $0x70] sm:%s184]
                %250 = vst [vmem:[%s192 + $0x70] sm:%s184] %v249
                %v251 = vld [vmem:[%s191 + $0x74] sm:%s184]
                %252 = vst [vmem:[%s192 + $0x74] sm:%s184] %v251
                %v253 = vld [vmem:[%s191 + $0x78] sm:%s184]
                %254 = vst [vmem:[%s192 + $0x78] sm:%s184] %v253
                %v255 = vld [vmem:[%s191 + $0x7c] sm:%s184]
                %256 = vst [vmem:[%s192 + $0x7c] sm:%s184] %v255
                %v257 = vld [vmem:[%s191 + $0x100] sm:%s184]
                %258 = vst [vmem:[%s192 + $0x80] sm:%s184] %v257
                %v259 = vld [vmem:[%s191 + $0x104] sm:%s184]
                %260 = vst [vmem:[%s192 + $0x84] sm:%s184] %v259
                %v261 = vld [vmem:[%s191 + $0x108] sm:%s184]
                %262 = vst [vmem:[%s192 + $0x88] sm:%s184] %v261
                %v263 = vld [vmem:[%s191 + $0x10c] sm:%s184]
                %264 = vst [vmem:[%s192 + $0x8c] sm:%s184] %v263
                %v265 = vld [vmem:[%s191 + $0x110] sm:%s184]
                %266 = vst [vmem:[%s192 + $0x90] sm:%s184] %v265
                %v267 = vld [vmem:[%s191 + $0x114] sm:%s184]
                %268 = vst [vmem:[%s192 + $0x94] sm:%s184] %v267
                %v269 = vld [vmem:[%s191 + $0x118] sm:%s184]
                %270 = vst [vmem:[%s192 + $0x98] sm:%s184] %v269
                %v271 = vld [vmem:[%s191 + $0x11c] sm:%s184]
                %272 = vst [vmem:[%s192 + $0x9c] sm:%s184] %v271
                %v273 = vld [vmem:[%s191 + $0x120] sm:%s184]
                %274 = vst [vmem:[%s192 + $0xa0] sm:%s184] %v273
                %v275 = vld [vmem:[%s191 + $0x124] sm:%s184]
                %276 = vst [vmem:[%s192 + $0xa4] sm:%s184] %v275
                %v277 = vld [vmem:[%s191 + $0x128] sm:%s184]
                %278 = vst [vmem:[%s192 + $0xa8] sm:%s184] %v277
                %v279 = vld [vmem:[%s191 + $0x12c] sm:%s184]
                %280 = vst [vmem:[%s192 + $0xac] sm:%s184] %v279
                %v281 = vld [vmem:[%s191 + $0x130] sm:%s184]
                %282 = vst [vmem:[%s192 + $0xb0] sm:%s184] %v281
                %v283 = vld [vmem:[%s191 + $0x134] sm:%s184]
                %284 = vst [vmem:[%s192 + $0xb4] sm:%s184] %v283
                %v285 = vld [vmem:[%s191 + $0x138] sm:%s184]
                %286 = vst [vmem:[%s192 + $0xb8] sm:%s184] %v285
                %v287 = vld [vmem:[%s191 + $0x13c] sm:%s184]
                %288 = vst [vmem:[%s192 + $0xbc] sm:%s184] %v287
                %v289 = vld [vmem:[%s191 + $0x140] sm:%s184]
                %290 = vst [vmem:[%s192 + $0xc0] sm:%s184] %v289
                %v291 = vld [vmem:[%s191 + $0x144] sm:%s184]
                %292 = vst [vmem:[%s192 + $0xc4] sm:%s184] %v291
                %v293 = vld [vmem:[%s191 + $0x148] sm:%s184]
                %294 = vst [vmem:[%s192 + $0xc8] sm:%s184] %v293
                %v295 = vld [vmem:[%s191 + $0x14c] sm:%s184]
                %296 = vst [vmem:[%s192 + $0xcc] sm:%s184] %v295
                %v297 = vld [vmem:[%s191 + $0x150] sm:%s184]
                %298 = vst [vmem:[%s192 + $0xd0] sm:%s184] %v297
                %v299 = vld [vmem:[%s191 + $0x154] sm:%s184]
                %300 = vst [vmem:[%s192 + $0xd4] sm:%s184] %v299
                %v301 = vld [vmem:[%s191 + $0x158] sm:%s184]
                %302 = vst [vmem:[%s192 + $0xd8] sm:%s184] %v301
                %v303 = vld [vmem:[%s191 + $0x15c] sm:%s184]
                %304 = vst [vmem:[%s192 + $0xdc] sm:%s184] %v303
                %v305 = vld [vmem:[%s191 + $0x160] sm:%s184]
                %306 = vst [vmem:[%s192 + $0xe0] sm:%s184] %v305
                %v307 = vld [vmem:[%s191 + $0x164] sm:%s184]
                %308 = vst [vmem:[%s192 + $0xe4] sm:%s184] %v307
                %v309 = vld [vmem:[%s191 + $0x168] sm:%s184]
                %310 = vst [vmem:[%s192 + $0xe8] sm:%s184] %v309
                %v311 = vld [vmem:[%s191 + $0x16c] sm:%s184]
                %312 = vst [vmem:[%s192 + $0xec] sm:%s184] %v311
                %v313 = vld [vmem:[%s191 + $0x170] sm:%s184]
                %314 = vst [vmem:[%s192 + $0xf0] sm:%s184] %v313
                %v315 = vld [vmem:[%s191 + $0x174] sm:%s184]
                %316 = vst [vmem:[%s192 + $0xf4] sm:%s184] %v315
                %v317 = vld [vmem:[%s191 + $0x178] sm:%s184]
                %318 = vst [vmem:[%s192 + $0xf8] sm:%s184] %v317
                %v319 = vld [vmem:[%s191 + $0x17c] sm:%s184]
                %320 = vst [vmem:[%s192 + $0xfc] sm:%s184] %v319
                %v321 = vld [vmem:[%s191 + $0x200] sm:%s184]
                %322 = vst [vmem:[%s192 + $0x100] sm:%s184] %v321
                %v323 = vld [vmem:[%s191 + $0x204] sm:%s184]
                %324 = vst [vmem:[%s192 + $0x104] sm:%s184] %v323
                %v325 = vld [vmem:[%s191 + $0x208] sm:%s184]
                %326 = vst [vmem:[%s192 + $0x108] sm:%s184] %v325
                %v327 = vld [vmem:[%s191 + $0x20c] sm:%s184]
                %328 = vst [vmem:[%s192 + $0x10c] sm:%s184] %v327
                %v329 = vld [vmem:[%s191 + $0x210] sm:%s184]
                %330 = vst [vmem:[%s192 + $0x110] sm:%s184] %v329
                %v331 = vld [vmem:[%s191 + $0x214] sm:%s184]
                %332 = vst [vmem:[%s192 + $0x114] sm:%s184] %v331
                %v333 = vld [vmem:[%s191 + $0x218] sm:%s184]
                %334 = vst [vmem:[%s192 + $0x118] sm:%s184] %v333
                %v335 = vld [vmem:[%s191 + $0x21c] sm:%s184]
                %336 = vst [vmem:[%s192 + $0x11c] sm:%s184] %v335
                %v337 = vld [vmem:[%s191 + $0x220] sm:%s184]
                %338 = vst [vmem:[%s192 + $0x120] sm:%s184] %v337
                %v339 = vld [vmem:[%s191 + $0x224] sm:%s184]
                %340 = vst [vmem:[%s192 + $0x124] sm:%s184] %v339
                %v341 = vld [vmem:[%s191 + $0x228] sm:%s184]
                %342 = vst [vmem:[%s192 + $0x128] sm:%s184] %v341
                %v343 = vld [vmem:[%s191 + $0x22c] sm:%s184]
                %344 = vst [vmem:[%s192 + $0x12c] sm:%s184] %v343
                %v345 = vld [vmem:[%s191 + $0x230] sm:%s184]
                %346 = vst [vmem:[%s192 + $0x130] sm:%s184] %v345
                %v347 = vld [vmem:[%s191 + $0x234] sm:%s184]
                %348 = vst [vmem:[%s192 + $0x134] sm:%s184] %v347
                %v349 = vld [vmem:[%s191 + $0x238] sm:%s184]
                %350 = vst [vmem:[%s192 + $0x138] sm:%s184] %v349
                %v351 = vld [vmem:[%s191 + $0x23c] sm:%s184]
                %352 = vst [vmem:[%s192 + $0x13c] sm:%s184] %v351
                %v353 = vld [vmem:[%s191 + $0x240] sm:%s184]
                %354 = vst [vmem:[%s192 + $0x140] sm:%s184] %v353
                %v355 = vld [vmem:[%s191 + $0x244] sm:%s184]
                %356 = vst [vmem:[%s192 + $0x144] sm:%s184] %v355
                %v357 = vld [vmem:[%s191 + $0x248] sm:%s184]
                %358 = vst [vmem:[%s192 + $0x148] sm:%s184] %v357
                %v359 = vld [vmem:[%s191 + $0x24c] sm:%s184]
                %360 = vst [vmem:[%s192 + $0x14c] sm:%s184] %v359
                %v361 = vld [vmem:[%s191 + $0x250] sm:%s184]
                %362 = vst [vmem:[%s192 + $0x150] sm:%s184] %v361
                %v363 = vld [vmem:[%s191 + $0x254] sm:%s184]
                %364 = vst [vmem:[%s192 + $0x154] sm:%s184] %v363
                %v365 = vld [vmem:[%s191 + $0x258] sm:%s184]
                %366 = vst [vmem:[%s192 + $0x158] sm:%s184] %v365
                %v367 = vld [vmem:[%s191 + $0x25c] sm:%s184]
                %368 = vst [vmem:[%s192 + $0x15c] sm:%s184] %v367
                %v369 = vld [vmem:[%s191 + $0x260] sm:%s184]
                %370 = vst [vmem:[%s192 + $0x160] sm:%s184] %v369
                %v371 = vld [vmem:[%s191 + $0x264] sm:%s184]
                %372 = vst [vmem:[%s192 + $0x164] sm:%s184] %v371
                %v373 = vld [vmem:[%s191 + $0x268] sm:%s184]
                %374 = vst [vmem:[%s192 + $0x168] sm:%s184] %v373
                %v375 = vld [vmem:[%s191 + $0x26c] sm:%s184]
                %376 = vst [vmem:[%s192 + $0x16c] sm:%s184] %v375
                %v377 = vld [vmem:[%s191 + $0x270] sm:%s184]
                %378 = vst [vmem:[%s192 + $0x170] sm:%s184] %v377
                %v379 = vld [vmem:[%s191 + $0x274] sm:%s184]
                %380 = vst [vmem:[%s192 + $0x174] sm:%s184] %v379
                %v381 = vld [vmem:[%s191 + $0x278] sm:%s184]
                %382 = vst [vmem:[%s192 + $0x178] sm:%s184] %v381
                %v383 = vld [vmem:[%s191 + $0x27c] sm:%s184]
                %384 = vst [vmem:[%s192 + $0x17c] sm:%s184] %v383
                %v385 = vld [vmem:[%s191 + $0x300] sm:%s184]
                %386 = vst [vmem:[%s192 + $0x180] sm:%s184] %v385
                %v387 = vld [vmem:[%s191 + $0x304] sm:%s184]
                %388 = vst [vmem:[%s192 + $0x184] sm:%s184] %v387
                %v389 = vld [vmem:[%s191 + $0x308] sm:%s184]
                %390 = vst [vmem:[%s192 + $0x188] sm:%s184] %v389
                %v391 = vld [vmem:[%s191 + $0x30c] sm:%s184]
                %392 = vst [vmem:[%s192 + $0x18c] sm:%s184] %v391
                %v393 = vld [vmem:[%s191 + $0x310] sm:%s184]
                %394 = vst [vmem:[%s192 + $0x190] sm:%s184] %v393
                %v395 = vld [vmem:[%s191 + $0x314] sm:%s184]
                %396 = vst [vmem:[%s192 + $0x194] sm:%s184] %v395
                %v397 = vld [vmem:[%s191 + $0x318] sm:%s184]
                %398 = vst [vmem:[%s192 + $0x198] sm:%s184] %v397
                %v399 = vld [vmem:[%s191 + $0x31c] sm:%s184]
                %400 = vst [vmem:[%s192 + $0x19c] sm:%s184] %v399
                %v401 = vld [vmem:[%s191 + $0x320] sm:%s184]
                %402 = vst [vmem:[%s192 + $0x1a0] sm:%s184] %v401
                %v403 = vld [vmem:[%s191 + $0x324] sm:%s184]
                %404 = vst [vmem:[%s192 + $0x1a4] sm:%s184] %v403
                %v405 = vld [vmem:[%s191 + $0x328] sm:%s184]
                %406 = vst [vmem:[%s192 + $0x1a8] sm:%s184] %v405
                %v407 = vld [vmem:[%s191 + $0x32c] sm:%s184]
                %408 = vst [vmem:[%s192 + $0x1ac] sm:%s184] %v407
                %v409 = vld [vmem:[%s191 + $0x330] sm:%s184]
                %410 = vst [vmem:[%s192 + $0x1b0] sm:%s184] %v409
                %v411 = vld [vmem:[%s191 + $0x334] sm:%s184]
                %412 = vst [vmem:[%s192 + $0x1b4] sm:%s184] %v411
                %v413 = vld [vmem:[%s191 + $0x338] sm:%s184]
                %414 = vst [vmem:[%s192 + $0x1b8] sm:%s184] %v413
                %v415 = vld [vmem:[%s191 + $0x33c] sm:%s184]
                %416 = vst [vmem:[%s192 + $0x1bc] sm:%s184] %v415
                %v417 = vld [vmem:[%s191 + $0x340] sm:%s184]
                %418 = vst [vmem:[%s192 + $0x1c0] sm:%s184] %v417
                %v419 = vld [vmem:[%s191 + $0x344] sm:%s184]
                %420 = vst [vmem:[%s192 + $0x1c4] sm:%s184] %v419
                %v421 = vld [vmem:[%s191 + $0x348] sm:%s184]
                %422 = vst [vmem:[%s192 + $0x1c8] sm:%s184] %v421
                %v423 = vld [vmem:[%s191 + $0x34c] sm:%s184]
                %424 = vst [vmem:[%s192 + $0x1cc] sm:%s184] %v423
                %v425 = vld [vmem:[%s191 + $0x350] sm:%s184]
                %426 = vst [vmem:[%s192 + $0x1d0] sm:%s184] %v425
                %v427 = vld [vmem:[%s191 + $0x354] sm:%s184]
                %428 = vst [vmem:[%s192 + $0x1d4] sm:%s184] %v427
                %v429 = vld [vmem:[%s191 + $0x358] sm:%s184]
                %430 = vst [vmem:[%s192 + $0x1d8] sm:%s184] %v429
                %v431 = vld [vmem:[%s191 + $0x35c] sm:%s184]
                %432 = vst [vmem:[%s192 + $0x1dc] sm:%s184] %v431
                %v433 = vld [vmem:[%s191 + $0x360] sm:%s184]
                %434 = vst [vmem:[%s192 + $0x1e0] sm:%s184] %v433
                %v435 = vld [vmem:[%s191 + $0x364] sm:%s184]
                %436 = vst [vmem:[%s192 + $0x1e4] sm:%s184] %v435
                %v437 = vld [vmem:[%s191 + $0x368] sm:%s184]
                %438 = vst [vmem:[%s192 + $0x1e8] sm:%s184] %v437
                %v439 = vld [vmem:[%s191 + $0x36c] sm:%s184]
                %440 = vst [vmem:[%s192 + $0x1ec] sm:%s184] %v439
                %v441 = vld [vmem:[%s191 + $0x370] sm:%s184]
                %442 = vst [vmem:[%s192 + $0x1f0] sm:%s184] %v441
                %v443 = vld [vmem:[%s191 + $0x374] sm:%s184]
                %444 = vst [vmem:[%s192 + $0x1f4] sm:%s184] %v443
                %v445 = vld [vmem:[%s191 + $0x378] sm:%s184]
                %446 = vst [vmem:[%s192 + $0x1f8] sm:%s184] %v445
                %v447 = vld [vmem:[%s191 + $0x37c] sm:%s184]
                %448 = vst [vmem:[%s192 + $0x1fc] sm:%s184] %v447
              $region49: #{net_forward.3} parent=43 // loop_footer
                %s190 = sadd.s32 1, %s186
              $region50: #{net_forward.3} parent=43 // loop_footer_branch
                %185 = sbr.rel target = $region46
              $region51: #{net_forward.3} parent=43 // loop_exit
                _
            $region44: #{net_forward.3} parent=35 // pred_fallthru
              _
          $region36: #{net_forward.3} parent=31 // pred_fallthru
            _
          %725 = vnop
        $region32: #{net_forward.3} parent=27 // pred_fallthru
          _
      $region28: #{net_forward.3} parent=5 // pred_fallthru
        _
      %p726 = scmp.le.s32.totalorder 1, %s10
      %p727 = scmp.lt.s32.totalorder %s10, 5
      %p728 = pnand %p726, %p727
      %p729 = pneg %p728
      // Predicated region
      $region70: #{net_forward.3} parent=5 // pred_check
        _
      $region71: #{net_forward.3} parent=5 // pred_check_branch
        %731 = sbr.rel (%p728) target = $region73
      $region72: #{net_forward.3} parent=5 // pred_region
        %s732 = ssub.s32 %s10, 1
        %s733 = sand.u32 %s35, 1
        %s734 = sand.u32 %s35, 1
        %s735 = smul.addr %s734, 512
        %s736 = scalar_lea.vmem [#allocation4], %s735
        // Predicated region
        $region74: #{net_forward.3} parent=72 // pred_check
          %p737 = pneg %p48
        $region75: #{net_forward.3} parent=72 // pred_check_branch
          %739 = sbr.rel (%p737) target = $region77
        $region76: #{net_forward.3} parent=72 // pred_region
          _
        $region77: #{net_forward.3} parent=72 // pred_fallthru
          _
        %s740 = sand.u32 %s35, 1
        %s741 = sand.u32 %s35, 1
        %s742 = smul.addr %s741, 512
        %s743 = scalar_lea.vmem [#allocation4], %s742
        %p744 = pneg %p48
        %p745 = pneg %p45
        %p746 = pneg %p69
        %p747 = pneg %p66
        %p748 = pneg %p90
        %p749 = pneg %p87
        %p750 = pneg %p111
        %p751 = pneg %p108
        %p752 = pneg %p139
        %p753 = pneg %p136
        %s754 = smul.u32 %s20, %s19
        %s755 = smul.u32 32, %s754
        %p756 = scmp.lt.s32.totalorder %s755, 63
        %s757 = scalar_select %p756, %s755, 63
        %s758 = smul.addr %s757, 4
        %s759 = scalar_lea.vmem %s4, %s758
        %s760 = smul.u32 32, %s20
        %s761 = smul.u32 %s20, %s19
        %s762 = smul.u32 32, %s761
        %p763 = scmp.lt.s32.totalorder %s762, 63
        %s764 = scalar_select %p763, %s762, 63
        %s765 = smul.addr %s764, 4
        %s766 = scalar_lea.vmem %s4, %s765
        %s767 = smul.u32 %s20, %s19
        %s768 = smul.u32 32, %s767
        %p770 = scmp.eq.s32.totalorder %s19, 0
        %p771 = scmp.eq.s32.totalorder %s20, 0
        %p772 = pnand %p770, %p771
        %p773 = pneg %p772
        // Predicated region
        $region78: #{net_forward.3} parent=72 // pred_check
          _
        $region79: #{net_forward.3} parent=72 // pred_check_branch
          %775 = sbr.rel (%p772) target = $region81
        $region80: #{net_forward.3} parent=72 // pred_region
          %776 = vst [vmem:[#allocation2] sm:$0x1] 0.0
          %777 = vst [vmem:[#allocation3] sm:$0x1] 0.0
        $region81: #{net_forward.3} parent=72 // pred_fallthru
          _
        %v778 = vld [vmem:[%s736] sm:$0xf]
        %v779 = vld [vmem:[%s736 + $0x4] sm:$0xf]
        %v780 = vld [vmem:[%s736 + $0x8] sm:$0xf]
        %v781 = vld [vmem:[%s736 + $0xc] sm:$0xf]
        %v782 = vld [vmem:[%s736 + $0x10] sm:$0xf]
        %v783 = vld [vmem:[%s736 + $0x14] sm:$0xf]
        %v784 = vld [vmem:[%s736 + $0x18] sm:$0xf]
        %v785 = vld [vmem:[%s736 + $0x1c] sm:$0xf]
        %v786 = vld [vmem:[%s736 + $0x20] sm:$0xf]
        %v787 = vld [vmem:[%s736 + $0x24] sm:$0xf]
        %v788 = vld [vmem:[%s736 + $0x28] sm:$0xf]
        %v789 = vld [vmem:[%s736 + $0x2c] sm:$0xf]
        %v790 = vld [vmem:[%s736 + $0x30] sm:$0xf]
        %v791 = vld [vmem:[%s736 + $0x34] sm:$0xf]
        %v792 = vld [vmem:[%s736 + $0x38] sm:$0xf]
        %v793 = vld [vmem:[%s736 + $0x3c] sm:$0xf]
        %v794 = vld [vmem:[%s736 + $0x40] sm:$0xf]
        %v795 = vld [vmem:[%s736 + $0x44] sm:$0xf]
        %v796 = vld [vmem:[%s736 + $0x48] sm:$0xf]
        %v797 = vld [vmem:[%s736 + $0x4c] sm:$0xf]
        %v798 = vld [vmem:[%s736 + $0x50] sm:$0xf]
        %v799 = vld [vmem:[%s736 + $0x54] sm:$0xf]
        %v800 = vld [vmem:[%s736 + $0x58] sm:$0xf]
        %v801 = vld [vmem:[%s736 + $0x5c] sm:$0xf]
        %v802 = vld [vmem:[%s736 + $0x60] sm:$0xf]
        %v803 = vld [vmem:[%s736 + $0x64] sm:$0xf]
        %v804 = vld [vmem:[%s736 + $0x68] sm:$0xf]
        %v805 = vld [vmem:[%s736 + $0x6c] sm:$0xf]
        %v806 = vld [vmem:[%s736 + $0x70] sm:$0xf]
        %v807 = vld [vmem:[%s736 + $0x74] sm:$0xf]
        %v808 = vld [vmem:[%s736 + $0x78] sm:$0xf]
        %v809 = vld [vmem:[%s736 + $0x7c] sm:$0xf]
        %v810 = vld [vmem:[%s736 + $0x80] sm:$0xf]
        %v811 = vld [vmem:[%s736 + $0x84] sm:$0xf]
        %v812 = vld [vmem:[%s736 + $0x88] sm:$0xf]
        %v813 = vld [vmem:[%s736 + $0x8c] sm:$0xf]
        %v814 = vld [vmem:[%s736 + $0x90] sm:$0xf]
        %v815 = vld [vmem:[%s736 + $0x94] sm:$0xf]
        %v816 = vld [vmem:[%s736 + $0x98] sm:$0xf]
        %v817 = vld [vmem:[%s736 + $0x9c] sm:$0xf]
        %v818 = vld [vmem:[%s736 + $0xa0] sm:$0xf]
        %v819 = vld [vmem:[%s736 + $0xa4] sm:$0xf]
        %v820 = vld [vmem:[%s736 + $0xa8] sm:$0xf]
        %v821 = vld [vmem:[%s736 + $0xac] sm:$0xf]
        %v822 = vld [vmem:[%s736 + $0xb0] sm:$0xf]
        %v823 = vld [vmem:[%s736 + $0xb4] sm:$0xf]
        %v824 = vld [vmem:[%s736 + $0xb8] sm:$0xf]
        %v825 = vld [vmem:[%s736 + $0xbc] sm:$0xf]
        %v826 = vld [vmem:[%s736 + $0xc0] sm:$0xf]
        %v827 = vld [vmem:[%s736 + $0xc4] sm:$0xf]
        %v828 = vld [vmem:[%s736 + $0xc8] sm:$0xf]
        %v829 = vld [vmem:[%s736 + $0xcc] sm:$0xf]
        %v830 = vld [vmem:[%s736 + $0xd0] sm:$0xf]
        %v831 = vld [vmem:[%s736 + $0xd4] sm:$0xf]
        %v832 = vld [vmem:[%s736 + $0xd8] sm:$0xf]
        %v833 = vld [vmem:[%s736 + $0xdc] sm:$0xf]
        %v834 = vld [vmem:[%s736 + $0xe0] sm:$0xf]
        %v835 = vld [vmem:[%s736 + $0xe4] sm:$0xf]
        %v836 = vld [vmem:[%s736 + $0xe8] sm:$0xf]
        %v837 = vld [vmem:[%s736 + $0xec] sm:$0xf]
        %v838 = vld [vmem:[%s736 + $0xf0] sm:$0xf]
        %v839 = vld [vmem:[%s736 + $0xf4] sm:$0xf]
        %v840 = vld [vmem:[%s736 + $0xf8] sm:$0xf]
        %v841 = vld [vmem:[%s736 + $0xfc] sm:$0xf]
        %v842 = vld [vmem:[%s736 + $0x100] sm:$0xf]
        %v843 = vld [vmem:[%s736 + $0x104] sm:$0xf]
        %v844 = vld [vmem:[%s736 + $0x108] sm:$0xf]
        %v845 = vld [vmem:[%s736 + $0x10c] sm:$0xf]
        %v846 = vld [vmem:[%s736 + $0x110] sm:$0xf]
        %v847 = vld [vmem:[%s736 + $0x114] sm:$0xf]
        %v848 = vld [vmem:[%s736 + $0x118] sm:$0xf]
        %v849 = vld [vmem:[%s736 + $0x11c] sm:$0xf]
        %v850 = vld [vmem:[%s736 + $0x120] sm:$0xf]
        %v851 = vld [vmem:[%s736 + $0x124] sm:$0xf]
        %v852 = vld [vmem:[%s736 + $0x128] sm:$0xf]
        %v853 = vld [vmem:[%s736 + $0x12c] sm:$0xf]
        %v854 = vld [vmem:[%s736 + $0x130] sm:$0xf]
        %v855 = vld [vmem:[%s736 + $0x134] sm:$0xf]
        %v856 = vld [vmem:[%s736 + $0x138] sm:$0xf]
        %v857 = vld [vmem:[%s736 + $0x13c] sm:$0xf]
        %v858 = vld [vmem:[%s736 + $0x140] sm:$0xf]
        %v859 = vld [vmem:[%s736 + $0x144] sm:$0xf]
        %v860 = vld [vmem:[%s736 + $0x148] sm:$0xf]
        %v861 = vld [vmem:[%s736 + $0x14c] sm:$0xf]
        %v862 = vld [vmem:[%s736 + $0x150] sm:$0xf]
        %v863 = vld [vmem:[%s736 + $0x154] sm:$0xf]
        %v864 = vld [vmem:[%s736 + $0x158] sm:$0xf]
        %v865 = vld [vmem:[%s736 + $0x15c] sm:$0xf]
        %v866 = vld [vmem:[%s736 + $0x160] sm:$0xf]
        %v867 = vld [vmem:[%s736 + $0x164] sm:$0xf]
        %v868 = vld [vmem:[%s736 + $0x168] sm:$0xf]
        %v869 = vld [vmem:[%s736 + $0x16c] sm:$0xf]
        %v870 = vld [vmem:[%s736 + $0x170] sm:$0xf]
        %v871 = vld [vmem:[%s736 + $0x174] sm:$0xf]
        %v872 = vld [vmem:[%s736 + $0x178] sm:$0xf]
        %v873 = vld [vmem:[%s736 + $0x17c] sm:$0xf]
        %v874 = vld [vmem:[%s736 + $0x180] sm:$0xf]
        %v875 = vld [vmem:[%s736 + $0x184] sm:$0xf]
        %v876 = vld [vmem:[%s736 + $0x188] sm:$0xf]
        %v877 = vld [vmem:[%s736 + $0x18c] sm:$0xf]
        %v878 = vld [vmem:[%s736 + $0x190] sm:$0xf]
        %v879 = vld [vmem:[%s736 + $0x194] sm:$0xf]
        %v880 = vld [vmem:[%s736 + $0x198] sm:$0xf]
        %v881 = vld [vmem:[%s736 + $0x19c] sm:$0xf]
        %v882 = vld [vmem:[%s736 + $0x1a0] sm:$0xf]
        %v883 = vld [vmem:[%s736 + $0x1a4] sm:$0xf]
        %v884 = vld [vmem:[%s736 + $0x1a8] sm:$0xf]
        %v885 = vld [vmem:[%s736 + $0x1ac] sm:$0xf]
        %v886 = vld [vmem:[%s736 + $0x1b0] sm:$0xf]
        %v887 = vld [vmem:[%s736 + $0x1b4] sm:$0xf]
        %v888 = vld [vmem:[%s736 + $0x1b8] sm:$0xf]
        %v889 = vld [vmem:[%s736 + $0x1bc] sm:$0xf]
        %v890 = vld [vmem:[%s736 + $0x1c0] sm:$0xf]
        %v891 = vld [vmem:[%s736 + $0x1c4] sm:$0xf]
        %v892 = vld [vmem:[%s736 + $0x1c8] sm:$0xf]
        %v893 = vld [vmem:[%s736 + $0x1cc] sm:$0xf]
        %v894 = vld [vmem:[%s736 + $0x1d0] sm:$0xf]
        %v895 = vld [vmem:[%s736 + $0x1d4] sm:$0xf]
        %v896 = vld [vmem:[%s736 + $0x1d8] sm:$0xf]
        %v897 = vld [vmem:[%s736 + $0x1dc] sm:$0xf]
        %v898 = vld [vmem:[%s736 + $0x1e0] sm:$0xf]
        %v899 = vld [vmem:[%s736 + $0x1e4] sm:$0xf]
        %v900 = vld [vmem:[%s736 + $0x1e8] sm:$0xf]
        %v901 = vld [vmem:[%s736 + $0x1ec] sm:$0xf]
        %v902 = vld [vmem:[%s736 + $0x1f0] sm:$0xf]
        %v903 = vld [vmem:[%s736 + $0x1f4] sm:$0xf]
        %v904 = vld [vmem:[%s736 + $0x1f8] sm:$0xf]
        %v905 = vld [vmem:[%s736 + $0x1fc] sm:$0xf]
        %v906 = vld [vmem:[%s1] sm:$0xf]
        %v907 = vld [vmem:[%s1 + $0x4] sm:$0xf]
        %v908 = vld [vmem:[%s1 + $0x8] sm:$0xf]
        %v909 = vld [vmem:[%s1 + $0xc] sm:$0xf]
        %v910 = vld [vmem:[%s1 + $0x10] sm:$0xf]
        %v911 = vld [vmem:[%s1 + $0x14] sm:$0xf]
        %v912 = vld [vmem:[%s1 + $0x18] sm:$0xf]
        %v913 = vld [vmem:[%s1 + $0x1c] sm:$0xf]
        %v914 = vld [vmem:[%s1 + $0x20] sm:$0xf]
        %v915 = vld [vmem:[%s1 + $0x24] sm:$0x3]
        %v1044 = vunpack.c.l.b16 %v778
        %v1045 = vunpack.c.l.b16 %v779
        %v1046 = vunpack.c.l.b16 %v780
        %v1047 = vunpack.c.l.b16 %v781
        %v1048 = vunpack.c.l.b16 %v782
        %v1049 = vunpack.c.l.b16 %v783
        %v1050 = vunpack.c.l.b16 %v784
        %v1051 = vunpack.c.l.b16 %v785
        %v1052 = vunpack.c.l.b16 %v786
        %v1053 = vunpack.c.l.b16 %v787
        %v1054 = vunpack.c.l.b16 %v788
        %v1055 = vunpack.c.l.b16 %v789
        %v1056 = vunpack.c.l.b16 %v790
        %v1057 = vunpack.c.l.b16 %v791
        %v1058 = vunpack.c.l.b16 %v792
        %v1059 = vunpack.c.l.b16 %v793
        %v1060 = vunpack.c.l.b16 %v794
        %v1061 = vunpack.c.l.b16 %v795
        %v1062 = vunpack.c.l.b16 %v796
        %v1063 = vunpack.c.l.b16 %v797
        %v1064 = vunpack.c.l.b16 %v798
        %v1065 = vunpack.c.l.b16 %v799
        %v1066 = vunpack.c.l.b16 %v800
        %v1067 = vunpack.c.l.b16 %v801
        %v1068 = vunpack.c.l.b16 %v802
        %v1069 = vunpack.c.l.b16 %v803
        %v1070 = vunpack.c.l.b16 %v804
        %v1071 = vunpack.c.l.b16 %v805
        %v1072 = vunpack.c.l.b16 %v806
        %v1073 = vunpack.c.l.b16 %v807
        %v1074 = vunpack.c.l.b16 %v808
        %v1075 = vunpack.c.l.b16 %v809
        %v1076 = vunpack.c.l.b16 %v810
        %v1077 = vunpack.c.l.b16 %v811
        %v1078 = vunpack.c.l.b16 %v812
        %v1079 = vunpack.c.l.b16 %v813
        %v1080 = vunpack.c.l.b16 %v814
        %v1081 = vunpack.c.l.b16 %v815
        %v1082 = vunpack.c.l.b16 %v816
        %v1083 = vunpack.c.l.b16 %v817
        %v1084 = vunpack.c.l.b16 %v818
        %v1085 = vunpack.c.l.b16 %v819
        %v1086 = vunpack.c.l.b16 %v820
        %v1087 = vunpack.c.l.b16 %v821
        %v1088 = vunpack.c.l.b16 %v822
        %v1089 = vunpack.c.l.b16 %v823
        %v1090 = vunpack.c.l.b16 %v824
        %v1091 = vunpack.c.l.b16 %v825
        %v1092 = vunpack.c.l.b16 %v826
        %v1093 = vunpack.c.l.b16 %v827
        %v1094 = vunpack.c.l.b16 %v828
        %v1095 = vunpack.c.l.b16 %v829
        %v1096 = vunpack.c.l.b16 %v830
        %v1097 = vunpack.c.l.b16 %v831
        %v1098 = vunpack.c.l.b16 %v832
        %v1099 = vunpack.c.l.b16 %v833
        %v1100 = vunpack.c.l.b16 %v834
        %v1101 = vunpack.c.l.b16 %v835
        %v1102 = vunpack.c.l.b16 %v836
        %v1103 = vunpack.c.l.b16 %v837
        %v1104 = vunpack.c.l.b16 %v838
        %v1105 = vunpack.c.l.b16 %v839
        %v1106 = vunpack.c.l.b16 %v840
        %v1107 = vunpack.c.l.b16 %v841
        %v1108 = vunpack.c.l.b16 %v842
        %v1109 = vunpack.c.l.b16 %v843
        %v1110 = vunpack.c.l.b16 %v844
        %v1111 = vunpack.c.l.b16 %v845
        %v1112 = vunpack.c.l.b16 %v846
        %v1113 = vunpack.c.l.b16 %v847
        %v1114 = vunpack.c.l.b16 %v848
        %v1115 = vunpack.c.l.b16 %v849
        %v1116 = vunpack.c.l.b16 %v850
        %v1117 = vunpack.c.l.b16 %v851
        %v1118 = vunpack.c.l.b16 %v852
        %v1119 = vunpack.c.l.b16 %v853
        %v1120 = vunpack.c.l.b16 %v854
        %v1121 = vunpack.c.l.b16 %v855
        %v1122 = vunpack.c.l.b16 %v856
        %v1123 = vunpack.c.l.b16 %v857
        %v1124 = vunpack.c.l.b16 %v858
        %v1125 = vunpack.c.l.b16 %v859
        %v1126 = vunpack.c.l.b16 %v860
        %v1127 = vunpack.c.l.b16 %v861
        %v1128 = vunpack.c.l.b16 %v862
        %v1129 = vunpack.c.l.b16 %v863
        %v1130 = vunpack.c.l.b16 %v864
        %v1131 = vunpack.c.l.b16 %v865
        %v1132 = vunpack.c.l.b16 %v866
        %v1133 = vunpack.c.l.b16 %v867
        %v1134 = vunpack.c.l.b16 %v868
        %v1135 = vunpack.c.l.b16 %v869
        %v1136 = vunpack.c.l.b16 %v870
        %v1137 = vunpack.c.l.b16 %v871
        %v1138 = vunpack.c.l.b16 %v872
        %v1139 = vunpack.c.l.b16 %v873
        %v1140 = vunpack.c.l.b16 %v874
        %v1141 = vunpack.c.l.b16 %v875
        %v1142 = vunpack.c.l.b16 %v876
        %v1143 = vunpack.c.l.b16 %v877
        %v1144 = vunpack.c.l.b16 %v878
        %v1145 = vunpack.c.l.b16 %v879
        %v1146 = vunpack.c.l.b16 %v880
        %v1147 = vunpack.c.l.b16 %v881
        %v1148 = vunpack.c.l.b16 %v882
        %v1149 = vunpack.c.l.b16 %v883
        %v1150 = vunpack.c.l.b16 %v884
        %v1151 = vunpack.c.l.b16 %v885
        %v1152 = vunpack.c.l.b16 %v886
        %v1153 = vunpack.c.l.b16 %v887
        %v1154 = vunpack.c.l.b16 %v888
        %v1155 = vunpack.c.l.b16 %v889
        %v1156 = vunpack.c.l.b16 %v890
        %v1157 = vunpack.c.l.b16 %v891
        %v1158 = vunpack.c.l.b16 %v892
        %v1159 = vunpack.c.l.b16 %v893
        %v1160 = vunpack.c.l.b16 %v894
        %v1161 = vunpack.c.l.b16 %v895
        %v1162 = vunpack.c.l.b16 %v896
        %v1163 = vunpack.c.l.b16 %v897
        %v1164 = vunpack.c.l.b16 %v898
        %v1165 = vunpack.c.l.b16 %v899
        %v1166 = vunpack.c.l.b16 %v900
        %v1167 = vunpack.c.l.b16 %v901
        %v1168 = vunpack.c.l.b16 %v902
        %v1169 = vunpack.c.l.b16 %v903
        %v1170 = vunpack.c.l.b16 %v904
        %v1171 = vunpack.c.l.b16 %v905
        %v1172 = vpack.c.b16 %v1045, %v1044
        %v1173 = vpack.c.b16 %v1047, %v1046
        %v1174 = vpack.c.b16 %v1049, %v1048
        %v1175 = vpack.c.b16 %v1051, %v1050
        %v1176 = vpack.c.b16 %v1053, %v1052
        %v1177 = vpack.c.b16 %v1055, %v1054
        %v1178 = vpack.c.b16 %v1057, %v1056
        %v1179 = vpack.c.b16 %v1059, %v1058
        %v1180 = vpack.c.b16 %v1061, %v1060
        %v1181 = vpack.c.b16 %v1063, %v1062
        %v1182 = vpack.c.b16 %v1065, %v1064
        %v1183 = vpack.c.b16 %v1067, %v1066
        %v1184 = vpack.c.b16 %v1069, %v1068
        %v1185 = vpack.c.b16 %v1071, %v1070
        %v1186 = vpack.c.b16 %v1073, %v1072
        %v1187 = vpack.c.b16 %v1075, %v1074
        %v1188 = vpack.c.b16 %v1077, %v1076
        %v1189 = vpack.c.b16 %v1079, %v1078
        %v1190 = vpack.c.b16 %v1081, %v1080
        %v1191 = vpack.c.b16 %v1083, %v1082
        %v1192 = vpack.c.b16 %v1085, %v1084
        %v1193 = vpack.c.b16 %v1087, %v1086
        %v1194 = vpack.c.b16 %v1089, %v1088
        %v1195 = vpack.c.b16 %v1091, %v1090
        %v1196 = vpack.c.b16 %v1093, %v1092
        %v1197 = vpack.c.b16 %v1095, %v1094
        %v1198 = vpack.c.b16 %v1097, %v1096
        %v1199 = vpack.c.b16 %v1099, %v1098
        %v1200 = vpack.c.b16 %v1101, %v1100
        %v1201 = vpack.c.b16 %v1103, %v1102
        %v1202 = vpack.c.b16 %v1105, %v1104
        %v1203 = vpack.c.b16 %v1107, %v1106
        %v1204 = vpack.c.b16 %v1109, %v1108
        %v1205 = vpack.c.b16 %v1111, %v1110
        %v1206 = vpack.c.b16 %v1113, %v1112
        %v1207 = vpack.c.b16 %v1115, %v1114
        %v1208 = vpack.c.b16 %v1117, %v1116
        %v1209 = vpack.c.b16 %v1119, %v1118
        %v1210 = vpack.c.b16 %v1121, %v1120
        %v1211 = vpack.c.b16 %v1123, %v1122
        %v1212 = vpack.c.b16 %v1125, %v1124
        %v1213 = vpack.c.b16 %v1127, %v1126
        %v1214 = vpack.c.b16 %v1129, %v1128
        %v1215 = vpack.c.b16 %v1131, %v1130
        %v1216 = vpack.c.b16 %v1133, %v1132
        %v1217 = vpack.c.b16 %v1135, %v1134
        %v1218 = vpack.c.b16 %v1137, %v1136
        %v1219 = vpack.c.b16 %v1139, %v1138
        %v1220 = vpack.c.b16 %v1141, %v1140
        %v1221 = vpack.c.b16 %v1143, %v1142
        %v1222 = vpack.c.b16 %v1145, %v1144
        %v1223 = vpack.c.b16 %v1147, %v1146
        %v1224 = vpack.c.b16 %v1149, %v1148
        %v1225 = vpack.c.b16 %v1151, %v1150
        %v1226 = vpack.c.b16 %v1153, %v1152
        %v1227 = vpack.c.b16 %v1155, %v1154
        %v1228 = vpack.c.b16 %v1157, %v1156
        %v1229 = vpack.c.b16 %v1159, %v1158
        %v1230 = vpack.c.b16 %v1161, %v1160
        %v1231 = vpack.c.b16 %v1163, %v1162
        %v1232 = vpack.c.b16 %v1165, %v1164
        %v1233 = vpack.c.b16 %v1167, %v1166
        %v1234 = vpack.c.b16 %v1169, %v1168
        %v1235 = vpack.c.b16 %v1171, %v1170
        %v1246 = vunpack.c.l.b16 %v906
        %v1247 = vunpack.c.l.b16 %v907
        %v1248 = vunpack.c.l.b16 %v908
        %v1249 = vunpack.c.l.b16 %v909
        %v1250 = vunpack.c.l.b16 %v910
        %v1251 = vunpack.c.l.b16 %v911
        %v1252 = vunpack.c.l.b16 %v912
        %v1253 = vunpack.c.l.b16 %v913
        %v1254 = vunpack.c.l.b16 %v914
        %v1255 = vunpack.c.l.b16 %v915
        %v1256 = vpack.c.b16 %v1247, %v1246
        %v1257 = vpack.c.b16 %v1249, %v1248
        %v1258 = vpack.c.b16 %v1251, %v1250
        %v1259 = vpack.c.b16 %v1253, %v1252
        %v1260 = vpack.c.b16 %v1255, %v1254
        %vm1265 = vcmask 613376
        %v1267 = vsel %vm1265, %v1172, 0
        %v1270 = vsel %vm1265, %v1173, 0
        %v1273 = vsel %vm1265, %v1174, 0
        %v1276 = vsel %vm1265, %v1175, 0
        %v1279 = vsel %vm1265, %v1176, 0
        %v1282 = vsel %vm1265, %v1177, 0
        %v1285 = vsel %vm1265, %v1178, 0
        %v1288 = vsel %vm1265, %v1179, 0
        %v1291 = vsel %vm1265, %v1180, 0
        %v1294 = vsel %vm1265, %v1181, 0
        %v1297 = vsel %vm1265, %v1182, 0
        %v1300 = vsel %vm1265, %v1183, 0
        %v1303 = vsel %vm1265, %v1184, 0
        %v1306 = vsel %vm1265, %v1185, 0
        %v1309 = vsel %vm1265, %v1186, 0
        %v1312 = vsel %vm1265, %v1187, 0
        %v1315 = vsel %vm1265, %v1188, 0
        %v1318 = vsel %vm1265, %v1189, 0
        %v1321 = vsel %vm1265, %v1190, 0
        %v1324 = vsel %vm1265, %v1191, 0
        %v1327 = vsel %vm1265, %v1192, 0
        %v1330 = vsel %vm1265, %v1193, 0
        %v1333 = vsel %vm1265, %v1194, 0
        %v1336 = vsel %vm1265, %v1195, 0
        %v1339 = vsel %vm1265, %v1196, 0
        %v1342 = vsel %vm1265, %v1197, 0
        %v1345 = vsel %vm1265, %v1198, 0
        %v1348 = vsel %vm1265, %v1199, 0
        %v1351 = vsel %vm1265, %v1200, 0
        %v1354 = vsel %vm1265, %v1201, 0
        %v1357 = vsel %vm1265, %v1202, 0
        %v1360 = vsel %vm1265, %v1203, 0
        %v1363 = vsel %vm1265, %v1204, 0
        %v1366 = vsel %vm1265, %v1205, 0
        %v1369 = vsel %vm1265, %v1206, 0
        %v1372 = vsel %vm1265, %v1207, 0
        %v1375 = vsel %vm1265, %v1208, 0
        %v1378 = vsel %vm1265, %v1209, 0
        %v1381 = vsel %vm1265, %v1210, 0
        %v1384 = vsel %vm1265, %v1211, 0
        %v1387 = vsel %vm1265, %v1212, 0
        %v1390 = vsel %vm1265, %v1213, 0
        %v1393 = vsel %vm1265, %v1214, 0
        %v1396 = vsel %vm1265, %v1215, 0
        %v1399 = vsel %vm1265, %v1216, 0
        %v1402 = vsel %vm1265, %v1217, 0
        %v1405 = vsel %vm1265, %v1218, 0
        %v1408 = vsel %vm1265, %v1219, 0
        %v1411 = vsel %vm1265, %v1220, 0
        %v1414 = vsel %vm1265, %v1221, 0
        %v1417 = vsel %vm1265, %v1222, 0
        %v1420 = vsel %vm1265, %v1223, 0
        %v1423 = vsel %vm1265, %v1224, 0
        %v1426 = vsel %vm1265, %v1225, 0
        %v1429 = vsel %vm1265, %v1226, 0
        %v1432 = vsel %vm1265, %v1227, 0
        %v1435 = vsel %vm1265, %v1228, 0
        %v1438 = vsel %vm1265, %v1229, 0
        %v1441 = vsel %vm1265, %v1230, 0
        %v1444 = vsel %vm1265, %v1231, 0
        %v1447 = vsel %vm1265, %v1232, 0
        %v1450 = vsel %vm1265, %v1233, 0
        %v1453 = vsel %vm1265, %v1234, 0
        %v1456 = vsel %vm1265, %v1235, 0
        %vm1458 = vcmask 1044480
        %vm1459 = vcmask 1045504
        %v1460 = vsel %vm1458, 4294967295, 65535
        %v1461 = vsel %vm1459, %v1460, 0
        %v1463 = vand.u32 %v1260, %v1461
        %1465 = vmatpush.bf16.msra.mxu0 0
        %1466 = vmatpush.bf16.msra.mxu0 0
        %1467 = vmatpush.bf16.msra.mxu0 0
        %1468 = vmatpush.bf16.msra.mxu0 %v1463
        %1469 = vmatpush.bf16.msra.mxu0 %v1259
        %1470 = vmatpush.bf16.msra.mxu0 %v1258
        %1471 = vmatpush.bf16.msra.mxu0 %v1257
        %1472 = vmatpush.bf16.msra.mxu0 %v1256
        %1473 = vmatmul.bf16.gmra.mxu0 %v1267
        %v1474 = vpop.f32.mrf.mxu0
        %v1475 = vadd.f32 0.0, %v1474
        %v1476 = vpop.f32.mrf.mxu0
        %v1477 = vadd.f32 0.0, %v1476
        %1478 = vmatmul.bf16.gmra.mxu0 %v1270
        %v1479 = vpop.f32.mrf.mxu0
        %v1480 = vadd.f32 0.0, %v1479
        %v1481 = vpop.f32.mrf.mxu0
        %v1482 = vadd.f32 0.0, %v1481
        %1483 = vmatmul.bf16.gmra.mxu0 %v1273
        %v1484 = vpop.f32.mrf.mxu0
        %v1485 = vadd.f32 0.0, %v1484
        %v1486 = vpop.f32.mrf.mxu0
        %v1487 = vadd.f32 0.0, %v1486
        %1488 = vmatmul.bf16.gmra.mxu0 %v1276
        %v1489 = vpop.f32.mrf.mxu0
        %v1490 = vadd.f32 0.0, %v1489
        %v1491 = vpop.f32.mrf.mxu0
        %v1492 = vadd.f32 0.0, %v1491
        %1493 = vmatmul.bf16.gmra.mxu0 %v1279
        %v1494 = vpop.f32.mrf.mxu0
        %v1495 = vadd.f32 0.0, %v1494
        %v1496 = vpop.f32.mrf.mxu0
        %v1497 = vadd.f32 0.0, %v1496
        %1498 = vmatmul.bf16.gmra.mxu0 %v1282
        %v1499 = vpop.f32.mrf.mxu0
        %v1500 = vadd.f32 0.0, %v1499
        %v1501 = vpop.f32.mrf.mxu0
        %v1502 = vadd.f32 0.0, %v1501
        %1503 = vmatmul.bf16.gmra.mxu0 %v1285
        %v1504 = vpop.f32.mrf.mxu0
        %v1505 = vadd.f32 0.0, %v1504
        %v1506 = vpop.f32.mrf.mxu0
        %v1507 = vadd.f32 0.0, %v1506
        %1508 = vmatmul.bf16.gmra.mxu0 %v1288
        %v1509 = vpop.f32.mrf.mxu0
        %v1510 = vadd.f32 0.0, %v1509
        %v1511 = vpop.f32.mrf.mxu0
        %v1512 = vadd.f32 0.0, %v1511
        %1513 = vmatmul.bf16.gmra.mxu0 %v1291
        %v1514 = vpop.f32.mrf.mxu0
        %v1515 = vadd.f32 0.0, %v1514
        %v1516 = vpop.f32.mrf.mxu0
        %v1517 = vadd.f32 0.0, %v1516
        %1518 = vmatmul.bf16.gmra.mxu0 %v1294
        %v1519 = vpop.f32.mrf.mxu0
        %v1520 = vadd.f32 0.0, %v1519
        %v1521 = vpop.f32.mrf.mxu0
        %v1522 = vadd.f32 0.0, %v1521
        %1523 = vmatmul.bf16.gmra.mxu0 %v1297
        %v1524 = vpop.f32.mrf.mxu0
        %v1525 = vadd.f32 0.0, %v1524
        %v1526 = vpop.f32.mrf.mxu0
        %v1527 = vadd.f32 0.0, %v1526
        %1528 = vmatmul.bf16.gmra.mxu0 %v1300
        %v1529 = vpop.f32.mrf.mxu0
        %v1530 = vadd.f32 0.0, %v1529
        %v1531 = vpop.f32.mrf.mxu0
        %v1532 = vadd.f32 0.0, %v1531
        %1533 = vmatmul.bf16.gmra.mxu0 %v1303
        %v1534 = vpop.f32.mrf.mxu0
        %v1535 = vadd.f32 0.0, %v1534
        %v1536 = vpop.f32.mrf.mxu0
        %v1537 = vadd.f32 0.0, %v1536
        %1538 = vmatmul.bf16.gmra.mxu0 %v1306
        %v1539 = vpop.f32.mrf.mxu0
        %v1540 = vadd.f32 0.0, %v1539
        %v1541 = vpop.f32.mrf.mxu0
        %v1542 = vadd.f32 0.0, %v1541
        %1543 = vmatmul.bf16.gmra.mxu0 %v1309
        %v1544 = vpop.f32.mrf.mxu0
        %v1545 = vadd.f32 0.0, %v1544
        %v1546 = vpop.f32.mrf.mxu0
        %v1547 = vadd.f32 0.0, %v1546
        %1548 = vmatmul.bf16.gmra.mxu0 %v1312
        %v1549 = vpop.f32.mrf.mxu0
        %v1550 = vadd.f32 0.0, %v1549
        %v1551 = vpop.f32.mrf.mxu0
        %v1552 = vadd.f32 0.0, %v1551
        %1553 = vmatmul.bf16.gmra.mxu0 %v1315
        %v1554 = vpop.f32.mrf.mxu0
        %v1555 = vadd.f32 0.0, %v1554
        %v1556 = vpop.f32.mrf.mxu0
        %v1557 = vadd.f32 0.0, %v1556
        %1558 = vmatmul.bf16.gmra.mxu0 %v1318
        %v1559 = vpop.f32.mrf.mxu0
        %v1560 = vadd.f32 0.0, %v1559
        %v1561 = vpop.f32.mrf.mxu0
        %v1562 = vadd.f32 0.0, %v1561
        %1563 = vmatmul.bf16.gmra.mxu0 %v1321
        %v1564 = vpop.f32.mrf.mxu0
        %v1565 = vadd.f32 0.0, %v1564
        %v1566 = vpop.f32.mrf.mxu0
        %v1567 = vadd.f32 0.0, %v1566
        %1568 = vmatmul.bf16.gmra.mxu0 %v1324
        %v1569 = vpop.f32.mrf.mxu0
        %v1570 = vadd.f32 0.0, %v1569
        %v1571 = vpop.f32.mrf.mxu0
        %v1572 = vadd.f32 0.0, %v1571
        %1573 = vmatmul.bf16.gmra.mxu0 %v1327
        %v1574 = vpop.f32.mrf.mxu0
        %v1575 = vadd.f32 0.0, %v1574
        %v1576 = vpop.f32.mrf.mxu0
        %v1577 = vadd.f32 0.0, %v1576
        %1578 = vmatmul.bf16.gmra.mxu0 %v1330
        %v1579 = vpop.f32.mrf.mxu0
        %v1580 = vadd.f32 0.0, %v1579
        %v1581 = vpop.f32.mrf.mxu0
        %v1582 = vadd.f32 0.0, %v1581
        %1583 = vmatmul.bf16.gmra.mxu0 %v1333
        %v1584 = vpop.f32.mrf.mxu0
        %v1585 = vadd.f32 0.0, %v1584
        %v1586 = vpop.f32.mrf.mxu0
        %v1587 = vadd.f32 0.0, %v1586
        %1588 = vmatmul.bf16.gmra.mxu0 %v1336
        %v1589 = vpop.f32.mrf.mxu0
        %v1590 = vadd.f32 0.0, %v1589
        %v1591 = vpop.f32.mrf.mxu0
        %v1592 = vadd.f32 0.0, %v1591
        %1593 = vmatmul.bf16.gmra.mxu0 %v1339
        %v1594 = vpop.f32.mrf.mxu0
        %v1595 = vadd.f32 0.0, %v1594
        %v1596 = vpop.f32.mrf.mxu0
        %v1597 = vadd.f32 0.0, %v1596
        %1598 = vmatmul.bf16.gmra.mxu0 %v1342
        %v1599 = vpop.f32.mrf.mxu0
        %v1600 = vadd.f32 0.0, %v1599
        %v1601 = vpop.f32.mrf.mxu0
        %v1602 = vadd.f32 0.0, %v1601
        %1603 = vmatmul.bf16.gmra.mxu0 %v1345
        %v1604 = vpop.f32.mrf.mxu0
        %v1605 = vadd.f32 0.0, %v1604
        %v1606 = vpop.f32.mrf.mxu0
        %v1607 = vadd.f32 0.0, %v1606
        %1608 = vmatmul.bf16.gmra.mxu0 %v1348
        %v1609 = vpop.f32.mrf.mxu0
        %v1610 = vadd.f32 0.0, %v1609
        %v1611 = vpop.f32.mrf.mxu0
        %v1612 = vadd.f32 0.0, %v1611
        %1613 = vmatmul.bf16.gmra.mxu0 %v1351
        %v1614 = vpop.f32.mrf.mxu0
        %v1615 = vadd.f32 0.0, %v1614
        %v1616 = vpop.f32.mrf.mxu0
        %v1617 = vadd.f32 0.0, %v1616
        %1618 = vmatmul.bf16.gmra.mxu0 %v1354
        %v1619 = vpop.f32.mrf.mxu0
        %v1620 = vadd.f32 0.0, %v1619
        %v1621 = vpop.f32.mrf.mxu0
        %v1622 = vadd.f32 0.0, %v1621
        %1623 = vmatmul.bf16.gmra.mxu0 %v1357
        %v1624 = vpop.f32.mrf.mxu0
        %v1625 = vadd.f32 0.0, %v1624
        %v1626 = vpop.f32.mrf.mxu0
        %v1627 = vadd.f32 0.0, %v1626
        %1628 = vmatmul.bf16.gmra.mxu0 %v1360
        %v1629 = vpop.f32.mrf.mxu0
        %v1630 = vadd.f32 0.0, %v1629
        %v1631 = vpop.f32.mrf.mxu0
        %v1632 = vadd.f32 0.0, %v1631
        %1633 = vmatmul.bf16.gmra.mxu0 %v1363
        %v1634 = vpop.f32.mrf.mxu0
        %v1635 = vadd.f32 0.0, %v1634
        %v1636 = vpop.f32.mrf.mxu0
        %v1637 = vadd.f32 0.0, %v1636
        %1638 = vmatmul.bf16.gmra.mxu0 %v1366
        %v1639 = vpop.f32.mrf.mxu0
        %v1640 = vadd.f32 0.0, %v1639
        %v1641 = vpop.f32.mrf.mxu0
        %v1642 = vadd.f32 0.0, %v1641
        %1643 = vmatmul.bf16.gmra.mxu0 %v1369
        %v1644 = vpop.f32.mrf.mxu0
        %v1645 = vadd.f32 0.0, %v1644
        %v1646 = vpop.f32.mrf.mxu0
        %v1647 = vadd.f32 0.0, %v1646
        %1648 = vmatmul.bf16.gmra.mxu0 %v1372
        %v1649 = vpop.f32.mrf.mxu0
        %v1650 = vadd.f32 0.0, %v1649
        %v1651 = vpop.f32.mrf.mxu0
        %v1652 = vadd.f32 0.0, %v1651
        %1653 = vmatmul.bf16.gmra.mxu0 %v1375
        %v1654 = vpop.f32.mrf.mxu0
        %v1655 = vadd.f32 0.0, %v1654
        %v1656 = vpop.f32.mrf.mxu0
        %v1657 = vadd.f32 0.0, %v1656
        %1658 = vmatmul.bf16.gmra.mxu0 %v1378
        %v1659 = vpop.f32.mrf.mxu0
        %v1660 = vadd.f32 0.0, %v1659
        %v1661 = vpop.f32.mrf.mxu0
        %v1662 = vadd.f32 0.0, %v1661
        %1663 = vmatmul.bf16.gmra.mxu0 %v1381
        %v1664 = vpop.f32.mrf.mxu0
        %v1665 = vadd.f32 0.0, %v1664
        %v1666 = vpop.f32.mrf.mxu0
        %v1667 = vadd.f32 0.0, %v1666
        %1668 = vmatmul.bf16.gmra.mxu0 %v1384
        %v1669 = vpop.f32.mrf.mxu0
        %v1670 = vadd.f32 0.0, %v1669
        %v1671 = vpop.f32.mrf.mxu0
        %v1672 = vadd.f32 0.0, %v1671
        %1673 = vmatmul.bf16.gmra.mxu0 %v1387
        %v1674 = vpop.f32.mrf.mxu0
        %v1675 = vadd.f32 0.0, %v1674
        %v1676 = vpop.f32.mrf.mxu0
        %v1677 = vadd.f32 0.0, %v1676
        %1678 = vmatmul.bf16.gmra.mxu0 %v1390
        %v1679 = vpop.f32.mrf.mxu0
        %v1680 = vadd.f32 0.0, %v1679
        %v1681 = vpop.f32.mrf.mxu0
        %v1682 = vadd.f32 0.0, %v1681
        %1683 = vmatmul.bf16.gmra.mxu0 %v1393
        %v1684 = vpop.f32.mrf.mxu0
        %v1685 = vadd.f32 0.0, %v1684
        %v1686 = vpop.f32.mrf.mxu0
        %v1687 = vadd.f32 0.0, %v1686
        %1688 = vmatmul.bf16.gmra.mxu0 %v1396
        %v1689 = vpop.f32.mrf.mxu0
        %v1690 = vadd.f32 0.0, %v1689
        %v1691 = vpop.f32.mrf.mxu0
        %v1692 = vadd.f32 0.0, %v1691
        %1693 = vmatmul.bf16.gmra.mxu0 %v1399
        %v1694 = vpop.f32.mrf.mxu0
        %v1695 = vadd.f32 0.0, %v1694
        %v1696 = vpop.f32.mrf.mxu0
        %v1697 = vadd.f32 0.0, %v1696
        %1698 = vmatmul.bf16.gmra.mxu0 %v1402
        %v1699 = vpop.f32.mrf.mxu0
        %v1700 = vadd.f32 0.0, %v1699
        %v1701 = vpop.f32.mrf.mxu0
        %v1702 = vadd.f32 0.0, %v1701
        %1703 = vmatmul.bf16.gmra.mxu0 %v1405
        %v1704 = vpop.f32.mrf.mxu0
        %v1705 = vadd.f32 0.0, %v1704
        %v1706 = vpop.f32.mrf.mxu0
        %v1707 = vadd.f32 0.0, %v1706
        %1708 = vmatmul.bf16.gmra.mxu0 %v1408
        %v1709 = vpop.f32.mrf.mxu0
        %v1710 = vadd.f32 0.0, %v1709
        %v1711 = vpop.f32.mrf.mxu0
        %v1712 = vadd.f32 0.0, %v1711
        %1713 = vmatmul.bf16.gmra.mxu0 %v1411
        %v1714 = vpop.f32.mrf.mxu0
        %v1715 = vadd.f32 0.0, %v1714
        %v1716 = vpop.f32.mrf.mxu0
        %v1717 = vadd.f32 0.0, %v1716
        %1718 = vmatmul.bf16.gmra.mxu0 %v1414
        %v1719 = vpop.f32.mrf.mxu0
        %v1720 = vadd.f32 0.0, %v1719
        %v1721 = vpop.f32.mrf.mxu0
        %v1722 = vadd.f32 0.0, %v1721
        %1723 = vmatmul.bf16.gmra.mxu0 %v1417
        %v1724 = vpop.f32.mrf.mxu0
        %v1725 = vadd.f32 0.0, %v1724
        %v1726 = vpop.f32.mrf.mxu0
        %v1727 = vadd.f32 0.0, %v1726
        %1728 = vmatmul.bf16.gmra.mxu0 %v1420
        %v1729 = vpop.f32.mrf.mxu0
        %v1730 = vadd.f32 0.0, %v1729
        %v1731 = vpop.f32.mrf.mxu0
        %v1732 = vadd.f32 0.0, %v1731
        %1733 = vmatmul.bf16.gmra.mxu0 %v1423
        %v1734 = vpop.f32.mrf.mxu0
        %v1735 = vadd.f32 0.0, %v1734
        %v1736 = vpop.f32.mrf.mxu0
        %v1737 = vadd.f32 0.0, %v1736
        %1738 = vmatmul.bf16.gmra.mxu0 %v1426
        %v1739 = vpop.f32.mrf.mxu0
        %v1740 = vadd.f32 0.0, %v1739
        %v1741 = vpop.f32.mrf.mxu0
        %v1742 = vadd.f32 0.0, %v1741
        %1743 = vmatmul.bf16.gmra.mxu0 %v1429
        %v1744 = vpop.f32.mrf.mxu0
        %v1745 = vadd.f32 0.0, %v1744
        %v1746 = vpop.f32.mrf.mxu0
        %v1747 = vadd.f32 0.0, %v1746
        %1748 = vmatmul.bf16.gmra.mxu0 %v1432
        %v1749 = vpop.f32.mrf.mxu0
        %v1750 = vadd.f32 0.0, %v1749
        %v1751 = vpop.f32.mrf.mxu0
        %v1752 = vadd.f32 0.0, %v1751
        %1753 = vmatmul.bf16.gmra.mxu0 %v1435
        %v1754 = vpop.f32.mrf.mxu0
        %v1755 = vadd.f32 0.0, %v1754
        %v1756 = vpop.f32.mrf.mxu0
        %v1757 = vadd.f32 0.0, %v1756
        %1758 = vmatmul.bf16.gmra.mxu0 %v1438
        %v1759 = vpop.f32.mrf.mxu0
        %v1760 = vadd.f32 0.0, %v1759
        %v1761 = vpop.f32.mrf.mxu0
        %v1762 = vadd.f32 0.0, %v1761
        %1763 = vmatmul.bf16.gmra.mxu0 %v1441
        %v1764 = vpop.f32.mrf.mxu0
        %v1765 = vadd.f32 0.0, %v1764
        %v1766 = vpop.f32.mrf.mxu0
        %v1767 = vadd.f32 0.0, %v1766
        %1768 = vmatmul.bf16.gmra.mxu0 %v1444
        %v1769 = vpop.f32.mrf.mxu0
        %v1770 = vadd.f32 0.0, %v1769
        %v1771 = vpop.f32.mrf.mxu0
        %v1772 = vadd.f32 0.0, %v1771
        %1773 = vmatmul.bf16.gmra.mxu0 %v1447
        %v1774 = vpop.f32.mrf.mxu0
        %v1775 = vadd.f32 0.0, %v1774
        %v1776 = vpop.f32.mrf.mxu0
        %v1777 = vadd.f32 0.0, %v1776
        %1778 = vmatmul.bf16.gmra.mxu0 %v1450
        %v1779 = vpop.f32.mrf.mxu0
        %v1780 = vadd.f32 0.0, %v1779
        %v1781 = vpop.f32.mrf.mxu0
        %v1782 = vadd.f32 0.0, %v1781
        %1783 = vmatmul.bf16.gmra.mxu0 %v1453
        %v1784 = vpop.f32.mrf.mxu0
        %v1785 = vadd.f32 0.0, %v1784
        %v1786 = vpop.f32.mrf.mxu0
        %v1787 = vadd.f32 0.0, %v1786
        %1788 = vmatmul.bf16.gmra.mxu0 %v1456
        %v1789 = vpop.f32.mrf.mxu0
        %v1790 = vadd.f32 0.0, %v1789
        %v1791 = vpop.f32.mrf.mxu0
        %v1792 = vadd.f32 0.0, %v1791
        %1793 = vdwg.mxu0
        // Predicated region
        $region82: #{net_forward.3} parent=72 // pred_check
          %p1794 = pneg %p770
        $region83: #{net_forward.3} parent=72 // pred_check_branch
          %1796 = sbr.rel (%p1794) target = $region85
        $region84: #{net_forward.3} parent=72 // pred_region
          %v1797 = vld [vmem:[#allocation2] sm:$0x1]
          %v1798 = vadd.f32 %v1475, %v1477
          %v1799 = vadd.f32 %v1798, %v1480
          %v1800 = vadd.f32 %v1799, %v1482
          %v1801 = vadd.f32 %v1800, %v1485
          %v1802 = vadd.f32 %v1801, %v1487
          %v1803 = vadd.f32 %v1802, %v1490
          %v1804 = vadd.f32 %v1803, %v1492
          %v1805 = vadd.f32 %v1804, %v1495
          %v1806 = vadd.f32 %v1805, %v1497
          %v1807 = vadd.f32 %v1806, %v1500
          %v1808 = vadd.f32 %v1807, %v1502
          %v1809 = vadd.f32 %v1808, %v1505
          %v1810 = vadd.f32 %v1809, %v1507
          %v1811 = vadd.f32 %v1810, %v1510
          %v1812 = vadd.f32 %v1811, %v1512
          %v1813 = vadd.f32 %v1812, %v1515
          %v1814 = vadd.f32 %v1813, %v1517
          %v1815 = vadd.f32 %v1814, %v1520
          %v1816 = vadd.f32 %v1815, %v1522
          %v1817 = vadd.f32 %v1816, %v1525
          %v1818 = vadd.f32 %v1817, %v1527
          %v1819 = vadd.f32 %v1818, %v1530
          %v1820 = vadd.f32 %v1819, %v1532
          %v1821 = vadd.f32 %v1820, %v1535
          %v1822 = vadd.f32 %v1821, %v1537
          %v1823 = vadd.f32 %v1822, %v1540
          %v1824 = vadd.f32 %v1823, %v1542
          %v1825 = vadd.f32 %v1824, %v1545
          %v1826 = vadd.f32 %v1825, %v1547
          %v1827 = vadd.f32 %v1826, %v1550
          %v1828 = vadd.f32 %v1827, %v1552
          %v1829 = vadd.f32 %v1828, %v1555
          %v1830 = vadd.f32 %v1829, %v1557
          %v1831 = vadd.f32 %v1830, %v1560
          %v1832 = vadd.f32 %v1831, %v1562
          %v1833 = vadd.f32 %v1832, %v1565
          %v1834 = vadd.f32 %v1833, %v1567
          %v1835 = vadd.f32 %v1834, %v1570
          %v1836 = vadd.f32 %v1835, %v1572
          %v1837 = vadd.f32 %v1836, %v1575
          %v1838 = vadd.f32 %v1837, %v1577
          %v1839 = vadd.f32 %v1838, %v1580
          %v1840 = vadd.f32 %v1839, %v1582
          %v1841 = vadd.f32 %v1840, %v1585
          %v1842 = vadd.f32 %v1841, %v1587
          %v1843 = vadd.f32 %v1842, %v1590
          %v1844 = vadd.f32 %v1843, %v1592
          %v1845 = vadd.f32 %v1844, %v1595
          %v1846 = vadd.f32 %v1845, %v1597
          %v1847 = vadd.f32 %v1846, %v1600
          %v1848 = vadd.f32 %v1847, %v1602
          %v1849 = vadd.f32 %v1848, %v1605
          %v1850 = vadd.f32 %v1849, %v1607
          %v1851 = vadd.f32 %v1850, %v1610
          %v1852 = vadd.f32 %v1851, %v1612
          %v1853 = vadd.f32 %v1852, %v1615
          %v1854 = vadd.f32 %v1853, %v1617
          %v1855 = vadd.f32 %v1854, %v1620
          %v1856 = vadd.f32 %v1855, %v1622
          %v1857 = vadd.f32 %v1856, %v1625
          %v1858 = vadd.f32 %v1857, %v1627
          %v1859 = vadd.f32 %v1858, %v1630
          %v1860 = vadd.f32 %v1859, %v1632
          %v1861 = vadd.f32 %v1860, %v1635
          %v1862 = vadd.f32 %v1861, %v1637
          %v1863 = vadd.f32 %v1862, %v1640
          %v1864 = vadd.f32 %v1863, %v1642
          %v1865 = vadd.f32 %v1864, %v1645
          %v1866 = vadd.f32 %v1865, %v1647
          %v1867 = vadd.f32 %v1866, %v1650
          %v1868 = vadd.f32 %v1867, %v1652
          %v1869 = vadd.f32 %v1868, %v1655
          %v1870 = vadd.f32 %v1869, %v1657
          %v1871 = vadd.f32 %v1870, %v1660
          %v1872 = vadd.f32 %v1871, %v1662
          %v1873 = vadd.f32 %v1872, %v1665
          %v1874 = vadd.f32 %v1873, %v1667
          %v1875 = vadd.f32 %v1874, %v1670
          %v1876 = vadd.f32 %v1875, %v1672
          %v1877 = vadd.f32 %v1876, %v1675
          %v1878 = vadd.f32 %v1877, %v1677
          %v1879 = vadd.f32 %v1878, %v1680
          %v1880 = vadd.f32 %v1879, %v1682
          %v1881 = vadd.f32 %v1880, %v1685
          %v1882 = vadd.f32 %v1881, %v1687
          %v1883 = vadd.f32 %v1882, %v1690
          %v1884 = vadd.f32 %v1883, %v1692
          %v1885 = vadd.f32 %v1884, %v1695
          %v1886 = vadd.f32 %v1885, %v1697
          %v1887 = vadd.f32 %v1886, %v1700
          %v1888 = vadd.f32 %v1887, %v1702
          %v1889 = vadd.f32 %v1888, %v1705
          %v1890 = vadd.f32 %v1889, %v1707
          %v1891 = vadd.f32 %v1890, %v1710
          %v1892 = vadd.f32 %v1891, %v1712
          %v1893 = vadd.f32 %v1892, %v1715
          %v1894 = vadd.f32 %v1893, %v1717
          %v1895 = vadd.f32 %v1894, %v1720
          %v1896 = vadd.f32 %v1895, %v1722
          %v1897 = vadd.f32 %v1896, %v1725
          %v1898 = vadd.f32 %v1897, %v1727
          %v1899 = vadd.f32 %v1898, %v1730
          %v1900 = vadd.f32 %v1899, %v1732
          %v1901 = vadd.f32 %v1900, %v1735
          %v1902 = vadd.f32 %v1901, %v1737
          %v1903 = vadd.f32 %v1902, %v1740
          %v1904 = vadd.f32 %v1903, %v1742
          %v1905 = vadd.f32 %v1904, %v1745
          %v1906 = vadd.f32 %v1905, %v1747
          %v1907 = vadd.f32 %v1906, %v1750
          %v1908 = vadd.f32 %v1907, %v1752
          %v1909 = vadd.f32 %v1908, %v1755
          %v1910 = vadd.f32 %v1909, %v1757
          %v1911 = vadd.f32 %v1910, %v1760
          %v1912 = vadd.f32 %v1911, %v1762
          %v1913 = vadd.f32 %v1912, %v1765
          %v1914 = vadd.f32 %v1913, %v1767
          %v1915 = vadd.f32 %v1914, %v1770
          %v1916 = vadd.f32 %v1915, %v1772
          %v1917 = vadd.f32 %v1916, %v1775
          %v1918 = vadd.f32 %v1917, %v1777
          %v1919 = vadd.f32 %v1918, %v1780
          %v1920 = vadd.f32 %v1919, %v1782
          %v1921 = vadd.f32 %v1920, %v1785
          %v1922 = vadd.f32 %v1921, %v1787
          %v1923 = vadd.f32 %v1922, %v1790
          %v1924 = vadd.f32 %v1923, %v1792
          %v1925 = vrot.slane %v1924, 4
          %v1926 = vadd.f32 %v1924, %v1925
          %v1927 = vrot.slane %v1926, 2
          %v1928 = vadd.f32 %v1926, %v1927
          %v1929 = vrot.slane %v1928, 1
          %v1930 = vadd.f32 %v1928, %v1929
          %v1931 = vadd.f32 %v1797, %v1930
          %1932 = vst [vmem:[#allocation2] sm:$0x1] %v1931
          %v1933 = vld [vmem:[#allocation3] sm:$0x1]
          %v1934 = vmul.f32 %v1475, %v1475
          %v1935 = vmul.f32 %v1477, %v1477
          %v1936 = vmul.f32 %v1480, %v1480
          %v1937 = vmul.f32 %v1482, %v1482
          %v1938 = vmul.f32 %v1485, %v1485
          %v1939 = vmul.f32 %v1487, %v1487
          %v1940 = vmul.f32 %v1490, %v1490
          %v1941 = vmul.f32 %v1492, %v1492
          %v1942 = vmul.f32 %v1495, %v1495
          %v1943 = vmul.f32 %v1497, %v1497
          %v1944 = vmul.f32 %v1500, %v1500
          %v1945 = vmul.f32 %v1502, %v1502
          %v1946 = vmul.f32 %v1505, %v1505
          %v1947 = vmul.f32 %v1507, %v1507
          %v1948 = vmul.f32 %v1510, %v1510
          %v1949 = vmul.f32 %v1512, %v1512
          %v1950 = vmul.f32 %v1515, %v1515
          %v1951 = vmul.f32 %v1517, %v1517
          %v1952 = vmul.f32 %v1520, %v1520
          %v1953 = vmul.f32 %v1522, %v1522
          %v1954 = vmul.f32 %v1525, %v1525
          %v1955 = vmul.f32 %v1527, %v1527
          %v1956 = vmul.f32 %v1530, %v1530
          %v1957 = vmul.f32 %v1532, %v1532
          %v1958 = vmul.f32 %v1535, %v1535
          %v1959 = vmul.f32 %v1537, %v1537
          %v1960 = vmul.f32 %v1540, %v1540
          %v1961 = vmul.f32 %v1542, %v1542
          %v1962 = vmul.f32 %v1545, %v1545
          %v1963 = vmul.f32 %v1547, %v1547
          %v1964 = vmul.f32 %v1550, %v1550
          %v1965 = vmul.f32 %v1552, %v1552
          %v1966 = vmul.f32 %v1555, %v1555
          %v1967 = vmul.f32 %v1557, %v1557
          %v1968 = vmul.f32 %v1560, %v1560
          %v1969 = vmul.f32 %v1562, %v1562
          %v1970 = vmul.f32 %v1565, %v1565
          %v1971 = vmul.f32 %v1567, %v1567
          %v1972 = vmul.f32 %v1570, %v1570
          %v1973 = vmul.f32 %v1572, %v1572
          %v1974 = vmul.f32 %v1575, %v1575
          %v1975 = vmul.f32 %v1577, %v1577
          %v1976 = vmul.f32 %v1580, %v1580
          %v1977 = vmul.f32 %v1582, %v1582
          %v1978 = vmul.f32 %v1585, %v1585
          %v1979 = vmul.f32 %v1587, %v1587
          %v1980 = vmul.f32 %v1590, %v1590
          %v1981 = vmul.f32 %v1592, %v1592
          %v1982 = vmul.f32 %v1595, %v1595
          %v1983 = vmul.f32 %v1597, %v1597
          %v1984 = vmul.f32 %v1600, %v1600
          %v1985 = vmul.f32 %v1602, %v1602
          %v1986 = vmul.f32 %v1605, %v1605
          %v1987 = vmul.f32 %v1607, %v1607
          %v1988 = vmul.f32 %v1610, %v1610
          %v1989 = vmul.f32 %v1612, %v1612
          %v1990 = vmul.f32 %v1615, %v1615
          %v1991 = vmul.f32 %v1617, %v1617
          %v1992 = vmul.f32 %v1620, %v1620
          %v1993 = vmul.f32 %v1622, %v1622
          %v1994 = vmul.f32 %v1625, %v1625
          %v1995 = vmul.f32 %v1627, %v1627
          %v1996 = vmul.f32 %v1630, %v1630
          %v1997 = vmul.f32 %v1632, %v1632
          %v1998 = vmul.f32 %v1635, %v1635
          %v1999 = vmul.f32 %v1637, %v1637
          %v2000 = vmul.f32 %v1640, %v1640
          %v2001 = vmul.f32 %v1642, %v1642
          %v2002 = vmul.f32 %v1645, %v1645
          %v2003 = vmul.f32 %v1647, %v1647
          %v2004 = vmul.f32 %v1650, %v1650
          %v2005 = vmul.f32 %v1652, %v1652
          %v2006 = vmul.f32 %v1655, %v1655
          %v2007 = vmul.f32 %v1657, %v1657
          %v2008 = vmul.f32 %v1660, %v1660
          %v2009 = vmul.f32 %v1662, %v1662
          %v2010 = vmul.f32 %v1665, %v1665
          %v2011 = vmul.f32 %v1667, %v1667
          %v2012 = vmul.f32 %v1670, %v1670
          %v2013 = vmul.f32 %v1672, %v1672
          %v2014 = vmul.f32 %v1675, %v1675
          %v2015 = vmul.f32 %v1677, %v1677
          %v2016 = vmul.f32 %v1680, %v1680
          %v2017 = vmul.f32 %v1682, %v1682
          %v2018 = vmul.f32 %v1685, %v1685
          %v2019 = vmul.f32 %v1687, %v1687
          %v2020 = vmul.f32 %v1690, %v1690
          %v2021 = vmul.f32 %v1692, %v1692
          %v2022 = vmul.f32 %v1695, %v1695
          %v2023 = vmul.f32 %v1697, %v1697
          %v2024 = vmul.f32 %v1700, %v1700
          %v2025 = vmul.f32 %v1702, %v1702
          %v2026 = vmul.f32 %v1705, %v1705
          %v2027 = vmul.f32 %v1707, %v1707
          %v2028 = vmul.f32 %v1710, %v1710
          %v2029 = vmul.f32 %v1712, %v1712
          %v2030 = vmul.f32 %v1715, %v1715
          %v2031 = vmul.f32 %v1717, %v1717
          %v2032 = vmul.f32 %v1720, %v1720
          %v2033 = vmul.f32 %v1722, %v1722
          %v2034 = vmul.f32 %v1725, %v1725
          %v2035 = vmul.f32 %v1727, %v1727
          %v2036 = vmul.f32 %v1730, %v1730
          %v2037 = vmul.f32 %v1732, %v1732
          %v2038 = vmul.f32 %v1735, %v1735
          %v2039 = vmul.f32 %v1737, %v1737
          %v2040 = vmul.f32 %v1740, %v1740
          %v2041 = vmul.f32 %v1742, %v1742
          %v2042 = vmul.f32 %v1745, %v1745
          %v2043 = vmul.f32 %v1747, %v1747
          %v2044 = vmul.f32 %v1750, %v1750
          %v2045 = vmul.f32 %v1752, %v1752
          %v2046 = vmul.f32 %v1755, %v1755
          %v2047 = vmul.f32 %v1757, %v1757
          %v2048 = vmul.f32 %v1760, %v1760
          %v2049 = vmul.f32 %v1762, %v1762
          %v2050 = vmul.f32 %v1765, %v1765
          %v2051 = vmul.f32 %v1767, %v1767
          %v2052 = vmul.f32 %v1770, %v1770
          %v2053 = vmul.f32 %v1772, %v1772
          %v2054 = vmul.f32 %v1775, %v1775
          %v2055 = vmul.f32 %v1777, %v1777
          %v2056 = vmul.f32 %v1780, %v1780
          %v2057 = vmul.f32 %v1782, %v1782
          %v2058 = vmul.f32 %v1785, %v1785
          %v2059 = vmul.f32 %v1787, %v1787
          %v2060 = vmul.f32 %v1790, %v1790
          %v2061 = vmul.f32 %v1792, %v1792
          %v2062 = vadd.f32 %v1934, %v1935
          %v2063 = vadd.f32 %v2062, %v1936
          %v2064 = vadd.f32 %v2063, %v1937
          %v2065 = vadd.f32 %v2064, %v1938
          %v2066 = vadd.f32 %v2065, %v1939
          %v2067 = vadd.f32 %v2066, %v1940
          %v2068 = vadd.f32 %v2067, %v1941
          %v2069 = vadd.f32 %v2068, %v1942
          %v2070 = vadd.f32 %v2069, %v1943
          %v2071 = vadd.f32 %v2070, %v1944
          %v2072 = vadd.f32 %v2071, %v1945
          %v2073 = vadd.f32 %v2072, %v1946
          %v2074 = vadd.f32 %v2073, %v1947
          %v2075 = vadd.f32 %v2074, %v1948
          %v2076 = vadd.f32 %v2075, %v1949
          %v2077 = vadd.f32 %v2076, %v1950
          %v2078 = vadd.f32 %v2077, %v1951
          %v2079 = vadd.f32 %v2078, %v1952
          %v2080 = vadd.f32 %v2079, %v1953
          %v2081 = vadd.f32 %v2080, %v1954
          %v2082 = vadd.f32 %v2081, %v1955
          %v2083 = vadd.f32 %v2082, %v1956
          %v2084 = vadd.f32 %v2083, %v1957
          %v2085 = vadd.f32 %v2084, %v1958
          %v2086 = vadd.f32 %v2085, %v1959
          %v2087 = vadd.f32 %v2086, %v1960
          %v2088 = vadd.f32 %v2087, %v1961
          %v2089 = vadd.f32 %v2088, %v1962
          %v2090 = vadd.f32 %v2089, %v1963
          %v2091 = vadd.f32 %v2090, %v1964
          %v2092 = vadd.f32 %v2091, %v1965
          %v2093 = vadd.f32 %v2092, %v1966
          %v2094 = vadd.f32 %v2093, %v1967
          %v2095 = vadd.f32 %v2094, %v1968
          %v2096 = vadd.f32 %v2095, %v1969
          %v2097 = vadd.f32 %v2096, %v1970
          %v2098 = vadd.f32 %v2097, %v1971
          %v2099 = vadd.f32 %v2098, %v1972
          %v2100 = vadd.f32 %v2099, %v1973
          %v2101 = vadd.f32 %v2100, %v1974
          %v2102 = vadd.f32 %v2101, %v1975
          %v2103 = vadd.f32 %v2102, %v1976
          %v2104 = vadd.f32 %v2103, %v1977
          %v2105 = vadd.f32 %v2104, %v1978
          %v2106 = vadd.f32 %v2105, %v1979
          %v2107 = vadd.f32 %v2106, %v1980
          %v2108 = vadd.f32 %v2107, %v1981
          %v2109 = vadd.f32 %v2108, %v1982
          %v2110 = vadd.f32 %v2109, %v1983
          %v2111 = vadd.f32 %v2110, %v1984
          %v2112 = vadd.f32 %v2111, %v1985
          %v2113 = vadd.f32 %v2112, %v1986
          %v2114 = vadd.f32 %v2113, %v1987
          %v2115 = vadd.f32 %v2114, %v1988
          %v2116 = vadd.f32 %v2115, %v1989
          %v2117 = vadd.f32 %v2116, %v1990
          %v2118 = vadd.f32 %v2117, %v1991
          %v2119 = vadd.f32 %v2118, %v1992
          %v2120 = vadd.f32 %v2119, %v1993
          %v2121 = vadd.f32 %v2120, %v1994
          %v2122 = vadd.f32 %v2121, %v1995
          %v2123 = vadd.f32 %v2122, %v1996
          %v2124 = vadd.f32 %v2123, %v1997
          %v2125 = vadd.f32 %v2124, %v1998
          %v2126 = vadd.f32 %v2125, %v1999
          %v2127 = vadd.f32 %v2126, %v2000
          %v2128 = vadd.f32 %v2127, %v2001
          %v2129 = vadd.f32 %v2128, %v2002
          %v2130 = vadd.f32 %v2129, %v2003
          %v2131 = vadd.f32 %v2130, %v2004
          %v2132 = vadd.f32 %v2131, %v2005
          %v2133 = vadd.f32 %v2132, %v2006
          %v2134 = vadd.f32 %v2133, %v2007
          %v2135 = vadd.f32 %v2134, %v2008
          %v2136 = vadd.f32 %v2135, %v2009
          %v2137 = vadd.f32 %v2136, %v2010
          %v2138 = vadd.f32 %v2137, %v2011
          %v2139 = vadd.f32 %v2138, %v2012
          %v2140 = vadd.f32 %v2139, %v2013
          %v2141 = vadd.f32 %v2140, %v2014
          %v2142 = vadd.f32 %v2141, %v2015
          %v2143 = vadd.f32 %v2142, %v2016
          %v2144 = vadd.f32 %v2143, %v2017
          %v2145 = vadd.f32 %v2144, %v2018
          %v2146 = vadd.f32 %v2145, %v2019
          %v2147 = vadd.f32 %v2146, %v2020
          %v2148 = vadd.f32 %v2147, %v2021
          %v2149 = vadd.f32 %v2148, %v2022
          %v2150 = vadd.f32 %v2149, %v2023
          %v2151 = vadd.f32 %v2150, %v2024
          %v2152 = vadd.f32 %v2151, %v2025
          %v2153 = vadd.f32 %v2152, %v2026
          %v2154 = vadd.f32 %v2153, %v2027
          %v2155 = vadd.f32 %v2154, %v2028
          %v2156 = vadd.f32 %v2155, %v2029
          %v2157 = vadd.f32 %v2156, %v2030
          %v2158 = vadd.f32 %v2157, %v2031
          %v2159 = vadd.f32 %v2158, %v2032
          %v2160 = vadd.f32 %v2159, %v2033
          %v2161 = vadd.f32 %v2160, %v2034
          %v2162 = vadd.f32 %v2161, %v2035
          %v2163 = vadd.f32 %v2162, %v2036
          %v2164 = vadd.f32 %v2163, %v2037
          %v2165 = vadd.f32 %v2164, %v2038
          %v2166 = vadd.f32 %v2165, %v2039
          %v2167 = vadd.f32 %v2166, %v2040
          %v2168 = vadd.f32 %v2167, %v2041
          %v2169 = vadd.f32 %v2168, %v2042
          %v2170 = vadd.f32 %v2169, %v2043
          %v2171 = vadd.f32 %v2170, %v2044
          %v2172 = vadd.f32 %v2171, %v2045
          %v2173 = vadd.f32 %v2172, %v2046
          %v2174 = vadd.f32 %v2173, %v2047
          %v2175 = vadd.f32 %v2174, %v2048
          %v2176 = vadd.f32 %v2175, %v2049
          %v2177 = vadd.f32 %v2176, %v2050
          %v2178 = vadd.f32 %v2177, %v2051
          %v2179 = vadd.f32 %v2178, %v2052
          %v2180 = vadd.f32 %v2179, %v2053
          %v2181 = vadd.f32 %v2180, %v2054
          %v2182 = vadd.f32 %v2181, %v2055
          %v2183 = vadd.f32 %v2182, %v2056
          %v2184 = vadd.f32 %v2183, %v2057
          %v2185 = vadd.f32 %v2184, %v2058
          %v2186 = vadd.f32 %v2185, %v2059
          %v2187 = vadd.f32 %v2186, %v2060
          %v2188 = vadd.f32 %v2187, %v2061
          %v2189 = vrot.slane %v2188, 4
          %v2190 = vadd.f32 %v2188, %v2189
          %v2191 = vrot.slane %v2190, 2
          %v2192 = vadd.f32 %v2190, %v2191
          %v2193 = vrot.slane %v2192, 1
          %v2194 = vadd.f32 %v2192, %v2193
          %v2195 = vadd.f32 %v1933, %v2194
          %2196 = vst [vmem:[#allocation3] sm:$0x1] %v2195
        $region85: #{net_forward.3} parent=72 // pred_fallthru
          _
        %p2197 = scmp.eq.s32.totalorder %s19, 1
        // Predicated region
        $region86: #{net_forward.3} parent=72 // pred_check
          %p2198 = pneg %p2197
        $region87: #{net_forward.3} parent=72 // pred_check_branch
          %2200 = sbr.rel (%p2198) target = $region89
        $region88: #{net_forward.3} parent=72 // pred_region
          %v2201 = vld [vmem:[#allocation2] sm:$0x1]
          %v2202 = vmul.f32 %v2201, 0.0006377551
          %v2203 = vld [vmem:[#allocation3] sm:$0x1]
          %v2204 = vmul.f32 %v2203, 0.0006377551
          %v2205 = vmul.f32 %v2202, %v2202
          %v2206 = vsub.f32 %v2204, %v2205
          %v2207 = vmax.f32 %v2206, 0.0
          %v2208 = vld [vmem:[%s2] sm:$0x1]
          %v2209 = vadd.f32 %v2207, 1e-05
          %v2210 = vrsqrt.pop %v2209
          %v2211 = vmul.f32 %v2210, %v2209
          %v2212 = vmul.f32 %v2211, %v2210
          %v2213 = vmul.f32 0.5, %v2212
          %v2214 = vsub.f32 1.5, %v2213
          %v2215 = vmul.f32 %v2210, %v2214
          %vm2216 = vweird.f32 %v2209
          %vm2217 = vweird.f32 %v2210
          %vm2218 = vmor %vm2216, %vm2217
          %v2219 = vsel %vm2218, %v2210, %v2215
          %v2220 = vmul.f32 %v2208, %v2219
          %v2221 = vld [vmem:[%s3] sm:$0x1]
          %v2222 = vmul.f32 %v2202, %v2220
          %v2223 = vsub.f32 %v2221, %v2222
          %v2225 = vperm.slane %v2220, 0
          %v2227 = vmul.f32 %v1475, %v2225
          %v2228 = vmul.f32 %v1477, %v2225
          %v2229 = vmul.f32 %v1480, %v2225
          %v2230 = vmul.f32 %v1482, %v2225
          %v2231 = vmul.f32 %v1485, %v2225
          %v2232 = vmul.f32 %v1487, %v2225
          %v2233 = vmul.f32 %v1490, %v2225
          %v2234 = vmul.f32 %v1492, %v2225
          %v2235 = vmul.f32 %v1495, %v2225
          %v2236 = vmul.f32 %v1497, %v2225
          %v2237 = vmul.f32 %v1500, %v2225
          %v2238 = vmul.f32 %v1502, %v2225
          %v2239 = vmul.f32 %v1505, %v2225
          %v2240 = vmul.f32 %v1507, %v2225
          %v2241 = vmul.f32 %v1510, %v2225
          %v2242 = vmul.f32 %v1512, %v2225
          %v2243 = vmul.f32 %v1515, %v2225
          %v2244 = vmul.f32 %v1517, %v2225
          %v2245 = vmul.f32 %v1520, %v2225
          %v2246 = vmul.f32 %v1522, %v2225
          %v2247 = vmul.f32 %v1525, %v2225
          %v2248 = vmul.f32 %v1527, %v2225
          %v2249 = vmul.f32 %v1530, %v2225
          %v2250 = vmul.f32 %v1532, %v2225
          %v2251 = vmul.f32 %v1535, %v2225
          %v2252 = vmul.f32 %v1537, %v2225
          %v2253 = vmul.f32 %v1540, %v2225
          %v2254 = vmul.f32 %v1542, %v2225
          %v2255 = vmul.f32 %v1545, %v2225
          %v2256 = vmul.f32 %v1547, %v2225
          %v2257 = vmul.f32 %v1550, %v2225
          %v2258 = vmul.f32 %v1552, %v2225
          %v2259 = vmul.f32 %v1555, %v2225
          %v2260 = vmul.f32 %v1557, %v2225
          %v2261 = vmul.f32 %v1560, %v2225
          %v2262 = vmul.f32 %v1562, %v2225
          %v2263 = vmul.f32 %v1565, %v2225
          %v2264 = vmul.f32 %v1567, %v2225
          %v2265 = vmul.f32 %v1570, %v2225
          %v2266 = vmul.f32 %v1572, %v2225
          %v2267 = vmul.f32 %v1575, %v2225
          %v2268 = vmul.f32 %v1577, %v2225
          %v2269 = vmul.f32 %v1580, %v2225
          %v2270 = vmul.f32 %v1582, %v2225
          %v2271 = vmul.f32 %v1585, %v2225
          %v2272 = vmul.f32 %v1587, %v2225
          %v2273 = vmul.f32 %v1590, %v2225
          %v2274 = vmul.f32 %v1592, %v2225
          %v2275 = vmul.f32 %v1595, %v2225
          %v2276 = vmul.f32 %v1597, %v2225
          %v2277 = vmul.f32 %v1600, %v2225
          %v2278 = vmul.f32 %v1602, %v2225
          %v2279 = vmul.f32 %v1605, %v2225
          %v2280 = vmul.f32 %v1607, %v2225
          %v2281 = vmul.f32 %v1610, %v2225
          %v2282 = vmul.f32 %v1612, %v2225
          %v2283 = vmul.f32 %v1615, %v2225
          %v2284 = vmul.f32 %v1617, %v2225
          %v2285 = vmul.f32 %v1620, %v2225
          %v2286 = vmul.f32 %v1622, %v2225
          %v2287 = vmul.f32 %v1625, %v2225
          %v2288 = vmul.f32 %v1627, %v2225
          %v2289 = vmul.f32 %v1630, %v2225
          %v2290 = vmul.f32 %v1632, %v2225
          %v2291 = vmul.f32 %v1635, %v2225
          %v2292 = vmul.f32 %v1637, %v2225
          %v2293 = vmul.f32 %v1640, %v2225
          %v2294 = vmul.f32 %v1642, %v2225
          %v2295 = vmul.f32 %v1645, %v2225
          %v2296 = vmul.f32 %v1647, %v2225
          %v2297 = vmul.f32 %v1650, %v2225
          %v2298 = vmul.f32 %v1652, %v2225
          %v2299 = vmul.f32 %v1655, %v2225
          %v2300 = vmul.f32 %v1657, %v2225
          %v2301 = vmul.f32 %v1660, %v2225
          %v2302 = vmul.f32 %v1662, %v2225
          %v2303 = vmul.f32 %v1665, %v2225
          %v2304 = vmul.f32 %v1667, %v2225
          %v2305 = vmul.f32 %v1670, %v2225
          %v2306 = vmul.f32 %v1672, %v2225
          %v2307 = vmul.f32 %v1675, %v2225
          %v2308 = vmul.f32 %v1677, %v2225
          %v2309 = vmul.f32 %v1680, %v2225
          %v2310 = vmul.f32 %v1682, %v2225
          %v2311 = vmul.f32 %v1685, %v2225
          %v2312 = vmul.f32 %v1687, %v2225
          %v2313 = vmul.f32 %v1690, %v2225
          %v2314 = vmul.f32 %v1692, %v2225
          %v2315 = vmul.f32 %v1695, %v2225
          %v2316 = vmul.f32 %v1697, %v2225
          %v2317 = vmul.f32 %v1700, %v2225
          %v2318 = vmul.f32 %v1702, %v2225
          %v2319 = vmul.f32 %v1705, %v2225
          %v2320 = vmul.f32 %v1707, %v2225
          %v2321 = vmul.f32 %v1710, %v2225
          %v2322 = vmul.f32 %v1712, %v2225
          %v2323 = vmul.f32 %v1715, %v2225
          %v2324 = vmul.f32 %v1717, %v2225
          %v2325 = vmul.f32 %v1720, %v2225
          %v2326 = vmul.f32 %v1722, %v2225
          %v2327 = vmul.f32 %v1725, %v2225
          %v2328 = vmul.f32 %v1727, %v2225
          %v2329 = vmul.f32 %v1730, %v2225
          %v2330 = vmul.f32 %v1732, %v2225
          %v2331 = vmul.f32 %v1735, %v2225
          %v2332 = vmul.f32 %v1737, %v2225
          %v2333 = vmul.f32 %v1740, %v2225
          %v2334 = vmul.f32 %v1742, %v2225
          %v2335 = vmul.f32 %v1745, %v2225
          %v2336 = vmul.f32 %v1747, %v2225
          %v2337 = vmul.f32 %v1750, %v2225
          %v2338 = vmul.f32 %v1752, %v2225
          %v2339 = vmul.f32 %v1755, %v2225
          %v2340 = vmul.f32 %v1757, %v2225
          %v2341 = vmul.f32 %v1760, %v2225
          %v2342 = vmul.f32 %v1762, %v2225
          %v2343 = vmul.f32 %v1765, %v2225
          %v2344 = vmul.f32 %v1767, %v2225
          %v2345 = vmul.f32 %v1770, %v2225
          %v2346 = vmul.f32 %v1772, %v2225
          %v2347 = vmul.f32 %v1775, %v2225
          %v2348 = vmul.f32 %v1777, %v2225
          %v2349 = vmul.f32 %v1780, %v2225
          %v2350 = vmul.f32 %v1782, %v2225
          %v2351 = vmul.f32 %v1785, %v2225
          %v2352 = vmul.f32 %v1787, %v2225
          %v2353 = vmul.f32 %v1790, %v2225
          %v2354 = vmul.f32 %v1792, %v2225
          %v2356 = vperm.slane %v2223, 0
          %v2358 = vadd.f32 %v2227, %v2356
          %v2359 = vadd.f32 %v2228, %v2356
          %v2360 = vadd.f32 %v2229, %v2356
          %v2361 = vadd.f32 %v2230, %v2356
          %v2362 = vadd.f32 %v2231, %v2356
          %v2363 = vadd.f32 %v2232, %v2356
          %v2364 = vadd.f32 %v2233, %v2356
          %v2365 = vadd.f32 %v2234, %v2356
          %v2366 = vadd.f32 %v2235, %v2356
          %v2367 = vadd.f32 %v2236, %v2356
          %v2368 = vadd.f32 %v2237, %v2356
          %v2369 = vadd.f32 %v2238, %v2356
          %v2370 = vadd.f32 %v2239, %v2356
          %v2371 = vadd.f32 %v2240, %v2356
          %v2372 = vadd.f32 %v2241, %v2356
          %v2373 = vadd.f32 %v2242, %v2356
          %v2374 = vadd.f32 %v2243, %v2356
          %v2375 = vadd.f32 %v2244, %v2356
          %v2376 = vadd.f32 %v2245, %v2356
          %v2377 = vadd.f32 %v2246, %v2356
          %v2378 = vadd.f32 %v2247, %v2356
          %v2379 = vadd.f32 %v2248, %v2356
          %v2380 = vadd.f32 %v2249, %v2356
          %v2381 = vadd.f32 %v2250, %v2356
          %v2382 = vadd.f32 %v2251, %v2356
          %v2383 = vadd.f32 %v2252, %v2356
          %v2384 = vadd.f32 %v2253, %v2356
          %v2385 = vadd.f32 %v2254, %v2356
          %v2386 = vadd.f32 %v2255, %v2356
          %v2387 = vadd.f32 %v2256, %v2356
          %v2388 = vadd.f32 %v2257, %v2356
          %v2389 = vadd.f32 %v2258, %v2356
          %v2390 = vadd.f32 %v2259, %v2356
          %v2391 = vadd.f32 %v2260, %v2356
          %v2392 = vadd.f32 %v2261, %v2356
          %v2393 = vadd.f32 %v2262, %v2356
          %v2394 = vadd.f32 %v2263, %v2356
          %v2395 = vadd.f32 %v2264, %v2356
          %v2396 = vadd.f32 %v2265, %v2356
          %v2397 = vadd.f32 %v2266, %v2356
          %v2398 = vadd.f32 %v2267, %v2356
          %v2399 = vadd.f32 %v2268, %v2356
          %v2400 = vadd.f32 %v2269, %v2356
          %v2401 = vadd.f32 %v2270, %v2356
          %v2402 = vadd.f32 %v2271, %v2356
          %v2403 = vadd.f32 %v2272, %v2356
          %v2404 = vadd.f32 %v2273, %v2356
          %v2405 = vadd.f32 %v2274, %v2356
          %v2406 = vadd.f32 %v2275, %v2356
          %v2407 = vadd.f32 %v2276, %v2356
          %v2408 = vadd.f32 %v2277, %v2356
          %v2409 = vadd.f32 %v2278, %v2356
          %v2410 = vadd.f32 %v2279, %v2356
          %v2411 = vadd.f32 %v2280, %v2356
          %v2412 = vadd.f32 %v2281, %v2356
          %v2413 = vadd.f32 %v2282, %v2356
          %v2414 = vadd.f32 %v2283, %v2356
          %v2415 = vadd.f32 %v2284, %v2356
          %v2416 = vadd.f32 %v2285, %v2356
          %v2417 = vadd.f32 %v2286, %v2356
          %v2418 = vadd.f32 %v2287, %v2356
          %v2419 = vadd.f32 %v2288, %v2356
          %v2420 = vadd.f32 %v2289, %v2356
          %v2421 = vadd.f32 %v2290, %v2356
          %v2422 = vadd.f32 %v2291, %v2356
          %v2423 = vadd.f32 %v2292, %v2356
          %v2424 = vadd.f32 %v2293, %v2356
          %v2425 = vadd.f32 %v2294, %v2356
          %v2426 = vadd.f32 %v2295, %v2356
          %v2427 = vadd.f32 %v2296, %v2356
          %v2428 = vadd.f32 %v2297, %v2356
          %v2429 = vadd.f32 %v2298, %v2356
          %v2430 = vadd.f32 %v2299, %v2356
          %v2431 = vadd.f32 %v2300, %v2356
          %v2432 = vadd.f32 %v2301, %v2356
          %v2433 = vadd.f32 %v2302, %v2356
          %v2434 = vadd.f32 %v2303, %v2356
          %v2435 = vadd.f32 %v2304, %v2356
          %v2436 = vadd.f32 %v2305, %v2356
          %v2437 = vadd.f32 %v2306, %v2356
          %v2438 = vadd.f32 %v2307, %v2356
          %v2439 = vadd.f32 %v2308, %v2356
          %v2440 = vadd.f32 %v2309, %v2356
          %v2441 = vadd.f32 %v2310, %v2356
          %v2442 = vadd.f32 %v2311, %v2356
          %v2443 = vadd.f32 %v2312, %v2356
          %v2444 = vadd.f32 %v2313, %v2356
          %v2445 = vadd.f32 %v2314, %v2356
          %v2446 = vadd.f32 %v2315, %v2356
          %v2447 = vadd.f32 %v2316, %v2356
          %v2448 = vadd.f32 %v2317, %v2356
          %v2449 = vadd.f32 %v2318, %v2356
          %v2450 = vadd.f32 %v2319, %v2356
          %v2451 = vadd.f32 %v2320, %v2356
          %v2452 = vadd.f32 %v2321, %v2356
          %v2453 = vadd.f32 %v2322, %v2356
          %v2454 = vadd.f32 %v2323, %v2356
          %v2455 = vadd.f32 %v2324, %v2356
          %v2456 = vadd.f32 %v2325, %v2356
          %v2457 = vadd.f32 %v2326, %v2356
          %v2458 = vadd.f32 %v2327, %v2356
          %v2459 = vadd.f32 %v2328, %v2356
          %v2460 = vadd.f32 %v2329, %v2356
          %v2461 = vadd.f32 %v2330, %v2356
          %v2462 = vadd.f32 %v2331, %v2356
          %v2463 = vadd.f32 %v2332, %v2356
          %v2464 = vadd.f32 %v2333, %v2356
          %v2465 = vadd.f32 %v2334, %v2356
          %v2466 = vadd.f32 %v2335, %v2356
          %v2467 = vadd.f32 %v2336, %v2356
          %v2468 = vadd.f32 %v2337, %v2356
          %v2469 = vadd.f32 %v2338, %v2356
          %v2470 = vadd.f32 %v2339, %v2356
          %v2471 = vadd.f32 %v2340, %v2356
          %v2472 = vadd.f32 %v2341, %v2356
          %v2473 = vadd.f32 %v2342, %v2356
          %v2474 = vadd.f32 %v2343, %v2356
          %v2475 = vadd.f32 %v2344, %v2356
          %v2476 = vadd.f32 %v2345, %v2356
          %v2477 = vadd.f32 %v2346, %v2356
          %v2478 = vadd.f32 %v2347, %v2356
          %v2479 = vadd.f32 %v2348, %v2356
          %v2480 = vadd.f32 %v2349, %v2356
          %v2481 = vadd.f32 %v2350, %v2356
          %v2482 = vadd.f32 %v2351, %v2356
          %v2483 = vadd.f32 %v2352, %v2356
          %v2484 = vadd.f32 %v2353, %v2356
          %v2485 = vadd.f32 %v2354, %v2356
          %v2486 = vmax.f32 %v2358, 0.0
          %v2487 = vmax.f32 %v2359, 0.0
          %v2488 = vmax.f32 %v2360, 0.0
          %v2489 = vmax.f32 %v2361, 0.0
          %v2490 = vmax.f32 %v2362, 0.0
          %v2491 = vmax.f32 %v2363, 0.0
          %v2492 = vmax.f32 %v2364, 0.0
          %v2493 = vmax.f32 %v2365, 0.0
          %v2494 = vmax.f32 %v2366, 0.0
          %v2495 = vmax.f32 %v2367, 0.0
          %v2496 = vmax.f32 %v2368, 0.0
          %v2497 = vmax.f32 %v2369, 0.0
          %v2498 = vmax.f32 %v2370, 0.0
          %v2499 = vmax.f32 %v2371, 0.0
          %v2500 = vmax.f32 %v2372, 0.0
          %v2501 = vmax.f32 %v2373, 0.0
          %v2502 = vmax.f32 %v2374, 0.0
          %v2503 = vmax.f32 %v2375, 0.0
          %v2504 = vmax.f32 %v2376, 0.0
          %v2505 = vmax.f32 %v2377, 0.0
          %v2506 = vmax.f32 %v2378, 0.0
          %v2507 = vmax.f32 %v2379, 0.0
          %v2508 = vmax.f32 %v2380, 0.0
          %v2509 = vmax.f32 %v2381, 0.0
          %v2510 = vmax.f32 %v2382, 0.0
          %v2511 = vmax.f32 %v2383, 0.0
          %v2512 = vmax.f32 %v2384, 0.0
          %v2513 = vmax.f32 %v2385, 0.0
          %v2514 = vmax.f32 %v2386, 0.0
          %v2515 = vmax.f32 %v2387, 0.0
          %v2516 = vmax.f32 %v2388, 0.0
          %v2517 = vmax.f32 %v2389, 0.0
          %v2518 = vmax.f32 %v2390, 0.0
          %v2519 = vmax.f32 %v2391, 0.0
          %v2520 = vmax.f32 %v2392, 0.0
          %v2521 = vmax.f32 %v2393, 0.0
          %v2522 = vmax.f32 %v2394, 0.0
          %v2523 = vmax.f32 %v2395, 0.0
          %v2524 = vmax.f32 %v2396, 0.0
          %v2525 = vmax.f32 %v2397, 0.0
          %v2526 = vmax.f32 %v2398, 0.0
          %v2527 = vmax.f32 %v2399, 0.0
          %v2528 = vmax.f32 %v2400, 0.0
          %v2529 = vmax.f32 %v2401, 0.0
          %v2530 = vmax.f32 %v2402, 0.0
          %v2531 = vmax.f32 %v2403, 0.0
          %v2532 = vmax.f32 %v2404, 0.0
          %v2533 = vmax.f32 %v2405, 0.0
          %v2534 = vmax.f32 %v2406, 0.0
          %v2535 = vmax.f32 %v2407, 0.0
          %v2536 = vmax.f32 %v2408, 0.0
          %v2537 = vmax.f32 %v2409, 0.0
          %v2538 = vmax.f32 %v2410, 0.0
          %v2539 = vmax.f32 %v2411, 0.0
          %v2540 = vmax.f32 %v2412, 0.0
          %v2541 = vmax.f32 %v2413, 0.0
          %v2542 = vmax.f32 %v2414, 0.0
          %v2543 = vmax.f32 %v2415, 0.0
          %v2544 = vmax.f32 %v2416, 0.0
          %v2545 = vmax.f32 %v2417, 0.0
          %v2546 = vmax.f32 %v2418, 0.0
          %v2547 = vmax.f32 %v2419, 0.0
          %v2548 = vmax.f32 %v2420, 0.0
          %v2549 = vmax.f32 %v2421, 0.0
          %v2550 = vmax.f32 %v2422, 0.0
          %v2551 = vmax.f32 %v2423, 0.0
          %v2552 = vmax.f32 %v2424, 0.0
          %v2553 = vmax.f32 %v2425, 0.0
          %v2554 = vmax.f32 %v2426, 0.0
          %v2555 = vmax.f32 %v2427, 0.0
          %v2556 = vmax.f32 %v2428, 0.0
          %v2557 = vmax.f32 %v2429, 0.0
          %v2558 = vmax.f32 %v2430, 0.0
          %v2559 = vmax.f32 %v2431, 0.0
          %v2560 = vmax.f32 %v2432, 0.0
          %v2561 = vmax.f32 %v2433, 0.0
          %v2562 = vmax.f32 %v2434, 0.0
          %v2563 = vmax.f32 %v2435, 0.0
          %v2564 = vmax.f32 %v2436, 0.0
          %v2565 = vmax.f32 %v2437, 0.0
          %v2566 = vmax.f32 %v2438, 0.0
          %v2567 = vmax.f32 %v2439, 0.0
          %v2568 = vmax.f32 %v2440, 0.0
          %v2569 = vmax.f32 %v2441, 0.0
          %v2570 = vmax.f32 %v2442, 0.0
          %v2571 = vmax.f32 %v2443, 0.0
          %v2572 = vmax.f32 %v2444, 0.0
          %v2573 = vmax.f32 %v2445, 0.0
          %v2574 = vmax.f32 %v2446, 0.0
          %v2575 = vmax.f32 %v2447, 0.0
          %v2576 = vmax.f32 %v2448, 0.0
          %v2577 = vmax.f32 %v2449, 0.0
          %v2578 = vmax.f32 %v2450, 0.0
          %v2579 = vmax.f32 %v2451, 0.0
          %v2580 = vmax.f32 %v2452, 0.0
          %v2581 = vmax.f32 %v2453, 0.0
          %v2582 = vmax.f32 %v2454, 0.0
          %v2583 = vmax.f32 %v2455, 0.0
          %v2584 = vmax.f32 %v2456, 0.0
          %v2585 = vmax.f32 %v2457, 0.0
          %v2586 = vmax.f32 %v2458, 0.0
          %v2587 = vmax.f32 %v2459, 0.0
          %v2588 = vmax.f32 %v2460, 0.0
          %v2589 = vmax.f32 %v2461, 0.0
          %v2590 = vmax.f32 %v2462, 0.0
          %v2591 = vmax.f32 %v2463, 0.0
          %v2592 = vmax.f32 %v2464, 0.0
          %v2593 = vmax.f32 %v2465, 0.0
          %v2594 = vmax.f32 %v2466, 0.0
          %v2595 = vmax.f32 %v2467, 0.0
          %v2596 = vmax.f32 %v2468, 0.0
          %v2597 = vmax.f32 %v2469, 0.0
          %v2598 = vmax.f32 %v2470, 0.0
          %v2599 = vmax.f32 %v2471, 0.0
          %v2600 = vmax.f32 %v2472, 0.0
          %v2601 = vmax.f32 %v2473, 0.0
          %v2602 = vmax.f32 %v2474, 0.0
          %v2603 = vmax.f32 %v2475, 0.0
          %v2604 = vmax.f32 %v2476, 0.0
          %v2605 = vmax.f32 %v2477, 0.0
          %v2606 = vmax.f32 %v2478, 0.0
          %v2607 = vmax.f32 %v2479, 0.0
          %v2608 = vmax.f32 %v2480, 0.0
          %v2609 = vmax.f32 %v2481, 0.0
          %v2610 = vmax.f32 %v2482, 0.0
          %v2611 = vmax.f32 %v2483, 0.0
          %v2612 = vmax.f32 %v2484, 0.0
          %v2613 = vmax.f32 %v2485, 0.0
          %v2614 = vmax.f32 %v2486, %v2518
          %v2615 = vmax.f32 %v2614, %v2550
          %v2616 = vmax.f32 %v2615, %v2582
          %v2617 = vmax.f32 %v2487, %v2519
          %v2618 = vmax.f32 %v2617, %v2551
          %v2619 = vmax.f32 %v2618, %v2583
          %v2620 = vmax.f32 %v2488, %v2520
          %v2621 = vmax.f32 %v2620, %v2552
          %v2622 = vmax.f32 %v2621, %v2584
          %v2623 = vmax.f32 %v2489, %v2521
          %v2624 = vmax.f32 %v2623, %v2553
          %v2625 = vmax.f32 %v2624, %v2585
          %v2626 = vmax.f32 %v2490, %v2522
          %v2627 = vmax.f32 %v2626, %v2554
          %v2628 = vmax.f32 %v2627, %v2586
          %v2629 = vmax.f32 %v2491, %v2523
          %v2630 = vmax.f32 %v2629, %v2555
          %v2631 = vmax.f32 %v2630, %v2587
          %v2632 = vmax.f32 %v2492, %v2524
          %v2633 = vmax.f32 %v2632, %v2556
          %v2634 = vmax.f32 %v2633, %v2588
          %v2635 = vmax.f32 %v2493, %v2525
          %v2636 = vmax.f32 %v2635, %v2557
          %v2637 = vmax.f32 %v2636, %v2589
          %v2638 = vmax.f32 %v2494, %v2526
          %v2639 = vmax.f32 %v2638, %v2558
          %v2640 = vmax.f32 %v2639, %v2590
          %v2641 = vmax.f32 %v2495, %v2527
          %v2642 = vmax.f32 %v2641, %v2559
          %v2643 = vmax.f32 %v2642, %v2591
          %v2644 = vmax.f32 %v2496, %v2528
          %v2645 = vmax.f32 %v2644, %v2560
          %v2646 = vmax.f32 %v2645, %v2592
          %v2647 = vmax.f32 %v2497, %v2529
          %v2648 = vmax.f32 %v2647, %v2561
          %v2649 = vmax.f32 %v2648, %v2593
          %v2650 = vmax.f32 %v2498, %v2530
          %v2651 = vmax.f32 %v2650, %v2562
          %v2652 = vmax.f32 %v2651, %v2594
          %v2653 = vmax.f32 %v2499, %v2531
          %v2654 = vmax.f32 %v2653, %v2563
          %v2655 = vmax.f32 %v2654, %v2595
          %v2656 = vmax.f32 %v2500, %v2532
          %v2657 = vmax.f32 %v2656, %v2564
          %v2658 = vmax.f32 %v2657, %v2596
          %v2659 = vmax.f32 %v2501, %v2533
          %v2660 = vmax.f32 %v2659, %v2565
          %v2661 = vmax.f32 %v2660, %v2597
          %v2662 = vmax.f32 %v2502, %v2534
          %v2663 = vmax.f32 %v2662, %v2566
          %v2664 = vmax.f32 %v2663, %v2598
          %v2665 = vmax.f32 %v2503, %v2535
          %v2666 = vmax.f32 %v2665, %v2567
          %v2667 = vmax.f32 %v2666, %v2599
          %v2668 = vmax.f32 %v2504, %v2536
          %v2669 = vmax.f32 %v2668, %v2568
          %v2670 = vmax.f32 %v2669, %v2600
          %v2671 = vmax.f32 %v2505, %v2537
          %v2672 = vmax.f32 %v2671, %v2569
          %v2673 = vmax.f32 %v2672, %v2601
          %v2674 = vmax.f32 %v2506, %v2538
          %v2675 = vmax.f32 %v2674, %v2570
          %v2676 = vmax.f32 %v2675, %v2602
          %v2677 = vmax.f32 %v2507, %v2539
          %v2678 = vmax.f32 %v2677, %v2571
          %v2679 = vmax.f32 %v2678, %v2603
          %v2680 = vmax.f32 %v2508, %v2540
          %v2681 = vmax.f32 %v2680, %v2572
          %v2682 = vmax.f32 %v2681, %v2604
          %v2683 = vmax.f32 %v2509, %v2541
          %v2684 = vmax.f32 %v2683, %v2573
          %v2685 = vmax.f32 %v2684, %v2605
          %v2686 = vmax.f32 %v2510, %v2542
          %v2687 = vmax.f32 %v2686, %v2574
          %v2688 = vmax.f32 %v2687, %v2606
          %v2689 = vmax.f32 %v2511, %v2543
          %v2690 = vmax.f32 %v2689, %v2575
          %v2691 = vmax.f32 %v2690, %v2607
          %v2692 = vmax.f32 %v2512, %v2544
          %v2693 = vmax.f32 %v2692, %v2576
          %v2694 = vmax.f32 %v2693, %v2608
          %v2695 = vmax.f32 %v2513, %v2545
          %v2696 = vmax.f32 %v2695, %v2577
          %v2697 = vmax.f32 %v2696, %v2609
          %v2698 = vmax.f32 %v2514, %v2546
          %v2699 = vmax.f32 %v2698, %v2578
          %v2700 = vmax.f32 %v2699, %v2610
          %v2701 = vmax.f32 %v2515, %v2547
          %v2702 = vmax.f32 %v2701, %v2579
          %v2703 = vmax.f32 %v2702, %v2611
          %v2704 = vmax.f32 %v2516, %v2548
          %v2705 = vmax.f32 %v2704, %v2580
          %v2706 = vmax.f32 %v2705, %v2612
          %v2707 = vmax.f32 %v2517, %v2549
          %v2708 = vmax.f32 %v2707, %v2581
          %v2709 = vmax.f32 %v2708, %v2613
          %v2710 = vpack.c.bf16 %v2616, %v2616
          %v2711 = vpack.c.bf16 %v2619, %v2619
          %v2712 = vpack.c.bf16 %v2622, %v2622
          %v2713 = vpack.c.bf16 %v2625, %v2625
          %v2714 = vpack.c.bf16 %v2628, %v2628
          %v2715 = vpack.c.bf16 %v2631, %v2631
          %v2716 = vpack.c.bf16 %v2634, %v2634
          %v2717 = vpack.c.bf16 %v2637, %v2637
          %v2718 = vpack.c.bf16 %v2640, %v2640
          %v2719 = vpack.c.bf16 %v2643, %v2643
          %v2720 = vpack.c.bf16 %v2646, %v2646
          %v2721 = vpack.c.bf16 %v2649, %v2649
          %v2722 = vpack.c.bf16 %v2652, %v2652
          %v2723 = vpack.c.bf16 %v2655, %v2655
          %v2724 = vpack.c.bf16 %v2658, %v2658
          %v2725 = vpack.c.bf16 %v2661, %v2661
          %v2726 = vpack.c.bf16 %v2664, %v2664
          %v2727 = vpack.c.bf16 %v2667, %v2667
          %v2728 = vpack.c.bf16 %v2670, %v2670
          %v2729 = vpack.c.bf16 %v2673, %v2673
          %v2730 = vpack.c.bf16 %v2676, %v2676
          %v2731 = vpack.c.bf16 %v2679, %v2679
          %v2732 = vpack.c.bf16 %v2682, %v2682
          %v2733 = vpack.c.bf16 %v2685, %v2685
          %v2734 = vpack.c.bf16 %v2688, %v2688
          %v2735 = vpack.c.bf16 %v2691, %v2691
          %v2736 = vpack.c.bf16 %v2694, %v2694
          %v2737 = vpack.c.bf16 %v2697, %v2697
          %v2738 = vpack.c.bf16 %v2700, %v2700
          %v2739 = vpack.c.bf16 %v2703, %v2703
          %v2740 = vpack.c.bf16 %v2706, %v2706
          %v2741 = vpack.c.bf16 %v2709, %v2709
          %2742 = vst [vmem:[%s766] sm:$0xf] %v2710
          %2743 = vst [vmem:[%s766 + $0x4] sm:$0xf] %v2711
          %2744 = vst [vmem:[%s766 + $0x8] sm:$0xf] %v2712
          %2745 = vst [vmem:[%s766 + $0xc] sm:$0xf] %v2713
          %2746 = vst [vmem:[%s766 + $0x10] sm:$0xf] %v2714
          %2747 = vst [vmem:[%s766 + $0x14] sm:$0xf] %v2715
          %2748 = vst [vmem:[%s766 + $0x18] sm:$0xf] %v2716
          %2749 = vst [vmem:[%s766 + $0x1c] sm:$0xf] %v2717
          %2750 = vst [vmem:[%s766 + $0x20] sm:$0xf] %v2718
          %2751 = vst [vmem:[%s766 + $0x24] sm:$0xf] %v2719
          %2752 = vst [vmem:[%s766 + $0x28] sm:$0xf] %v2720
          %2753 = vst [vmem:[%s766 + $0x2c] sm:$0xf] %v2721
          %2754 = vst [vmem:[%s766 + $0x30] sm:$0xf] %v2722
          %2755 = vst [vmem:[%s766 + $0x34] sm:$0xf] %v2723
          %2756 = vst [vmem:[%s766 + $0x38] sm:$0xf] %v2724
          %2757 = vst [vmem:[%s766 + $0x3c] sm:$0xf] %v2725
          %2758 = vst [vmem:[%s766 + $0x40] sm:$0xf] %v2726
          %2759 = vst [vmem:[%s766 + $0x44] sm:$0xf] %v2727
          %2760 = vst [vmem:[%s766 + $0x48] sm:$0xf] %v2728
          %2761 = vst [vmem:[%s766 + $0x4c] sm:$0xf] %v2729
          %2762 = vst [vmem:[%s766 + $0x50] sm:$0xf] %v2730
          %2763 = vst [vmem:[%s766 + $0x54] sm:$0xf] %v2731
          %2764 = vst [vmem:[%s766 + $0x58] sm:$0xf] %v2732
          %2765 = vst [vmem:[%s766 + $0x5c] sm:$0xf] %v2733
          %2766 = vst [vmem:[%s766 + $0x60] sm:$0xf] %v2734
          %2767 = vst [vmem:[%s766 + $0x64] sm:$0xf] %v2735
          %2768 = vst [vmem:[%s766 + $0x68] sm:$0xf] %v2736
          %2769 = vst [vmem:[%s766 + $0x6c] sm:$0xf] %v2737
          %2770 = vst [vmem:[%s766 + $0x70] sm:$0xf] %v2738
          %2771 = vst [vmem:[%s766 + $0x74] sm:$0xf] %v2739
          %2772 = vst [vmem:[%s766 + $0x78] sm:$0xf] %v2740
          %2773 = vst [vmem:[%s766 + $0x7c] sm:$0xf] %v2741
        $region89: #{net_forward.3} parent=72 // pred_fallthru
          _
        %s2774 = smul.u32 %s20, %s19
        %s2775 = smul.u32 32, %s2774
        %p2776 = scmp.lt.s32.totalorder %s2775, 63
        %s2777 = scalar_select %p2776, %s2775, 63
        %s2778 = smul.addr %s2777, 4
        %s2779 = scalar_lea.vmem %s4, %s2778
        // Predicated region
        $region90: #{net_forward.3} parent=72 // pred_check
          %p2780 = pneg %p136
        $region91: #{net_forward.3} parent=72 // pred_check_branch
          %2782 = sbr.rel (%p2780) target = $region93
        $region92: #{net_forward.3} parent=72 // pred_region
          %s2783 = smul.u32 %s20, %s19
          %s2784 = smul.u32 32, %s2783
        $region93: #{net_forward.3} parent=72 // pred_fallthru
          _
      $region73: #{net_forward.3} parent=5 // pred_fallthru
        _
      %p2785 = scmp.le.s32.totalorder 2, %s10
      // Predicated region
      $region94: #{net_forward.3} parent=5 // pred_check
        %p2786 = pneg %p2785
      $region95: #{net_forward.3} parent=5 // pred_check_branch
        %2788 = sbr.rel (%p2786) target = $region97
      $region96: #{net_forward.3} parent=5 // pred_region
        %s2789 = ssub.s32 %s10, 2
        // Predicated region
        $region98: #{net_forward.3} parent=96 // pred_check
          %p2790 = pneg %p142
        $region99: #{net_forward.3} parent=96 // pred_check_branch
          %2792 = sbr.rel (%p2790) target = $region101
        $region100: #{net_forward.3} parent=96 // pred_region
          %s2793 = smul.u32 %s22, %s21
          %s2794 = smul.u32 32, %s2793
          %p2795 = scmp.lt.s32.totalorder %s2794, 63
          %s2796 = scalar_select %p2795, %s2794, 63
          %s2797 = smul.addr %s2796, 4
          %s2798 = scalar_lea.vmem %s4, %s2797
        $region101: #{net_forward.3} parent=96 // pred_fallthru
          _
      $region97: #{net_forward.3} parent=5 // pred_fallthru
        _
    $region6: #{net_forward.3} parent=1 // loop_footer
      %s14 = sadd.s32 1, %s10
    $region7: #{net_forward.3} parent=1 // loop_footer_branch
      %9 = sbr.rel target = $region3
    $region8: #{net_forward.3} parent=1 // loop_exit
      _

// kernel: net_forward.5
$region0: #{net_forward.5}
  #allocation0 [shape = 'u32[]', space=smem, size = 0x4, offset = 0x4, fixed_abs, tag = 'smem constant byte address 0x4 - core index']
  #allocation1 [shape = 'u32[72,128]{1,0:T(1,128)}', space=vmem, size = 0x9000, scoped, tag = 'internal scratch']
  %s0 = inlined_call_operand.vmem [shape: bf16[8,512], index: 0, kind: input, shape index: {}]
  %s1 = inlined_call_operand.vmem [shape: bf16[512,128], index: 1, kind: input, shape index: {}]
  %s2 = inlined_call_operand.vmem [shape: f32[1,128], index: 2, kind: input, shape index: {}]
  %s3 = inlined_call_operand.vmem [shape: bf16[128,128], index: 3, kind: input, shape index: {}]
  %s4 = inlined_call_operand.vmem [shape: f32[1,128], index: 4, kind: input, shape index: {}]
  %s5 = inlined_call_operand.vmem [shape: bf16[128,128], index: 5, kind: input, shape index: {}]
  %s6 = inlined_call_operand.vmem [shape: f32[1,128], index: 6, kind: input, shape index: {}]
  %s7 = inlined_call_operand.vmem [shape: f32[8,128], index: 7, kind: output, shape index: {}]
  %s8 = sld [smem:[#allocation0]]
  $region38: #{net_forward.5} parent=0
    _
  %s10 = ssub.s32 1, %s8
  %s11 = scalar_select 0, %s10, %s8
  // Predicated region
  $region2: #{net_forward.5} parent=0 // pred_check
    _
  $region3: #{net_forward.5} parent=0 // pred_check_branch
    %13 = sbr.rel (0) target = $region5
  $region4: #{net_forward.5} parent=0 // pred_region
    _
  $region5: #{net_forward.5} parent=0 // pred_fallthru
    _
  // Predicated region
  $region6: #{net_forward.5} parent=0 // pred_check
    _
  $region7: #{net_forward.5} parent=0 // pred_check_branch
    %15 = sbr.rel (0) target = $region9
  $region8: #{net_forward.5} parent=0 // pred_region
    _
  $region9: #{net_forward.5} parent=0 // pred_fallthru
    _
  // Predicated region
  $region10: #{net_forward.5} parent=0 // pred_check
    _
  $region11: #{net_forward.5} parent=0 // pred_check_branch
    %17 = sbr.rel (0) target = $region13
  $region12: #{net_forward.5} parent=0 // pred_region
    _
  $region13: #{net_forward.5} parent=0 // pred_fallthru
    _
  // Predicated region
  $region14: #{net_forward.5} parent=0 // pred_check
    _
  $region15: #{net_forward.5} parent=0 // pred_check_branch
    %19 = sbr.rel (0) target = $region17
  $region16: #{net_forward.5} parent=0 // pred_region
    _
  $region17: #{net_forward.5} parent=0 // pred_fallthru
    _
  // Predicated region
  $region18: #{net_forward.5} parent=0 // pred_check
    _
  $region19: #{net_forward.5} parent=0 // pred_check_branch
    %21 = sbr.rel (0) target = $region21
  $region20: #{net_forward.5} parent=0 // pred_region
    _
  $region21: #{net_forward.5} parent=0 // pred_fallthru
    _
  // Predicated region
  $region22: #{net_forward.5} parent=0 // pred_check
    _
  $region23: #{net_forward.5} parent=0 // pred_check_branch
    %23 = sbr.rel (0) target = $region25
  $region24: #{net_forward.5} parent=0 // pred_region
    _
  $region25: #{net_forward.5} parent=0 // pred_fallthru
    _
  // Predicated region
  $region26: #{net_forward.5} parent=0 // pred_check
    _
  $region27: #{net_forward.5} parent=0 // pred_check_branch
    %25 = sbr.rel (0) target = $region29
  $region28: #{net_forward.5} parent=0 // pred_region
    _
  $region29: #{net_forward.5} parent=0 // pred_fallthru
    _
  %v26 = vld [vmem:[%s0] sm:$0xff]
  %v27 = vld [vmem:[%s0 + $0x8] sm:$0xff]
  %v28 = vld [vmem:[%s1] sm:$0xf]
  %v29 = vld [vmem:[%s1 + $0x4] sm:$0xf]
  %v30 = vld [vmem:[%s1 + $0x8] sm:$0xf]
  %v31 = vld [vmem:[%s1 + $0xc] sm:$0xf]
  %v32 = vld [vmem:[%s1 + $0x10] sm:$0xf]
  %v33 = vld [vmem:[%s1 + $0x14] sm:$0xf]
  %v34 = vld [vmem:[%s1 + $0x18] sm:$0xf]
  %v35 = vld [vmem:[%s1 + $0x1c] sm:$0xf]
  %v36 = vld [vmem:[%s1 + $0x20] sm:$0xf]
  %v37 = vld [vmem:[%s1 + $0x24] sm:$0xf]
  %v38 = vld [vmem:[%s1 + $0x28] sm:$0xf]
  %v39 = vld [vmem:[%s1 + $0x2c] sm:$0xf]
  %v40 = vld [vmem:[%s1 + $0x30] sm:$0xf]
  %v41 = vld [vmem:[%s1 + $0x34] sm:$0xf]
  %v42 = vld [vmem:[%s1 + $0x38] sm:$0xf]
  %v43 = vld [vmem:[%s1 + $0x3c] sm:$0xf]
  %v44 = vld [vmem:[%s1 + $0x40] sm:$0xf]
  %v45 = vld [vmem:[%s1 + $0x44] sm:$0xf]
  %v46 = vld [vmem:[%s1 + $0x48] sm:$0xf]
  %v47 = vld [vmem:[%s1 + $0x4c] sm:$0xf]
  %v48 = vld [vmem:[%s1 + $0x50] sm:$0xf]
  %v49 = vld [vmem:[%s1 + $0x54] sm:$0xf]
  %v50 = vld [vmem:[%s1 + $0x58] sm:$0xf]
  %v51 = vld [vmem:[%s1 + $0x5c] sm:$0xf]
  %v52 = vld [vmem:[%s1 + $0x60] sm:$0xf]
  %v53 = vld [vmem:[%s1 + $0x64] sm:$0xf]
  %v54 = vld [vmem:[%s1 + $0x68] sm:$0xf]
  %v55 = vld [vmem:[%s1 + $0x6c] sm:$0xf]
  %v56 = vld [vmem:[%s1 + $0x70] sm:$0xf]
  %v57 = vld [vmem:[%s1 + $0x74] sm:$0xf]
  %v58 = vld [vmem:[%s1 + $0x78] sm:$0xf]
  %v59 = vld [vmem:[%s1 + $0x7c] sm:$0xf]
  %v60 = vld [vmem:[%s1 + $0x80] sm:$0xf]
  %v61 = vld [vmem:[%s1 + $0x84] sm:$0xf]
  %v62 = vld [vmem:[%s1 + $0x88] sm:$0xf]
  %v63 = vld [vmem:[%s1 + $0x8c] sm:$0xf]
  %v64 = vld [vmem:[%s1 + $0x90] sm:$0xf]
  %v65 = vld [vmem:[%s1 + $0x94] sm:$0xf]
  %v66 = vld [vmem:[%s1 + $0x98] sm:$0xf]
  %v67 = vld [vmem:[%s1 + $0x9c] sm:$0xf]
  %v68 = vld [vmem:[%s1 + $0xa0] sm:$0xf]
  %v69 = vld [vmem:[%s1 + $0xa4] sm:$0xf]
  %v70 = vld [vmem:[%s1 + $0xa8] sm:$0xf]
  %v71 = vld [vmem:[%s1 + $0xac] sm:$0xf]
  %v72 = vld [vmem:[%s1 + $0xb0] sm:$0xf]
  %v73 = vld [vmem:[%s1 + $0xb4] sm:$0xf]
  %v74 = vld [vmem:[%s1 + $0xb8] sm:$0xf]
  %v75 = vld [vmem:[%s1 + $0xbc] sm:$0xf]
  %v76 = vld [vmem:[%s1 + $0xc0] sm:$0xf]
  %v77 = vld [vmem:[%s1 + $0xc4] sm:$0xf]
  %v78 = vld [vmem:[%s1 + $0xc8] sm:$0xf]
  %v79 = vld [vmem:[%s1 + $0xcc] sm:$0xf]
  %v80 = vld [vmem:[%s1 + $0xd0] sm:$0xf]
  %v81 = vld [vmem:[%s1 + $0xd4] sm:$0xf]
  %v82 = vld [vmem:[%s1 + $0xd8] sm:$0xf]
  %v83 = vld [vmem:[%s1 + $0xdc] sm:$0xf]
  %v84 = vld [vmem:[%s1 + $0xe0] sm:$0xf]
  %v85 = vld [vmem:[%s1 + $0xe4] sm:$0xf]
  %v86 = vld [vmem:[%s1 + $0xe8] sm:$0xf]
  %v87 = vld [vmem:[%s1 + $0xec] sm:$0xf]
  %v88 = vld [vmem:[%s1 + $0xf0] sm:$0xf]
  %v89 = vld [vmem:[%s1 + $0xf4] sm:$0xf]
  %v90 = vld [vmem:[%s1 + $0xf8] sm:$0xf]
  %v91 = vld [vmem:[%s1 + $0xfc] sm:$0xf]
  %v92 = vld [vmem:[%s2] sm:$0x1]
  %v94 = vperm.slane %v92, 0
  %v98 = vunpack.c.l.b16 %v26
  %v99 = vunpack.c.h.b16 %v26
  %v100 = vunpack.c.l.b16 %v27
  %v101 = vunpack.c.h.b16 %v27
  %v102 = vpack.c.b16 %v98, %v98
  %v103 = vpack.c.b16 %v99, %v99
  %v104 = vpack.c.b16 %v100, %v100
  %v105 = vpack.c.b16 %v101, %v101
  %v174 = vunpack.c.l.b16 %v28
  %v175 = vunpack.c.l.b16 %v29
  %v176 = vunpack.c.l.b16 %v30
  %v177 = vunpack.c.l.b16 %v31
  %v178 = vunpack.c.l.b16 %v32
  %v179 = vunpack.c.l.b16 %v33
  %v180 = vunpack.c.l.b16 %v34
  %v181 = vunpack.c.l.b16 %v35
  %v182 = vunpack.c.l.b16 %v36
  %v183 = vunpack.c.l.b16 %v37
  %v184 = vunpack.c.l.b16 %v38
  %v185 = vunpack.c.l.b16 %v39
  %v186 = vunpack.c.l.b16 %v40
  %v187 = vunpack.c.l.b16 %v41
  %v188 = vunpack.c.l.b16 %v42
  %v189 = vunpack.c.l.b16 %v43
  %v190 = vunpack.c.l.b16 %v44
  %v191 = vunpack.c.l.b16 %v45
  %v192 = vunpack.c.l.b16 %v46
  %v193 = vunpack.c.l.b16 %v47
  %v194 = vunpack.c.l.b16 %v48
  %v195 = vunpack.c.l.b16 %v49
  %v196 = vunpack.c.l.b16 %v50
  %v197 = vunpack.c.l.b16 %v51
  %v198 = vunpack.c.l.b16 %v52
  %v199 = vunpack.c.l.b16 %v53
  %v200 = vunpack.c.l.b16 %v54
  %v201 = vunpack.c.l.b16 %v55
  %v202 = vunpack.c.l.b16 %v56
  %v203 = vunpack.c.l.b16 %v57
  %v204 = vunpack.c.l.b16 %v58
  %v205 = vunpack.c.l.b16 %v59
  %v206 = vunpack.c.l.b16 %v60
  %v207 = vunpack.c.l.b16 %v61
  %v208 = vunpack.c.l.b16 %v62
  %v209 = vunpack.c.l.b16 %v63
  %v210 = vunpack.c.l.b16 %v64
  %v211 = vunpack.c.l.b16 %v65
  %v212 = vunpack.c.l.b16 %v66
  %v213 = vunpack.c.l.b16 %v67
  %v214 = vunpack.c.l.b16 %v68
  %v215 = vunpack.c.l.b16 %v69
  %v216 = vunpack.c.l.b16 %v70
  %v217 = vunpack.c.l.b16 %v71
  %v218 = vunpack.c.l.b16 %v72
  %v219 = vunpack.c.l.b16 %v73
  %v220 = vunpack.c.l.b16 %v74
  %v221 = vunpack.c.l.b16 %v75
  %v222 = vunpack.c.l.b16 %v76
  %v223 = vunpack.c.l.b16 %v77
  %v224 = vunpack.c.l.b16 %v78
  %v225 = vunpack.c.l.b16 %v79
  %v226 = vunpack.c.l.b16 %v80
  %v227 = vunpack.c.l.b16 %v81
  %v228 = vunpack.c.l.b16 %v82
  %v229 = vunpack.c.l.b16 %v83
  %v230 = vunpack.c.l.b16 %v84
  %v231 = vunpack.c.l.b16 %v85
  %v232 = vunpack.c.l.b16 %v86
  %v233 = vunpack.c.l.b16 %v87
  %v234 = vunpack.c.l.b16 %v88
  %v235 = vunpack.c.l.b16 %v89
  %v236 = vunpack.c.l.b16 %v90
  %v237 = vunpack.c.l.b16 %v91
  %v238 = vpack.c.b16 %v175, %v174
  %v239 = vpack.c.b16 %v177, %v176
  %v240 = vpack.c.b16 %v179, %v178
  %v241 = vpack.c.b16 %v181, %v180
  %v242 = vpack.c.b16 %v183, %v182
  %v243 = vpack.c.b16 %v185, %v184
  %v244 = vpack.c.b16 %v187, %v186
  %v245 = vpack.c.b16 %v189, %v188
  %v246 = vpack.c.b16 %v191, %v190
  %v247 = vpack.c.b16 %v193, %v192
  %v248 = vpack.c.b16 %v195, %v194
  %v249 = vpack.c.b16 %v197, %v196
  %v250 = vpack.c.b16 %v199, %v198
  %v251 = vpack.c.b16 %v201, %v200
  %v252 = vpack.c.b16 %v203, %v202
  %v253 = vpack.c.b16 %v205, %v204
  %v254 = vpack.c.b16 %v207, %v206
  %v255 = vpack.c.b16 %v209, %v208
  %v256 = vpack.c.b16 %v211, %v210
  %v257 = vpack.c.b16 %v213, %v212
  %v258 = vpack.c.b16 %v215, %v214
  %v259 = vpack.c.b16 %v217, %v216
  %v260 = vpack.c.b16 %v219, %v218
  %v261 = vpack.c.b16 %v221, %v220
  %v262 = vpack.c.b16 %v223, %v222
  %v263 = vpack.c.b16 %v225, %v224
  %v264 = vpack.c.b16 %v227, %v226
  %v265 = vpack.c.b16 %v229, %v228
  %v266 = vpack.c.b16 %v231, %v230
  %v267 = vpack.c.b16 %v233, %v232
  %v268 = vpack.c.b16 %v235, %v234
  %v269 = vpack.c.b16 %v237, %v236
  %302 = vmatpush.bf16.msra.mxu0 %v245
  %303 = vmatpush.bf16.msra.mxu0 %v244
  %304 = vmatpush.bf16.msra.mxu0 %v243
  %305 = vmatpush.bf16.msra.mxu0 %v242
  %306 = vmatpush.bf16.msra.mxu0 %v241
  %307 = vmatpush.bf16.msra.mxu0 %v240
  %308 = vmatpush.bf16.msra.mxu0 %v239
  %309 = vmatpush.bf16.msra.mxu0 %v238
  %310 = vmatmul.bf16.gmra.mxu0 %v102
  %v311 = vpop.f32.mrf.mxu0
  %v312 = vadd.f32 %v94, %v311
  %v313 = vpop.f32.mrf.mxu0
  %314 = vdwg.mxu0
  %315 = vmatpush.bf16.msra.mxu0 %v253
  %316 = vmatpush.bf16.msra.mxu0 %v252
  %317 = vmatpush.bf16.msra.mxu0 %v251
  %318 = vmatpush.bf16.msra.mxu0 %v250
  %319 = vmatpush.bf16.msra.mxu0 %v249
  %320 = vmatpush.bf16.msra.mxu0 %v248
  %321 = vmatpush.bf16.msra.mxu0 %v247
  %322 = vmatpush.bf16.msra.mxu0 %v246
  %323 = vmatmul.bf16.gmra.mxu0 %v103
  %v324 = vpop.f32.mrf.mxu0
  %v325 = vadd.f32 %v312, %v324
  %v326 = vpop.f32.mrf.mxu0
  %327 = vdwg.mxu0
  %328 = vmatpush.bf16.msra.mxu0 %v261
  %329 = vmatpush.bf16.msra.mxu0 %v260
  %330 = vmatpush.bf16.msra.mxu0 %v259
  %331 = vmatpush.bf16.msra.mxu0 %v258
  %332 = vmatpush.bf16.msra.mxu0 %v257
  %333 = vmatpush.bf16.msra.mxu0 %v256
  %334 = vmatpush.bf16.msra.mxu0 %v255
  %335 = vmatpush.bf16.msra.mxu0 %v254
  %336 = vmatmul.bf16.gmra.mxu0 %v104
  %v337 = vpop.f32.mrf.mxu0
  %v338 = vadd.f32 %v325, %v337
  %v339 = vpop.f32.mrf.mxu0
  %340 = vdwg.mxu0
  %341 = vmatpush.bf16.msra.mxu0 %v269
  %342 = vmatpush.bf16.msra.mxu0 %v268
  %343 = vmatpush.bf16.msra.mxu0 %v267
  %344 = vmatpush.bf16.msra.mxu0 %v266
  %345 = vmatpush.bf16.msra.mxu0 %v265
  %346 = vmatpush.bf16.msra.mxu0 %v264
  %347 = vmatpush.bf16.msra.mxu0 %v263
  %348 = vmatpush.bf16.msra.mxu0 %v262
  %349 = vmatmul.bf16.gmra.mxu0 %v105
  %v350 = vpop.f32.mrf.mxu0
  %v351 = vadd.f32 %v338, %v350
  %v352 = vpop.f32.mrf.mxu0
  %353 = vdwg.mxu0
  %v354 = vmax.f32 %v351, 0.0
  %v355 = vpack.c.bf16 %v354, %v354
  %v356 = vld [vmem:[%s3] sm:$0xf]
  %v357 = vld [vmem:[%s3 + $0x4] sm:$0xf]
  %v358 = vld [vmem:[%s3 + $0x8] sm:$0xf]
  %v359 = vld [vmem:[%s3 + $0xc] sm:$0xf]
  %v360 = vld [vmem:[%s3 + $0x10] sm:$0xf]
  %v361 = vld [vmem:[%s3 + $0x14] sm:$0xf]
  %v362 = vld [vmem:[%s3 + $0x18] sm:$0xf]
  %v363 = vld [vmem:[%s3 + $0x1c] sm:$0xf]
  %v364 = vld [vmem:[%s3 + $0x20] sm:$0xf]
  %v365 = vld [vmem:[%s3 + $0x24] sm:$0xf]
  %v366 = vld [vmem:[%s3 + $0x28] sm:$0xf]
  %v367 = vld [vmem:[%s3 + $0x2c] sm:$0xf]
  %v368 = vld [vmem:[%s3 + $0x30] sm:$0xf]
  %v369 = vld [vmem:[%s3 + $0x34] sm:$0xf]
  %v370 = vld [vmem:[%s3 + $0x38] sm:$0xf]
  %v371 = vld [vmem:[%s3 + $0x3c] sm:$0xf]
  %v372 = vld [vmem:[%s4] sm:$0x1]
  %v374 = vperm.slane %v372, 0
  %v392 = vunpack.c.l.b16 %v356
  %v393 = vunpack.c.l.b16 %v357
  %v394 = vunpack.c.l.b16 %v358
  %v395 = vunpack.c.l.b16 %v359
  %v396 = vunpack.c.l.b16 %v360
  %v397 = vunpack.c.l.b16 %v361
  %v398 = vunpack.c.l.b16 %v362
  %v399 = vunpack.c.l.b16 %v363
  %v400 = vunpack.c.l.b16 %v364
  %v401 = vunpack.c.l.b16 %v365
  %v402 = vunpack.c.l.b16 %v366
  %v403 = vunpack.c.l.b16 %v367
  %v404 = vunpack.c.l.b16 %v368
  %v405 = vunpack.c.l.b16 %v369
  %v406 = vunpack.c.l.b16 %v370
  %v407 = vunpack.c.l.b16 %v371
  %v408 = vpack.c.b16 %v393, %v392
  %v409 = vpack.c.b16 %v395, %v394
  %v410 = vpack.c.b16 %v397, %v396
  %v411 = vpack.c.b16 %v399, %v398
  %v412 = vpack.c.b16 %v401, %v400
  %v413 = vpack.c.b16 %v403, %v402
  %v414 = vpack.c.b16 %v405, %v404
  %v415 = vpack.c.b16 %v407, %v406
  %424 = vmatpush.bf16.msra.mxu0 %v415
  %425 = vmatpush.bf16.msra.mxu0 %v414
  %426 = vmatpush.bf16.msra.mxu0 %v413
  %427 = vmatpush.bf16.msra.mxu0 %v412
  %428 = vmatpush.bf16.msra.mxu0 %v411
  %429 = vmatpush.bf16.msra.mxu0 %v410
  %430 = vmatpush.bf16.msra.mxu0 %v409
  %431 = vmatpush.bf16.msra.mxu0 %v408
  %432 = vmatmul.bf16.gmra.mxu0 %v355
  %v433 = vpop.f32.mrf.mxu0
  %v434 = vadd.f32 %v374, %v433
  %v435 = vpop.f32.mrf.mxu0
  %436 = vdwg.mxu0
  %v437 = vmax.f32 %v434, 0.0
  %v438 = vpack.c.bf16 %v437, %v437
  %v439 = vld [vmem:[%s5] sm:$0xf]
  %v440 = vld [vmem:[%s5 + $0x4] sm:$0xf]
  %v441 = vld [vmem:[%s5 + $0x8] sm:$0xf]
  %v442 = vld [vmem:[%s5 + $0xc] sm:$0xf]
  %v443 = vld [vmem:[%s5 + $0x10] sm:$0xf]
  %v444 = vld [vmem:[%s5 + $0x14] sm:$0xf]
  %v445 = vld [vmem:[%s5 + $0x18] sm:$0xf]
  %v446 = vld [vmem:[%s5 + $0x1c] sm:$0xf]
  %v447 = vld [vmem:[%s5 + $0x20] sm:$0xf]
  %v448 = vld [vmem:[%s5 + $0x24] sm:$0xf]
  %v449 = vld [vmem:[%s5 + $0x28] sm:$0xf]
  %v450 = vld [vmem:[%s5 + $0x2c] sm:$0xf]
  %v451 = vld [vmem:[%s5 + $0x30] sm:$0xf]
  %v452 = vld [vmem:[%s5 + $0x34] sm:$0xf]
  %v453 = vld [vmem:[%s5 + $0x38] sm:$0xf]
  %v454 = vld [vmem:[%s5 + $0x3c] sm:$0xf]
  %v455 = vld [vmem:[%s6] sm:$0x1]
  %v457 = vperm.slane %v455, 0
  %v475 = vunpack.c.l.b16 %v439
  %v476 = vunpack.c.l.b16 %v440
  %v477 = vunpack.c.l.b16 %v441
  %v478 = vunpack.c.l.b16 %v442
  %v479 = vunpack.c.l.b16 %v443
  %v480 = vunpack.c.l.b16 %v444
  %v481 = vunpack.c.l.b16 %v445
  %v482 = vunpack.c.l.b16 %v446
  %v483 = vunpack.c.l.b16 %v447
  %v484 = vunpack.c.l.b16 %v448
  %v485 = vunpack.c.l.b16 %v449
  %v486 = vunpack.c.l.b16 %v450
  %v487 = vunpack.c.l.b16 %v451
  %v488 = vunpack.c.l.b16 %v452
  %v489 = vunpack.c.l.b16 %v453
  %v490 = vunpack.c.l.b16 %v454
  %v491 = vpack.c.b16 %v476, %v475
  %v492 = vpack.c.b16 %v478, %v477
  %v493 = vpack.c.b16 %v480, %v479
  %v494 = vpack.c.b16 %v482, %v481
  %v495 = vpack.c.b16 %v484, %v483
  %v496 = vpack.c.b16 %v486, %v485
  %v497 = vpack.c.b16 %v488, %v487
  %v498 = vpack.c.b16 %v490, %v489
  %507 = vmatpush.bf16.msra.mxu0 %v498
  %508 = vmatpush.bf16.msra.mxu0 %v497
  %509 = vmatpush.bf16.msra.mxu0 %v496
  %510 = vmatpush.bf16.msra.mxu0 %v495
  %511 = vmatpush.bf16.msra.mxu0 %v494
  %512 = vmatpush.bf16.msra.mxu0 %v493
  %513 = vmatpush.bf16.msra.mxu0 %v492
  %514 = vmatpush.bf16.msra.mxu0 %v491
  %515 = vmatmul.bf16.gmra.mxu0 %v438
  %v516 = vpop.f32.mrf.mxu0
  %v517 = vadd.f32 %v457, %v516
  %v518 = vpop.f32.mrf.mxu0
  %519 = vdwg.mxu0
  %520 = vst [vmem:[%s7] sm:$0xff] %v517
  // Predicated region
  $region30: #{net_forward.5} parent=0 // pred_check
    _
  $region31: #{net_forward.5} parent=0 // pred_check_branch
    %522 = sbr.rel (0) target = $region33
  $region32: #{net_forward.5} parent=0 // pred_region
    _
  $region33: #{net_forward.5} parent=0 // pred_fallthru
    _
  // Predicated region
  $region34: #{net_forward.5} parent=0 // pred_check
    _
  $region35: #{net_forward.5} parent=0 // pred_check_branch
    %524 = sbr.rel (0) target = $region37
  $region36: #{net_forward.5} parent=0 // pred_region
    _
  $region37: #{net_forward.5} parent=0 // pred_fallthru
    _

// kernel: net_forward.4
$region0: #{net_forward.4}
  #allocation0 [shape = 'u32[]', space=smem, size = 0x4, offset = 0x4, fixed_abs, tag = 'smem constant byte address 0x4 - core index']
  #allocation1 [shape = 'u32[72,128]{1,0:T(1,128)}', space=vmem, size = 0x9000, scoped, tag = 'internal scratch']
  %s0 = inlined_call_operand.vmem [shape: bf16[4,56,200], index: 0, kind: input, shape index: {}]
  %s1 = inlined_call_operand.vmem [shape: bf16[200,128], index: 1, kind: input, shape index: {}]
  %s2 = inlined_call_operand.vmem [shape: f32[1,128], index: 2, kind: input, shape index: {}]
  %s3 = inlined_call_operand.vmem [shape: bf16[56,128], index: 3, kind: output, shape index: {}]
  %s4 = sld [smem:[#allocation0]]
  $region22: #{net_forward.4} parent=0
    _
  %s6 = ssub.s32 1, %s4
  %s7 = scalar_select 0, %s6, %s4
  // Predicated region
  $region2: #{net_forward.4} parent=0 // pred_check
    _
  $region3: #{net_forward.4} parent=0 // pred_check_branch
    %9 = sbr.rel (0) target = $region5
  $region4: #{net_forward.4} parent=0 // pred_region
    _
  $region5: #{net_forward.4} parent=0 // pred_fallthru
    _
  // Predicated region
  $region6: #{net_forward.4} parent=0 // pred_check
    _
  $region7: #{net_forward.4} parent=0 // pred_check_branch
    %11 = sbr.rel (0) target = $region9
  $region8: #{net_forward.4} parent=0 // pred_region
    _
  $region9: #{net_forward.4} parent=0 // pred_fallthru
    _
  // Predicated region
  $region10: #{net_forward.4} parent=0 // pred_check
    _
  $region11: #{net_forward.4} parent=0 // pred_check_branch
    %13 = sbr.rel (0) target = $region13
  $region12: #{net_forward.4} parent=0 // pred_region
    _
  $region13: #{net_forward.4} parent=0 // pred_fallthru
    _
  %v15 = vld [vmem:[%s0] sm:$0xff]
  %v16 = vld [vmem:[%s0 + $0x8] sm:$0xff]
  %v17 = vld [vmem:[%s0 + $0x10] sm:$0xff]
  %v18 = vld [vmem:[%s0 + $0x18] sm:$0xff]
  %v19 = vld [vmem:[%s0 + $0x20] sm:$0xff]
  %v20 = vld [vmem:[%s0 + $0x28] sm:$0xff]
  %v21 = vld [vmem:[%s0 + $0x30] sm:$0xff]
  %v22 = vld [vmem:[%s0 + $0x38] sm:$0xff]
  %v23 = vld [vmem:[%s0 + $0x40] sm:$0xff]
  %v24 = vld [vmem:[%s0 + $0x48] sm:$0xff]
  %v25 = vld [vmem:[%s0 + $0x50] sm:$0xff]
  %v26 = vld [vmem:[%s0 + $0x58] sm:$0xff]
  %v27 = vld [vmem:[%s0 + $0x60] sm:$0xff]
  %v28 = vld [vmem:[%s0 + $0x68] sm:$0xff]
  %v29 = vld [vmem:[%s0 + $0x70] sm:$0xff]
  %v30 = vld [vmem:[%s0 + $0x78] sm:$0xff]
  %v31 = vld [vmem:[%s0 + $0x80] sm:$0xff]
  %v32 = vld [vmem:[%s0 + $0x88] sm:$0xff]
  %v33 = vld [vmem:[%s0 + $0x90] sm:$0xff]
  %v34 = vld [vmem:[%s0 + $0x98] sm:$0xff]
  %v35 = vld [vmem:[%s0 + $0xa0] sm:$0xff]
  %v36 = vld [vmem:[%s0 + $0xa8] sm:$0xff]
  %v37 = vld [vmem:[%s0 + $0xb0] sm:$0xff]
  %v38 = vld [vmem:[%s0 + $0xb8] sm:$0xff]
  %v39 = vld [vmem:[%s0 + $0xc0] sm:$0xff]
  %v40 = vld [vmem:[%s0 + $0xc8] sm:$0xff]
  %v41 = vld [vmem:[%s0 + $0xd0] sm:$0xff]
  %v42 = vld [vmem:[%s0 + $0xd8] sm:$0xff]
  %v43 = vld [vmem:[%s1] sm:$0xf]
  %v44 = vld [vmem:[%s1 + $0x4] sm:$0xf]
  %v45 = vld [vmem:[%s1 + $0x8] sm:$0xf]
  %v46 = vld [vmem:[%s1 + $0xc] sm:$0xf]
  %v47 = vld [vmem:[%s1 + $0x10] sm:$0xf]
  %v48 = vld [vmem:[%s1 + $0x14] sm:$0xf]
  %v49 = vld [vmem:[%s1 + $0x18] sm:$0xf]
  %v50 = vld [vmem:[%s1 + $0x1c] sm:$0xf]
  %v51 = vld [vmem:[%s1 + $0x20] sm:$0xf]
  %v52 = vld [vmem:[%s1 + $0x24] sm:$0xf]
  %v53 = vld [vmem:[%s1 + $0x28] sm:$0xf]
  %v54 = vld [vmem:[%s1 + $0x2c] sm:$0xf]
  %v55 = vld [vmem:[%s1 + $0x30] sm:$0xf]
  %v56 = vld [vmem:[%s1 + $0x34] sm:$0xf]
  %v57 = vld [vmem:[%s1 + $0x38] sm:$0xf]
  %v58 = vld [vmem:[%s1 + $0x3c] sm:$0xf]
  %v59 = vld [vmem:[%s1 + $0x40] sm:$0xf]
  %v60 = vld [vmem:[%s1 + $0x44] sm:$0xf]
  %v61 = vld [vmem:[%s1 + $0x48] sm:$0xf]
  %v62 = vld [vmem:[%s1 + $0x4c] sm:$0xf]
  %v63 = vld [vmem:[%s1 + $0x50] sm:$0xf]
  %v64 = vld [vmem:[%s1 + $0x54] sm:$0xf]
  %v65 = vld [vmem:[%s1 + $0x58] sm:$0xf]
  %v66 = vld [vmem:[%s1 + $0x5c] sm:$0xf]
  %v67 = vld [vmem:[%s1 + $0x60] sm:$0xf]
  %v68 = vld [vmem:[%s2] sm:$0x1]
  %v70 = vperm.slane %v68, 0
  %v100 = vunpack.c.l.b16 %v15
  %v101 = vunpack.c.h.b16 %v15
  %v102 = vunpack.c.l.b16 %v16
  %v103 = vunpack.c.h.b16 %v16
  %v104 = vunpack.c.l.b16 %v17
  %v105 = vunpack.c.h.b16 %v17
  %v106 = vunpack.c.l.b16 %v18
  %v107 = vunpack.c.h.b16 %v18
  %v108 = vunpack.c.l.b16 %v19
  %v109 = vunpack.c.h.b16 %v19
  %v110 = vunpack.c.l.b16 %v20
  %v111 = vunpack.c.h.b16 %v20
  %v112 = vunpack.c.l.b16 %v21
  %v113 = vunpack.c.h.b16 %v21
  %v114 = vunpack.c.l.b16 %v22
  %v115 = vunpack.c.h.b16 %v22
  %v116 = vunpack.c.l.b16 %v23
  %v117 = vunpack.c.h.b16 %v23
  %v118 = vunpack.c.l.b16 %v24
  %v119 = vunpack.c.h.b16 %v24
  %v120 = vunpack.c.l.b16 %v25
  %v121 = vunpack.c.h.b16 %v25
  %v122 = vunpack.c.l.b16 %v26
  %v123 = vunpack.c.h.b16 %v26
  %v124 = vunpack.c.l.b16 %v27
  %v125 = vunpack.c.h.b16 %v27
  %v126 = vunpack.c.l.b16 %v28
  %v127 = vunpack.c.h.b16 %v28
  %v128 = vunpack.c.l.b16 %v29
  %v129 = vunpack.c.h.b16 %v29
  %v130 = vunpack.c.l.b16 %v30
  %v131 = vunpack.c.h.b16 %v30
  %v132 = vunpack.c.l.b16 %v31
  %v133 = vunpack.c.h.b16 %v31
  %v134 = vunpack.c.l.b16 %v32
  %v135 = vunpack.c.h.b16 %v32
  %v136 = vunpack.c.l.b16 %v33
  %v137 = vunpack.c.h.b16 %v33
  %v138 = vunpack.c.l.b16 %v34
  %v139 = vunpack.c.h.b16 %v34
  %v140 = vunpack.c.l.b16 %v35
  %v141 = vunpack.c.h.b16 %v35
  %v142 = vunpack.c.l.b16 %v36
  %v143 = vunpack.c.h.b16 %v36
  %v144 = vunpack.c.l.b16 %v37
  %v145 = vunpack.c.h.b16 %v37
  %v146 = vunpack.c.l.b16 %v38
  %v147 = vunpack.c.h.b16 %v38
  %v148 = vunpack.c.l.b16 %v39
  %v149 = vunpack.c.h.b16 %v39
  %v150 = vunpack.c.l.b16 %v40
  %v151 = vunpack.c.h.b16 %v40
  %v152 = vunpack.c.l.b16 %v41
  %v153 = vunpack.c.h.b16 %v41
  %v154 = vunpack.c.l.b16 %v42
  %v155 = vunpack.c.h.b16 %v42
  %v156 = vpack.c.b16 %v102, %v100
  %v157 = vpack.c.b16 %v103, %v101
  %v158 = vpack.c.b16 %v106, %v104
  %v159 = vpack.c.b16 %v107, %v105
  %v160 = vpack.c.b16 %v110, %v108
  %v161 = vpack.c.b16 %v111, %v109
  %v162 = vpack.c.b16 %v114, %v112
  %v163 = vpack.c.b16 %v115, %v113
  %v164 = vpack.c.b16 %v118, %v116
  %v165 = vpack.c.b16 %v119, %v117
  %v166 = vpack.c.b16 %v122, %v120
  %v167 = vpack.c.b16 %v123, %v121
  %v168 = vpack.c.b16 %v126, %v124
  %v169 = vpack.c.b16 %v127, %v125
  %v170 = vpack.c.b16 %v130, %v128
  %v171 = vpack.c.b16 %v131, %v129
  %v172 = vpack.c.b16 %v134, %v132
  %v173 = vpack.c.b16 %v135, %v133
  %v174 = vpack.c.b16 %v138, %v136
  %v175 = vpack.c.b16 %v139, %v137
  %v176 = vpack.c.b16 %v142, %v140
  %v177 = vpack.c.b16 %v143, %v141
  %v178 = vpack.c.b16 %v146, %v144
  %v179 = vpack.c.b16 %v147, %v145
  %v180 = vpack.c.b16 %v150, %v148
  %v181 = vpack.c.b16 %v151, %v149
  %v182 = vpack.c.b16 %v154, %v152
  %v183 = vpack.c.b16 %v155, %v153
  %v223 = vunpack.c.l.b16 %v43
  %v224 = vunpack.c.l.b16 %v44
  %v225 = vunpack.c.l.b16 %v45
  %v226 = vunpack.c.l.b16 %v46
  %v227 = vunpack.c.l.b16 %v47
  %v228 = vunpack.c.l.b16 %v48
  %v229 = vunpack.c.l.b16 %v49
  %v230 = vunpack.c.l.b16 %v50
  %v231 = vunpack.c.l.b16 %v51
  %v232 = vunpack.c.l.b16 %v52
  %v233 = vunpack.c.l.b16 %v53
  %v234 = vunpack.c.l.b16 %v54
  %v235 = vunpack.c.l.b16 %v55
  %v236 = vunpack.c.l.b16 %v56
  %v237 = vunpack.c.l.b16 %v57
  %v238 = vunpack.c.l.b16 %v58
  %v239 = vunpack.c.l.b16 %v59
  %v240 = vunpack.c.l.b16 %v60
  %v241 = vunpack.c.l.b16 %v61
  %v242 = vunpack.c.l.b16 %v62
  %v243 = vunpack.c.l.b16 %v63
  %v244 = vunpack.c.l.b16 %v64
  %v245 = vunpack.c.l.b16 %v65
  %v246 = vunpack.c.l.b16 %v66
  %v247 = vunpack.c.l.b16 %v67
  %v248 = vpack.c.b16 %v224, %v223
  %v249 = vpack.c.b16 %v226, %v225
  %v250 = vpack.c.b16 %v228, %v227
  %v251 = vpack.c.b16 %v230, %v229
  %v252 = vpack.c.b16 %v232, %v231
  %v253 = vpack.c.b16 %v234, %v233
  %v254 = vpack.c.b16 %v236, %v235
  %v255 = vpack.c.b16 %v238, %v237
  %v256 = vpack.c.b16 %v240, %v239
  %v257 = vpack.c.b16 %v242, %v241
  %v258 = vpack.c.b16 %v244, %v243
  %v259 = vpack.c.b16 %v246, %v245
  %v260 = vpack.c.b16 %v247, %v247
  %vm273 = vcmask 588800
  %v275 = vsel %vm273, %v157, 0
  %v278 = vsel %vm273, %v159, 0
  %v281 = vsel %vm273, %v161, 0
  %v284 = vsel %vm273, %v163, 0
  %v287 = vsel %vm273, %v165, 0
  %v290 = vsel %vm273, %v167, 0
  %v293 = vsel %vm273, %v169, 0
  %v296 = vsel %vm273, %v171, 0
  %v299 = vsel %vm273, %v173, 0
  %v302 = vsel %vm273, %v175, 0
  %v305 = vsel %vm273, %v177, 0
  %v308 = vsel %vm273, %v179, 0
  %v311 = vsel %vm273, %v181, 0
  %v314 = vsel %vm273, %v183, 0
  %vm316 = vcmask 1043456
  %v318 = vsel %vm316, %v260, 0
  %320 = vmatpush.bf16.msra.mxu0 %v255
  %321 = vmatpush.bf16.msra.mxu0 %v254
  %322 = vmatpush.bf16.msra.mxu0 %v253
  %323 = vmatpush.bf16.msra.mxu0 %v252
  %324 = vmatpush.bf16.msra.mxu0 %v251
  %325 = vmatpush.bf16.msra.mxu0 %v250
  %326 = vmatpush.bf16.msra.mxu0 %v249
  %327 = vmatpush.bf16.msra.mxu0 %v248
  %328 = vmatmul.bf16.gmra.mxu0 %v156
  %v329 = vpop.f32.mrf.mxu0
  %v330 = vadd.f32 %v70, %v329
  %v331 = vpop.f32.mrf.mxu0
  %v332 = vadd.f32 %v70, %v331
  %333 = vmatmul.bf16.gmra.mxu0 %v158
  %v334 = vpop.f32.mrf.mxu0
  %v335 = vadd.f32 %v70, %v334
  %v336 = vpop.f32.mrf.mxu0
  %v337 = vadd.f32 %v70, %v336
  %338 = vmatmul.bf16.gmra.mxu0 %v160
  %v339 = vpop.f32.mrf.mxu0
  %v340 = vadd.f32 %v70, %v339
  %v341 = vpop.f32.mrf.mxu0
  %v342 = vadd.f32 %v70, %v341
  %343 = vmatmul.bf16.gmra.mxu0 %v162
  %v344 = vpop.f32.mrf.mxu0
  %v345 = vadd.f32 %v70, %v344
  %v346 = vpop.f32.mrf.mxu0
  %v347 = vadd.f32 %v70, %v346
  %348 = vmatmul.bf16.gmra.mxu0 %v164
  %v349 = vpop.f32.mrf.mxu0
  %v350 = vadd.f32 %v70, %v349
  %v351 = vpop.f32.mrf.mxu0
  %v352 = vadd.f32 %v70, %v351
  %353 = vmatmul.bf16.gmra.mxu0 %v166
  %v354 = vpop.f32.mrf.mxu0
  %v355 = vadd.f32 %v70, %v354
  %v356 = vpop.f32.mrf.mxu0
  %v357 = vadd.f32 %v70, %v356
  %358 = vmatmul.bf16.gmra.mxu0 %v168
  %v359 = vpop.f32.mrf.mxu0
  %v360 = vadd.f32 %v70, %v359
  %v361 = vpop.f32.mrf.mxu0
  %v362 = vadd.f32 %v70, %v361
  %363 = vmatmul.bf16.gmra.mxu0 %v170
  %v364 = vpop.f32.mrf.mxu0
  %v365 = vadd.f32 %v70, %v364
  %v366 = vpop.f32.mrf.mxu0
  %v367 = vadd.f32 %v70, %v366
  %368 = vmatmul.bf16.gmra.mxu0 %v172
  %v369 = vpop.f32.mrf.mxu0
  %v370 = vadd.f32 %v70, %v369
  %v371 = vpop.f32.mrf.mxu0
  %v372 = vadd.f32 %v70, %v371
  %373 = vmatmul.bf16.gmra.mxu0 %v174
  %v374 = vpop.f32.mrf.mxu0
  %v375 = vadd.f32 %v70, %v374
  %v376 = vpop.f32.mrf.mxu0
  %v377 = vadd.f32 %v70, %v376
  %378 = vmatmul.bf16.gmra.mxu0 %v176
  %v379 = vpop.f32.mrf.mxu0
  %v380 = vadd.f32 %v70, %v379
  %v381 = vpop.f32.mrf.mxu0
  %v382 = vadd.f32 %v70, %v381
  %383 = vmatmul.bf16.gmra.mxu0 %v178
  %v384 = vpop.f32.mrf.mxu0
  %v385 = vadd.f32 %v70, %v384
  %v386 = vpop.f32.mrf.mxu0
  %v387 = vadd.f32 %v70, %v386
  %388 = vmatmul.bf16.gmra.mxu0 %v180
  %v389 = vpop.f32.mrf.mxu0
  %v390 = vadd.f32 %v70, %v389
  %v391 = vpop.f32.mrf.mxu0
  %v392 = vadd.f32 %v70, %v391
  %393 = vmatmul.bf16.gmra.mxu0 %v182
  %v394 = vpop.f32.mrf.mxu0
  %v395 = vadd.f32 %v70, %v394
  %v396 = vpop.f32.mrf.mxu0
  %v397 = vadd.f32 %v70, %v396
  %398 = vdwg.mxu0
  %399 = vmatpush.bf16.msra.mxu0 0
  %400 = vmatpush.bf16.msra.mxu0 0
  %401 = vmatpush.bf16.msra.mxu0 0
  %402 = vmatpush.bf16.msra.mxu0 %v318
  %403 = vmatpush.bf16.msra.mxu0 %v259
  %404 = vmatpush.bf16.msra.mxu0 %v258
  %405 = vmatpush.bf16.msra.mxu0 %v257
  %406 = vmatpush.bf16.msra.mxu0 %v256
  %407 = vmatmul.bf16.gmra.mxu0 %v275
  %v408 = vpop.f32.mrf.mxu0
  %v409 = vadd.f32 %v330, %v408
  %v410 = vpop.f32.mrf.mxu0
  %v411 = vadd.f32 %v332, %v410
  %412 = vmatmul.bf16.gmra.mxu0 %v278
  %v413 = vpop.f32.mrf.mxu0
  %v414 = vadd.f32 %v335, %v413
  %v415 = vpop.f32.mrf.mxu0
  %v416 = vadd.f32 %v337, %v415
  %417 = vmatmul.bf16.gmra.mxu0 %v281
  %v418 = vpop.f32.mrf.mxu0
  %v419 = vadd.f32 %v340, %v418
  %v420 = vpop.f32.mrf.mxu0
  %v421 = vadd.f32 %v342, %v420
  %422 = vmatmul.bf16.gmra.mxu0 %v284
  %v423 = vpop.f32.mrf.mxu0
  %v424 = vadd.f32 %v345, %v423
  %v425 = vpop.f32.mrf.mxu0
  %v426 = vadd.f32 %v347, %v425
  %427 = vmatmul.bf16.gmra.mxu0 %v287
  %v428 = vpop.f32.mrf.mxu0
  %v429 = vadd.f32 %v350, %v428
  %v430 = vpop.f32.mrf.mxu0
  %v431 = vadd.f32 %v352, %v430
  %432 = vmatmul.bf16.gmra.mxu0 %v290
  %v433 = vpop.f32.mrf.mxu0
  %v434 = vadd.f32 %v355, %v433
  %v435 = vpop.f32.mrf.mxu0
  %v436 = vadd.f32 %v357, %v435
  %437 = vmatmul.bf16.gmra.mxu0 %v293
  %v438 = vpop.f32.mrf.mxu0
  %v439 = vadd.f32 %v360, %v438
  %v440 = vpop.f32.mrf.mxu0
  %v441 = vadd.f32 %v362, %v440
  %442 = vmatmul.bf16.gmra.mxu0 %v296
  %v443 = vpop.f32.mrf.mxu0
  %v444 = vadd.f32 %v365, %v443
  %v445 = vpop.f32.mrf.mxu0
  %v446 = vadd.f32 %v367, %v445
  %447 = vmatmul.bf16.gmra.mxu0 %v299
  %v448 = vpop.f32.mrf.mxu0
  %v449 = vadd.f32 %v370, %v448
  %v450 = vpop.f32.mrf.mxu0
  %v451 = vadd.f32 %v372, %v450
  %452 = vmatmul.bf16.gmra.mxu0 %v302
  %v453 = vpop.f32.mrf.mxu0
  %v454 = vadd.f32 %v375, %v453
  %v455 = vpop.f32.mrf.mxu0
  %v456 = vadd.f32 %v377, %v455
  %457 = vmatmul.bf16.gmra.mxu0 %v305
  %v458 = vpop.f32.mrf.mxu0
  %v459 = vadd.f32 %v380, %v458
  %v460 = vpop.f32.mrf.mxu0
  %v461 = vadd.f32 %v382, %v460
  %462 = vmatmul.bf16.gmra.mxu0 %v308
  %v463 = vpop.f32.mrf.mxu0
  %v464 = vadd.f32 %v385, %v463
  %v465 = vpop.f32.mrf.mxu0
  %v466 = vadd.f32 %v387, %v465
  %467 = vmatmul.bf16.gmra.mxu0 %v311
  %v468 = vpop.f32.mrf.mxu0
  %v469 = vadd.f32 %v390, %v468
  %v470 = vpop.f32.mrf.mxu0
  %v471 = vadd.f32 %v392, %v470
  %472 = vmatmul.bf16.gmra.mxu0 %v314
  %v473 = vpop.f32.mrf.mxu0
  %v474 = vadd.f32 %v395, %v473
  %v475 = vpop.f32.mrf.mxu0
  %v476 = vadd.f32 %v397, %v475
  %477 = vdwg.mxu0
  %v478 = vmax.f32 %v409, 0.0
  %v479 = vmax.f32 %v411, 0.0
  %v480 = vmax.f32 %v414, 0.0
  %v481 = vmax.f32 %v416, 0.0
  %v482 = vmax.f32 %v419, 0.0
  %v483 = vmax.f32 %v421, 0.0
  %v484 = vmax.f32 %v424, 0.0
  %v485 = vmax.f32 %v426, 0.0
  %v486 = vmax.f32 %v429, 0.0
  %v487 = vmax.f32 %v431, 0.0
  %v488 = vmax.f32 %v434, 0.0
  %v489 = vmax.f32 %v436, 0.0
  %v490 = vmax.f32 %v439, 0.0
  %v491 = vmax.f32 %v441, 0.0
  %v492 = vmax.f32 %v444, 0.0
  %v493 = vmax.f32 %v446, 0.0
  %v494 = vmax.f32 %v449, 0.0
  %v495 = vmax.f32 %v451, 0.0
  %v496 = vmax.f32 %v454, 0.0
  %v497 = vmax.f32 %v456, 0.0
  %v498 = vmax.f32 %v459, 0.0
  %v499 = vmax.f32 %v461, 0.0
  %v500 = vmax.f32 %v464, 0.0
  %v501 = vmax.f32 %v466, 0.0
  %v502 = vmax.f32 %v469, 0.0
  %v503 = vmax.f32 %v471, 0.0
  %v504 = vmax.f32 %v474, 0.0
  %v505 = vmax.f32 %v476, 0.0
  %v506 = vmax.f32 %v478, %v485
  %v507 = vmax.f32 %v506, %v492
  %v508 = vmax.f32 %v507, %v499
  %v509 = vmax.f32 %v479, %v486
  %v510 = vmax.f32 %v509, %v493
  %v511 = vmax.f32 %v510, %v500
  %v512 = vmax.f32 %v480, %v487
  %v513 = vmax.f32 %v512, %v494
  %v514 = vmax.f32 %v513, %v501
  %v515 = vmax.f32 %v481, %v488
  %v516 = vmax.f32 %v515, %v495
  %v517 = vmax.f32 %v516, %v502
  %v518 = vmax.f32 %v482, %v489
  %v519 = vmax.f32 %v518, %v496
  %v520 = vmax.f32 %v519, %v503
  %v521 = vmax.f32 %v483, %v490
  %v522 = vmax.f32 %v521, %v497
  %v523 = vmax.f32 %v522, %v504
  %v524 = vmax.f32 %v484, %v491
  %v525 = vmax.f32 %v524, %v498
  %v526 = vmax.f32 %v525, %v505
  %v527 = vpack.c.bf16 %v508, %v508
  %v528 = vpack.c.bf16 %v511, %v511
  %v529 = vpack.c.bf16 %v514, %v514
  %v530 = vpack.c.bf16 %v517, %v517
  %v531 = vpack.c.bf16 %v520, %v520
  %v532 = vpack.c.bf16 %v523, %v523
  %v533 = vpack.c.bf16 %v526, %v526
  %534 = vst [vmem:[%s3] sm:$0xf] %v527
  %535 = vst [vmem:[%s3 + $0x4] sm:$0xf] %v528
  %536 = vst [vmem:[%s3 + $0x8] sm:$0xf] %v529
  %537 = vst [vmem:[%s3 + $0xc] sm:$0xf] %v530
  %538 = vst [vmem:[%s3 + $0x10] sm:$0xf] %v531
  %539 = vst [vmem:[%s3 + $0x14] sm:$0xf] %v532
  %540 = vst [vmem:[%s3 + $0x18] sm:$0xf] %v533
  // Predicated region
  $region14: #{net_forward.4} parent=0 // pred_check
    _
  $region15: #{net_forward.4} parent=0 // pred_check_branch
    %542 = sbr.rel (0) target = $region17
  $region16: #{net_forward.4} parent=0 // pred_region
    _
  $region17: #{net_forward.4} parent=0 // pred_fallthru
    _
  // Predicated region
  $region18: #{net_forward.4} parent=0 // pred_check
    _
  $region19: #{net_forward.4} parent=0 // pred_check_branch
    %544 = sbr.rel (0) target = $region21
  $region20: #{net_forward.4} parent=0 // pred_region
    _
  $region21: #{net_forward.4} parent=0 // pred_fallthru
    _

</llo_original>
